<compile_context>
chip_gen: v7x
topology: tpu7x:2x2x1
jax: 0.10.0
libtpu: 0.0.40
codegen_flags: <defaults>
</compile_context>

<pallas_src>
import functools

import jax
import jax.numpy as jnp
from jax.experimental import pallas as pl
from jax.experimental.pallas import tpu as pltpu

EPSILON = 1e-07
LANES = 128
TM = 2048            # rows per input block per step: 2048*128*4B = 1 MiB f32
ACC_ROWS = 64        # resident accumulator (64,128) f32 = 8 vregs -> 8x add ILP


def _msle_sum_kernel(p_ref, a_ref, o_ref, *, rows, n_inner):
    c = pl.program_id(0)          # TensorCore split ("parallel"; size 1 on 1-TC chips)
    i = pl.program_id(1)          # reduction steps ("arbitrary")

    @pl.when(i == 0)
    def _():
        o_ref[...] = jnp.zeros_like(o_ref)

    # Row-based int32 index math (rows = n_elems // 128): no 2^31 element ceiling.
    row_start = (c * n_inner + i) * TM

    # Skip fully-duplicated overflow blocks entirely (their DMA is already elided
    # because the clamped index_map repeats the previous block).
    @pl.when(row_start < rows)
    def _():
        # Upcast in-kernel so narrow dtypes stream from HBM at native width.
        p = jnp.maximum(p_ref[...].astype(jnp.float32), EPSILON)
        a = jnp.maximum(a_ref[...].astype(jnp.float32), EPSILON)
        d = jnp.log2(p + 1.0) - jnp.log2(a + 1.0)     # matches reference exactly
        sq = d * d

        # Steady state: accumulate into 8 independent vregs (no masking).
        @pl.when(row_start + TM <= rows)
        def _():
            o_ref[...] += sq.reshape(TM // ACC_ROWS, ACC_ROWS, LANES).sum(axis=0)

        # Block straddling the end of the data: mask invalid rows, then accumulate.
        @pl.when(row_start + TM > rows)
        def _():
            r = jax.lax.broadcasted_iota(jnp.int32, (TM, LANES), 0)
            sq_m = jnp.where(row_start + r < rows, sq, 0.0)
            o_ref[...] += sq_m.reshape(TM // ACC_ROWS, ACC_ROWS, LANES).sum(axis=0)


def _num_tensorcores():
    # Only v7x exposes 2 TensorCores per chip to a single Pallas grid.
    try:
        kind = jax.devices()[0].device_kind.lower()
    except Exception:
        return 1
    return 2 if "v7" in kind else 1


def _msle_log2_sq(p, a):
    p = jnp.maximum(p.astype(jnp.float32), EPSILON)
    a = jnp.maximum(a.astype(jnp.float32), EPSILON)
    d = jnp.log2(p + 1.0) - jnp.log2(a + 1.0)
    return d * d


def msle_loss(pred, actual):
    assert pred.shape == actual.shape, "pred/actual must have identical shapes"
    n_elems = pred.size

    p = pred.reshape(-1)
    a = actual.reshape(-1)

    rows = n_elems // LANES
    rem = n_elems % LANES

    # Lane-misaligned tail (<128 elems): tiny jnp epilogue instead of padding/copying
    # the full inputs.
    tail_sum = jnp.float32(0.0)
    if rem:
        tail_sum = jnp.sum(_msle_log2_sq(p[rows * LANES:], a[rows * LANES:]))

    if rows == 0:
        return tail_sum / jnp.float32(n_elems)

    p2 = p[: rows * LANES].reshape(rows, LANES)
    a2 = a[: rows * LANES].reshape(rows, LANES)

    nblocks = pl.cdiv(rows, TM)
    ncore = 2 if (nblocks >= 2 and _num_tensorcores() >= 2) else 1
    n_inner = pl.cdiv(nblocks, ncore)

    # Clamp the input block index so duplicated overflow steps (odd nblocks on
    # ncore=2) re-read the last valid block; the kernel skips their compute.
    def in_map(c, i):
        return (jnp.minimum(c * n_inner + i, nblocks - 1), 0)

    kernel = functools.partial(_msle_sum_kernel, rows=rows, n_inner=n_inner)

    itemsize = pred.dtype.itemsize
    partial_sums = pl.pallas_call(
        kernel,
        out_shape=jax.ShapeDtypeStruct((ncore, ACC_ROWS, LANES), jnp.float32),
        grid=(ncore, n_inner),
        in_specs=[
            pl.BlockSpec((TM, LANES), in_map),
            pl.BlockSpec((TM, LANES), in_map),
        ],
        out_specs=pl.BlockSpec((None, ACC_ROWS, LANES), lambda c, i: (c, 0, 0)),
        compiler_params=pltpu.CompilerParams(
            dimension_semantics=("parallel", "arbitrary"),
        ),
        cost_estimate=pl.CostEstimate(
            flops=8 * rows * LANES,
            transcendentals=2 * rows * LANES,
            bytes_accessed=2 * itemsize * rows * LANES + 4 * ncore * ACC_ROWS * LANES,
        ),
    )(p2, a2)

    # Epilogue: final cross-lane/sublane reduce + mean over the TRUE element count.
    return (jnp.sum(partial_sums) + tail_sum) / jnp.float32(n_elems)


def msle_loss_ref(pred, actual):
    p = jnp.maximum(pred.astype(jnp.float32), EPSILON)
    a = jnp.maximum(actual.astype(jnp.float32), EPSILON)
    d = jnp.log2(p + 1.0) - jnp.log2(a + 1.0)
    return jnp.mean(d * d)


if __name__ == "__main__":
    key = jax.random.PRNGKey(0)
    k1, k2, k3, k4 = jax.random.split(key, 4)

    # Small shape consistent with a generic regression output (B, C, H, W).
    shape = (2, 4, 16, 16)
    pred = jax.random.uniform(k1, shape, jnp.float32, minval=-0.5, maxval=3.0)
    actual = jax.random.uniform(k2, shape, jnp.float32, minval=-0.5, maxval=3.0)

    out = jax.block_until_ready(msle_loss(pred, actual))
    ref = msle_loss_ref(pred, actual)
    assert jnp.allclose(out, ref, rtol=2e-5, atol=1e-6), (out, ref)

    # Lane-misaligned size: exercises the prefix-kernel + jnp-tail path.
    shape2 = (3, 5, 67)
    pred2 = jax.random.uniform(k3, shape2, jnp.float32, minval=-0.5, maxval=3.0)
    actual2 = jax.random.uniform(k4, shape2, jnp.float32, minval=-0.5, maxval=3.0)
    out2 = jax.block_until_ready(msle_loss(pred2, actual2))
    ref2 = msle_loss_ref(pred2, actual2)
    assert jnp.allclose(out2, ref2, rtol=2e-5, atol=1e-6), (out2, ref2)

    print("KERNEL_OK")
</pallas_src>

<mosaic_0001>
module attributes {stable_mosaic.version = 11 : i64} {
  func.func @_msle_sum_kernel(%arg0: i32, %arg1: i32, %arg2: memref<2048x128xf32, #tpu.memory_space<vmem>>, %arg3: memref<2048x128xf32, #tpu.memory_space<vmem>>, %arg4: memref<1x64x128xf32, #tpu.memory_space<vmem>>) attributes {dimension_semantics = [#tpu.dimension_semantics<parallel>, #tpu.dimension_semantics<arbitrary>], iteration_bounds = array<i64: 1, 1>, scalar_prefetch = 0 : i64, scratch_operands = 0 : i64, tpu.core_type = #tpu.core_type<tc>, window_params = [{transform_indices = @transform_0, window_bounds = array<i64: 2048, 128>}, {transform_indices = @transform_1, window_bounds = array<i64: 2048, 128>}, {transform_indices = @transform_2, window_bounds = array<i64: 1, 64, 128>}]} {
    %c0_i32 = arith.constant 0 : i32
    %0 = arith.cmpi eq, %arg1, %c0_i32 : i32
    %1 = arith.extui %0 : i1 to i32
    %c0_i32_0 = arith.constant 0 : i32
    %2 = arith.cmpi ne, %1, %c0_i32_0 : i32
    scf.if %2 {
      %cst = arith.constant 0.000000e+00 : f32
      %9 = vector.broadcast %cst : f32 to vector<64x128xf32>
      %c0 = arith.constant 0 : index
      %c0_2 = arith.constant 0 : index
      %c0_3 = arith.constant 0 : index
      %10 = vector.load %arg4[%c0, %c0_2, %c0_3] : memref<1x64x128xf32, #tpu.memory_space<vmem>>, vector<1x64x128xf32>
      %11 = vector.shape_cast %10 : vector<1x64x128xf32> to vector<64x128xf32>
      %12 = vector.shape_cast %9 : vector<64x128xf32> to vector<1x64x128xf32>
      tpu.vector_store %arg4[%c0, %c0_2, %c0_3], %12 {strides = array<i32>} : memref<1x64x128xf32, #tpu.memory_space<vmem>>, vector<1x64x128xf32>,
    } else {
    }
    %c1_i32 = arith.constant 1 : i32
    %3 = arith.muli %arg0, %c1_i32 : i32
    %4 = arith.addi %3, %arg1 : i32
    %c2048_i32 = arith.constant 2048 : i32
    %5 = arith.muli %4, %c2048_i32 : i32
    %c16_i32 = arith.constant 16 : i32
    %6 = arith.cmpi slt, %5, %c16_i32 : i32
    %7 = arith.extui %6 : i1 to i32
    %c0_i32_1 = arith.constant 0 : i32
    %8 = arith.cmpi ne, %7, %c0_i32_1 : i32
    scf.if %8 {
      %c0 = arith.constant 0 : index
      %c0_2 = arith.constant 0 : index
      %9 = vector.load %arg2[%c0, %c0_2] : memref<2048x128xf32, #tpu.memory_space<vmem>>, vector<2048x128xf32>
      %cst = arith.constant 1.000000e-07 : f32
      %10 = vector.broadcast %cst : f32 to vector<2048x128xf32>
      %11 = arith.maximumf %9, %10 : vector<2048x128xf32>
      %c0_3 = arith.constant 0 : index
      %c0_4 = arith.constant 0 : index
      %12 = vector.load %arg3[%c0_3, %c0_4] : memref<2048x128xf32, #tpu.memory_space<vmem>>, vector<2048x128xf32>
      %cst_5 = arith.constant 1.000000e-07 : f32
      %13 = vector.broadcast %cst_5 : f32 to vector<2048x128xf32>
      %14 = arith.maximumf %12, %13 : vector<2048x128xf32>
      %cst_6 = arith.constant 1.000000e+00 : f32
      %15 = vector.broadcast %cst_6 : f32 to vector<2048x128xf32>
      %16 = arith.addf %11, %15 : vector<2048x128xf32>
      %17 = math.log %16 : vector<2048x128xf32>
      %cst_7 = arith.constant 2.000000e+00 : f32
      %18 = math.log %cst_7 : f32
      %19 = vector.broadcast %18 : f32 to vector<2048x128xf32>
      %20 = arith.divf %17, %19 : vector<2048x128xf32>
      %cst_8 = arith.constant 1.000000e+00 : f32
      %21 = vector.broadcast %cst_8 : f32 to vector<2048x128xf32>
      %22 = arith.addf %14, %21 : vector<2048x128xf32>
      %23 = math.log %22 : vector<2048x128xf32>
      %cst_9 = arith.constant 2.000000e+00 : f32
      %24 = math.log %cst_9 : f32
      %25 = vector.broadcast %24 : f32 to vector<2048x128xf32>
      %26 = arith.divf %23, %25 : vector<2048x128xf32>
      %27 = arith.subf %20, %26 : vector<2048x128xf32>
      %28 = arith.mulf %27, %27 : vector<2048x128xf32>
      %c2048_i32_10 = arith.constant 2048 : i32
      %29 = arith.addi %5, %c2048_i32_10 : i32
      %c16_i32_11 = arith.constant 16 : i32
      %30 = arith.cmpi sle, %29, %c16_i32_11 : i32
      %31 = arith.extui %30 : i1 to i32
      %c0_i32_12 = arith.constant 0 : i32
      %32 = arith.cmpi ne, %31, %c0_i32_12 : i32
      scf.if %32 {
        %c0_16 = arith.constant 0 : index
        %c0_17 = arith.constant 0 : index
        %c0_18 = arith.constant 0 : index
        %37 = vector.load %arg4[%c0_16, %c0_17, %c0_18] : memref<1x64x128xf32, #tpu.memory_space<vmem>>, vector<1x64x128xf32>
        %38 = vector.shape_cast %37 : vector<1x64x128xf32> to vector<64x128xf32>
        %39 = vector.shape_cast %28 : vector<2048x128xf32> to vector<32x64x128xf32>
        %cst_19 = arith.constant dense<0.000000e+00> : vector<64x128xf32>
        %40 = vector.multi_reduction <add>, %39, %cst_19 [0] : vector<32x64x128xf32> to vector<64x128xf32>
        %41 = arith.addf %38, %40 : vector<64x128xf32>
        %c0_20 = arith.constant 0 : index
        %c0_21 = arith.constant 0 : index
        %c0_22 = arith.constant 0 : index
        %42 = vector.load %arg4[%c0_20, %c0_21, %c0_22] : memref<1x64x128xf32, #tpu.memory_space<vmem>>, vector<1x64x128xf32>
        %43 = vector.shape_cast %42 : vector<1x64x128xf32> to vector<64x128xf32>
        %44 = vector.shape_cast %41 : vector<64x128xf32> to vector<1x64x128xf32>
        tpu.vector_store %arg4[%c0_20, %c0_21, %c0_22], %44 {strides = array<i32>} : memref<1x64x128xf32, #tpu.memory_space<vmem>>, vector<1x64x128xf32>,
      } else {
      }
      %c2048_i32_13 = arith.constant 2048 : i32
      %33 = arith.addi %5, %c2048_i32_13 : i32
      %c16_i32_14 = arith.constant 16 : i32
      %34 = arith.cmpi sgt, %33, %c16_i32_14 : i32
      %35 = arith.extui %34 : i1 to i32
      %c0_i32_15 = arith.constant 0 : i32
      %36 = arith.cmpi ne, %35, %c0_i32_15 : i32
      scf.if %36 {
        %37 = tpu.iota {dimensions = array<i32: 0>} : vector<2048x128xi32>
        %38 = vector.broadcast %5 : i32 to vector<2048x128xi32>
        %39 = arith.addi %38, %37 : vector<2048x128xi32>
        %c16_i32_16 = arith.constant 16 : i32
        %40 = vector.broadcast %c16_i32_16 : i32 to vector<2048x128xi32>
        %41 = arith.cmpi slt, %39, %40 : vector<2048x128xi32>
        %cst_17 = arith.constant 0.000000e+00 : f32
        %42 = vector.broadcast %cst_17 : f32 to vector<2048x128xf32>
        %43 = arith.select %41, %28, %42 : vector<2048x128xi1>, vector<2048x128xf32>
        %c0_18 = arith.constant 0 : index
        %c0_19 = arith.constant 0 : index
        %c0_20 = arith.constant 0 : index
        %44 = vector.load %arg4[%c0_18, %c0_19, %c0_20] : memref<1x64x128xf32, #tpu.memory_space<vmem>>, vector<1x64x128xf32>
        %45 = vector.shape_cast %44 : vector<1x64x128xf32> to vector<64x128xf32>
        %46 = vector.shape_cast %43 : vector<2048x128xf32> to vector<32x64x128xf32>
        %cst_21 = arith.constant dense<0.000000e+00> : vector<64x128xf32>
        %47 = vector.multi_reduction <add>, %46, %cst_21 [0] : vector<32x64x128xf32> to vector<64x128xf32>
        %48 = arith.addf %45, %47 : vector<64x128xf32>
        %c0_22 = arith.constant 0 : index
        %c0_23 = arith.constant 0 : index
        %c0_24 = arith.constant 0 : index
        %49 = vector.load %arg4[%c0_22, %c0_23, %c0_24] : memref<1x64x128xf32, #tpu.memory_space<vmem>>, vector<1x64x128xf32>
        %50 = vector.shape_cast %49 : vector<1x64x128xf32> to vector<64x128xf32>
        %51 = vector.shape_cast %48 : vector<64x128xf32> to vector<1x64x128xf32>
        tpu.vector_store %arg4[%c0_22, %c0_23, %c0_24], %51 {strides = array<i32>} : memref<1x64x128xf32, #tpu.memory_space<vmem>>, vector<1x64x128xf32>,
      } else {
      }
    } else {
    }
    return
  }
  func.func @transform_0(%arg0: i32, %arg1: i32) -> (i32, i32) {
    %c1_i32 = arith.constant 1 : i32
    %0 = arith.muli %arg0, %c1_i32 : i32
    %1 = arith.addi %0, %arg1 : i32
    %c0_i32 = arith.constant 0 : i32
    %2 = arith.minsi %1, %c0_i32 : i32
    %c0_i32_0 = arith.constant 0 : i32
    %c0_i32_1 = arith.constant 0 : i32
    return %2, %c0_i32_0 : i32, i32
  }
  func.func @transform_1(%arg0: i32, %arg1: i32) -> (i32, i32) {
    %c1_i32 = arith.constant 1 : i32
    %0 = arith.muli %arg0, %c1_i32 : i32
    %1 = arith.addi %0, %arg1 : i32
    %c0_i32 = arith.constant 0 : i32
    %2 = arith.minsi %1, %c0_i32 : i32
    %c0_i32_0 = arith.constant 0 : i32
    %c0_i32_1 = arith.constant 0 : i32
    return %2, %c0_i32_0 : i32, i32
  }
  func.func @transform_2(%arg0: i32, %arg1: i32) -> (i32, i32, i32) {
    %c0_i32 = arith.constant 0 : i32
    %c0_i32_0 = arith.constant 0 : i32
    %c0_i32_1 = arith.constant 0 : i32
    return %arg0, %c0_i32, %c0_i32_0 : i32, i32, i32
  }
}

</mosaic_0001>

<llo_original>
// kernel: tpu_custom_call.1
$region0: #{tpu_custom_call.1}
  #allocation0 [shape = 'u32[]', space=smem, size = 0x4, offset = 0x4, fixed_abs, tag = 'smem constant byte address 0x4 - core index']
  #allocation1 [shape = 'u32[144,128]{1,0:T(1,128)}', space=vmem, size = 0x12000, scoped, tag = 'internal scratch']
  %s0 = inlined_call_operand.hbm [shape: f32[16,128], index: 0, kind: input, shape index: {}]
  %s1 = inlined_call_operand.hbm [shape: f32[16,128], index: 1, kind: input, shape index: {}]
  %s2 = inlined_call_operand.hbm [shape: f32[1,64,128], index: 2, kind: output, shape index: {}]
  %s3 = sld [smem:[#allocation0]]
  $region42: #{tpu_custom_call.1} parent=0
    _
  %s5 = ssub.s32 1, %s3
  %s6 = scalar_select 0, %s5, %s3
  $region1: #{tpu_custom_call.1} parent=0
    #allocation2 [shape = 'u8[1048576]{0}', space=vmem, size = 0x100000, scoped, tag = 'input window, operand 0, single buffered']
    #allocation3 [shape = 's32[1]{0}', space=sflag, size = 0x4, scoped, tag = 'scoped memory for tpu_custom_call.1']
    #allocation4 [shape = 's32[1]{0}', space=sflag, size = 0x4, scoped, tag = 'scoped memory for tpu_custom_call.1']
    #allocation5 [shape = 'u8[1048576]{0}', space=vmem, size = 0x100000, scoped, tag = 'input window, operand 1, single buffered']
    #allocation6 [shape = 's32[1]{0}', space=sflag, size = 0x4, scoped, tag = 'scoped memory for tpu_custom_call.1']
    #allocation7 [shape = 'u8[32768]{0}', space=vmem, size = 0x8000, scoped, tag = 'output window, operand 0, single buffered']
    %7 = vsyncpa [#allocation3], 0
    %8 = vsyncpa [#allocation6], 0
    %9 = vsyncpa [#allocation4], 0
    // Predicated region
    $region2: #{tpu_custom_call.1} parent=1 // pred_check
      _
    $region3: #{tpu_custom_call.1} parent=1 // pred_check_branch
      %11 = sbr.rel (0) target = $region5
    $region4: #{tpu_custom_call.1} parent=1 // pred_region
      %s12 = sadd.s32 0, 0
      %p13 = scmp.lt.s32.totalorder %s12, 0
      %s14 = scalar_select %p13, %s12, 0
      %s15 = smul.u32 256, %s14
      %s16 = ssub.s32 2, %s15
      %s17 = smul.u32 128, %s16
      %s19 = ssub.s32 32768, %s17
      %20 = vsyncadd [#allocation3], %s19
      %p21 = scmp.ne.s32.totalorder 0, %s17
      %s22 = smul.addr %s15, 128
      %s23 = scalar_lea.hbm %s0, %s22
      %s24 = smul.u32 8, %s16
      %s25 = sshll.u32 [#allocation2], 4
      %s26 = int_to_ptr.vmem [resolvable:$true] %s25
      %s27 = sshll.u32 %s24, 4
      %31 = dma.hbm_to_vmem [thread:$0]  (%p21), %s23, %s27, %s26, [#allocation3], 128, 128, 8
    $region5: #{tpu_custom_call.1} parent=1 // pred_fallthru
      _
    // Predicated region
    $region6: #{tpu_custom_call.1} parent=1 // pred_check
      _
    $region7: #{tpu_custom_call.1} parent=1 // pred_check_branch
      %33 = sbr.rel (0) target = $region9
    $region8: #{tpu_custom_call.1} parent=1 // pred_region
      %s34 = sadd.s32 0, 0
      %p35 = scmp.lt.s32.totalorder %s34, 0
      %s36 = scalar_select %p35, %s34, 0
      %s37 = smul.u32 256, %s36
      %s38 = ssub.s32 2, %s37
      %s39 = smul.u32 128, %s38
      %s41 = ssub.s32 32768, %s39
      %42 = vsyncadd [#allocation6], %s41
      %p43 = scmp.ne.s32.totalorder 0, %s39
      %s44 = smul.addr %s37, 128
      %s45 = scalar_lea.hbm %s1, %s44
      %s46 = smul.u32 8, %s38
      %s47 = sshll.u32 [#allocation5], 4
      %s48 = int_to_ptr.vmem [resolvable:$true] %s47
      %s49 = sshll.u32 %s46, 4
      %53 = dma.hbm_to_vmem [thread:$0]  (%p43), %s45, %s49, %s48, [#allocation6], 128, 128, 8
    $region9: #{tpu_custom_call.1} parent=1 // pred_fallthru
      _
    // Predicated region
    $region10: #{tpu_custom_call.1} parent=1 // pred_check
      _
    $region11: #{tpu_custom_call.1} parent=1 // pred_check_branch
      %55 = sbr.rel (0) target = $region13
    $region12: #{tpu_custom_call.1} parent=1 // pred_region
      %56 = dma.done [#allocation3], 32768
    $region13: #{tpu_custom_call.1} parent=1 // pred_fallthru
      _
    // Predicated region
    $region14: #{tpu_custom_call.1} parent=1 // pred_check
      _
    $region15: #{tpu_custom_call.1} parent=1 // pred_check_branch
      %58 = sbr.rel (0) target = $region17
    $region16: #{tpu_custom_call.1} parent=1 // pred_region
      %59 = dma.done [#allocation6], 32768
    $region17: #{tpu_custom_call.1} parent=1 // pred_fallthru
      _
    %s60 = sadd.s32 0, 0
    %p61 = scmp.lt.s32.totalorder %s60, 0
    %s62 = scalar_select %p61, %s60, 0
    %s63 = smul.u32 256, %s62
    %s64 = ssub.s32 2, %s63
    %s65 = smul.u32 128, %s64
    %s66 = sadd.s32 0, 0
    %p67 = scmp.lt.s32.totalorder %s66, 0
    %s68 = scalar_select %p67, %s66, 0
    %s69 = smul.u32 256, %s68
    %s70 = ssub.s32 2, %s69
    %s71 = smul.u32 128, %s70
    %p72 = scmp.eq.s32.totalorder 0, 0
    // Predicated region
    $region18: #{tpu_custom_call.1} parent=1 // pred_check
      %p73 = pneg %p72
    $region19: #{tpu_custom_call.1} parent=1 // pred_check_branch
      %75 = sbr.rel (%p73) target = $region21
    $region20: #{tpu_custom_call.1} parent=1 // pred_region
      %76 = vst [vmem:[#allocation7] sm:$0xff] 0.0
      %77 = vst [vmem:[#allocation7 + $0x8] sm:$0xff] 0.0
      %78 = vst [vmem:[#allocation7 + $0x10] sm:$0xff] 0.0
      %79 = vst [vmem:[#allocation7 + $0x18] sm:$0xff] 0.0
      %80 = vst [vmem:[#allocation7 + $0x20] sm:$0xff] 0.0
      %81 = vst [vmem:[#allocation7 + $0x28] sm:$0xff] 0.0
      %82 = vst [vmem:[#allocation7 + $0x30] sm:$0xff] 0.0
      %83 = vst [vmem:[#allocation7 + $0x38] sm:$0xff] 0.0
    $region21: #{tpu_custom_call.1} parent=1 // pred_fallthru
      _
    %s84 = sadd.s32 0, 0
    %s85 = smul.u32 %s84, 2048
    %p86 = scmp.lt.s32.totalorder %s85, 16
    // Predicated region
    $region22: #{tpu_custom_call.1} parent=1 // pred_check
      %p87 = pneg %p86
    $region23: #{tpu_custom_call.1} parent=1 // pred_check_branch
      %89 = sbr.rel (%p87) target = $region25
    $region24: #{tpu_custom_call.1} parent=1 // pred_region
      %v90 = vld [vmem:[#allocation2] sm:$0xff]
      %v91 = vld [vmem:[#allocation2 + $0x8] sm:$0xff]
      %v92 = vld [vmem:[#allocation2 + $0x10] sm:$0xff]
      %v93 = vld [vmem:[#allocation2 + $0x18] sm:$0xff]
      %v94 = vld [vmem:[#allocation2 + $0x20] sm:$0xff]
      %v95 = vld [vmem:[#allocation2 + $0x28] sm:$0xff]
      %v96 = vld [vmem:[#allocation2 + $0x30] sm:$0xff]
      %v97 = vld [vmem:[#allocation2 + $0x38] sm:$0xff]
      %v98 = vld [vmem:[#allocation2 + $0x40] sm:$0xff]
      %v99 = vld [vmem:[#allocation2 + $0x48] sm:$0xff]
      %v100 = vld [vmem:[#allocation2 + $0x50] sm:$0xff]
      %v101 = vld [vmem:[#allocation2 + $0x58] sm:$0xff]
      %v102 = vld [vmem:[#allocation2 + $0x60] sm:$0xff]
      %v103 = vld [vmem:[#allocation2 + $0x68] sm:$0xff]
      %v104 = vld [vmem:[#allocation2 + $0x70] sm:$0xff]
      %v105 = vld [vmem:[#allocation2 + $0x78] sm:$0xff]
      %v106 = vld [vmem:[#allocation2 + $0x80] sm:$0xff]
      %v107 = vld [vmem:[#allocation2 + $0x88] sm:$0xff]
      %v108 = vld [vmem:[#allocation2 + $0x90] sm:$0xff]
      %v109 = vld [vmem:[#allocation2 + $0x98] sm:$0xff]
      %v110 = vld [vmem:[#allocation2 + $0xa0] sm:$0xff]
      %v111 = vld [vmem:[#allocation2 + $0xa8] sm:$0xff]
      %v112 = vld [vmem:[#allocation2 + $0xb0] sm:$0xff]
      %v113 = vld [vmem:[#allocation2 + $0xb8] sm:$0xff]
      %v114 = vld [vmem:[#allocation2 + $0xc0] sm:$0xff]
      %v115 = vld [vmem:[#allocation2 + $0xc8] sm:$0xff]
      %v116 = vld [vmem:[#allocation2 + $0xd0] sm:$0xff]
      %v117 = vld [vmem:[#allocation2 + $0xd8] sm:$0xff]
      %v118 = vld [vmem:[#allocation2 + $0xe0] sm:$0xff]
      %v119 = vld [vmem:[#allocation2 + $0xe8] sm:$0xff]
      %v120 = vld [vmem:[#allocation2 + $0xf0] sm:$0xff]
      %v121 = vld [vmem:[#allocation2 + $0xf8] sm:$0xff]
      %v122 = vld [vmem:[#allocation2 + $0x100] sm:$0xff]
      %v123 = vld [vmem:[#allocation2 + $0x108] sm:$0xff]
      %v124 = vld [vmem:[#allocation2 + $0x110] sm:$0xff]
      %v125 = vld [vmem:[#allocation2 + $0x118] sm:$0xff]
      %v126 = vld [vmem:[#allocation2 + $0x120] sm:$0xff]
      %v127 = vld [vmem:[#allocation2 + $0x128] sm:$0xff]
      %v128 = vld [vmem:[#allocation2 + $0x130] sm:$0xff]
      %v129 = vld [vmem:[#allocation2 + $0x138] sm:$0xff]
      %v130 = vld [vmem:[#allocation2 + $0x140] sm:$0xff]
      %v131 = vld [vmem:[#allocation2 + $0x148] sm:$0xff]
      %v132 = vld [vmem:[#allocation2 + $0x150] sm:$0xff]
      %v133 = vld [vmem:[#allocation2 + $0x158] sm:$0xff]
      %v134 = vld [vmem:[#allocation2 + $0x160] sm:$0xff]
      %v135 = vld [vmem:[#allocation2 + $0x168] sm:$0xff]
      %v136 = vld [vmem:[#allocation2 + $0x170] sm:$0xff]
      %v137 = vld [vmem:[#allocation2 + $0x178] sm:$0xff]
      %v138 = vld [vmem:[#allocation2 + $0x180] sm:$0xff]
      %v139 = vld [vmem:[#allocation2 + $0x188] sm:$0xff]
      %v140 = vld [vmem:[#allocation2 + $0x190] sm:$0xff]
      %v141 = vld [vmem:[#allocation2 + $0x198] sm:$0xff]
      %v142 = vld [vmem:[#allocation2 + $0x1a0] sm:$0xff]
      %v143 = vld [vmem:[#allocation2 + $0x1a8] sm:$0xff]
      %v144 = vld [vmem:[#allocation2 + $0x1b0] sm:$0xff]
      %v145 = vld [vmem:[#allocation2 + $0x1b8] sm:$0xff]
      %v146 = vld [vmem:[#allocation2 + $0x1c0] sm:$0xff]
      %v147 = vld [vmem:[#allocation2 + $0x1c8] sm:$0xff]
      %v148 = vld [vmem:[#allocation2 + $0x1d0] sm:$0xff]
      %v149 = vld [vmem:[#allocation2 + $0x1d8] sm:$0xff]
      %v150 = vld [vmem:[#allocation2 + $0x1e0] sm:$0xff]
      %v151 = vld [vmem:[#allocation2 + $0x1e8] sm:$0xff]
      %v152 = vld [vmem:[#allocation2 + $0x1f0] sm:$0xff]
      %v153 = vld [vmem:[#allocation2 + $0x1f8] sm:$0xff]
      %v154 = vld [vmem:[#allocation2 + $0x200] sm:$0xff]
      %v155 = vld [vmem:[#allocation2 + $0x208] sm:$0xff]
      %v156 = vld [vmem:[#allocation2 + $0x210] sm:$0xff]
      %v157 = vld [vmem:[#allocation2 + $0x218] sm:$0xff]
      %v158 = vld [vmem:[#allocation2 + $0x220] sm:$0xff]
      %v159 = vld [vmem:[#allocation2 + $0x228] sm:$0xff]
      %v160 = vld [vmem:[#allocation2 + $0x230] sm:$0xff]
      %v161 = vld [vmem:[#allocation2 + $0x238] sm:$0xff]
      %v162 = vld [vmem:[#allocation2 + $0x240] sm:$0xff]
      %v163 = vld [vmem:[#allocation2 + $0x248] sm:$0xff]
      %v164 = vld [vmem:[#allocation2 + $0x250] sm:$0xff]
      %v165 = vld [vmem:[#allocation2 + $0x258] sm:$0xff]
      %v166 = vld [vmem:[#allocation2 + $0x260] sm:$0xff]
      %v167 = vld [vmem:[#allocation2 + $0x268] sm:$0xff]
      %v168 = vld [vmem:[#allocation2 + $0x270] sm:$0xff]
      %v169 = vld [vmem:[#allocation2 + $0x278] sm:$0xff]
      %v170 = vld [vmem:[#allocation2 + $0x280] sm:$0xff]
      %v171 = vld [vmem:[#allocation2 + $0x288] sm:$0xff]
      %v172 = vld [vmem:[#allocation2 + $0x290] sm:$0xff]
      %v173 = vld [vmem:[#allocation2 + $0x298] sm:$0xff]
      %v174 = vld [vmem:[#allocation2 + $0x2a0] sm:$0xff]
      %v175 = vld [vmem:[#allocation2 + $0x2a8] sm:$0xff]
      %v176 = vld [vmem:[#allocation2 + $0x2b0] sm:$0xff]
      %v177 = vld [vmem:[#allocation2 + $0x2b8] sm:$0xff]
      %v178 = vld [vmem:[#allocation2 + $0x2c0] sm:$0xff]
      %v179 = vld [vmem:[#allocation2 + $0x2c8] sm:$0xff]
      %v180 = vld [vmem:[#allocation2 + $0x2d0] sm:$0xff]
      %v181 = vld [vmem:[#allocation2 + $0x2d8] sm:$0xff]
      %v182 = vld [vmem:[#allocation2 + $0x2e0] sm:$0xff]
      %v183 = vld [vmem:[#allocation2 + $0x2e8] sm:$0xff]
      %v184 = vld [vmem:[#allocation2 + $0x2f0] sm:$0xff]
      %v185 = vld [vmem:[#allocation2 + $0x2f8] sm:$0xff]
      %v186 = vld [vmem:[#allocation2 + $0x300] sm:$0xff]
      %v187 = vld [vmem:[#allocation2 + $0x308] sm:$0xff]
      %v188 = vld [vmem:[#allocation2 + $0x310] sm:$0xff]
      %v189 = vld [vmem:[#allocation2 + $0x318] sm:$0xff]
      %v190 = vld [vmem:[#allocation2 + $0x320] sm:$0xff]
      %v191 = vld [vmem:[#allocation2 + $0x328] sm:$0xff]
      %v192 = vld [vmem:[#allocation2 + $0x330] sm:$0xff]
      %v193 = vld [vmem:[#allocation2 + $0x338] sm:$0xff]
      %v194 = vld [vmem:[#allocation2 + $0x340] sm:$0xff]
      %v195 = vld [vmem:[#allocation2 + $0x348] sm:$0xff]
      %v196 = vld [vmem:[#allocation2 + $0x350] sm:$0xff]
      %v197 = vld [vmem:[#allocation2 + $0x358] sm:$0xff]
      %v198 = vld [vmem:[#allocation2 + $0x360] sm:$0xff]
      %v199 = vld [vmem:[#allocation2 + $0x368] sm:$0xff]
      %v200 = vld [vmem:[#allocation2 + $0x370] sm:$0xff]
      %v201 = vld [vmem:[#allocation2 + $0x378] sm:$0xff]
      %v202 = vld [vmem:[#allocation2 + $0x380] sm:$0xff]
      %v203 = vld [vmem:[#allocation2 + $0x388] sm:$0xff]
      %v204 = vld [vmem:[#allocation2 + $0x390] sm:$0xff]
      %v205 = vld [vmem:[#allocation2 + $0x398] sm:$0xff]
      %v206 = vld [vmem:[#allocation2 + $0x3a0] sm:$0xff]
      %v207 = vld [vmem:[#allocation2 + $0x3a8] sm:$0xff]
      %v208 = vld [vmem:[#allocation2 + $0x3b0] sm:$0xff]
      %v209 = vld [vmem:[#allocation2 + $0x3b8] sm:$0xff]
      %v210 = vld [vmem:[#allocation2 + $0x3c0] sm:$0xff]
      %v211 = vld [vmem:[#allocation2 + $0x3c8] sm:$0xff]
      %v212 = vld [vmem:[#allocation2 + $0x3d0] sm:$0xff]
      %v213 = vld [vmem:[#allocation2 + $0x3d8] sm:$0xff]
      %v214 = vld [vmem:[#allocation2 + $0x3e0] sm:$0xff]
      %v215 = vld [vmem:[#allocation2 + $0x3e8] sm:$0xff]
      %v216 = vld [vmem:[#allocation2 + $0x3f0] sm:$0xff]
      %v217 = vld [vmem:[#allocation2 + $0x3f8] sm:$0xff]
      %v218 = vld [vmem:[#allocation2 + $0x400] sm:$0xff]
      %v219 = vld [vmem:[#allocation2 + $0x408] sm:$0xff]
      %v220 = vld [vmem:[#allocation2 + $0x410] sm:$0xff]
      %v221 = vld [vmem:[#allocation2 + $0x418] sm:$0xff]
      %v222 = vld [vmem:[#allocation2 + $0x420] sm:$0xff]
      %v223 = vld [vmem:[#allocation2 + $0x428] sm:$0xff]
      %v224 = vld [vmem:[#allocation2 + $0x430] sm:$0xff]
      %v225 = vld [vmem:[#allocation2 + $0x438] sm:$0xff]
      %v226 = vld [vmem:[#allocation2 + $0x440] sm:$0xff]
      %v227 = vld [vmem:[#allocation2 + $0x448] sm:$0xff]
      %v228 = vld [vmem:[#allocation2 + $0x450] sm:$0xff]
      %v229 = vld [vmem:[#allocation2 + $0x458] sm:$0xff]
      %v230 = vld [vmem:[#allocation2 + $0x460] sm:$0xff]
      %v231 = vld [vmem:[#allocation2 + $0x468] sm:$0xff]
      %v232 = vld [vmem:[#allocation2 + $0x470] sm:$0xff]
      %v233 = vld [vmem:[#allocation2 + $0x478] sm:$0xff]
      %v234 = vld [vmem:[#allocation2 + $0x480] sm:$0xff]
      %v235 = vld [vmem:[#allocation2 + $0x488] sm:$0xff]
      %v236 = vld [vmem:[#allocation2 + $0x490] sm:$0xff]
      %v237 = vld [vmem:[#allocation2 + $0x498] sm:$0xff]
      %v238 = vld [vmem:[#allocation2 + $0x4a0] sm:$0xff]
      %v239 = vld [vmem:[#allocation2 + $0x4a8] sm:$0xff]
      %v240 = vld [vmem:[#allocation2 + $0x4b0] sm:$0xff]
      %v241 = vld [vmem:[#allocation2 + $0x4b8] sm:$0xff]
      %v242 = vld [vmem:[#allocation2 + $0x4c0] sm:$0xff]
      %v243 = vld [vmem:[#allocation2 + $0x4c8] sm:$0xff]
      %v244 = vld [vmem:[#allocation2 + $0x4d0] sm:$0xff]
      %v245 = vld [vmem:[#allocation2 + $0x4d8] sm:$0xff]
      %v246 = vld [vmem:[#allocation2 + $0x4e0] sm:$0xff]
      %v247 = vld [vmem:[#allocation2 + $0x4e8] sm:$0xff]
      %v248 = vld [vmem:[#allocation2 + $0x4f0] sm:$0xff]
      %v249 = vld [vmem:[#allocation2 + $0x4f8] sm:$0xff]
      %v250 = vld [vmem:[#allocation2 + $0x500] sm:$0xff]
      %v251 = vld [vmem:[#allocation2 + $0x508] sm:$0xff]
      %v252 = vld [vmem:[#allocation2 + $0x510] sm:$0xff]
      %v253 = vld [vmem:[#allocation2 + $0x518] sm:$0xff]
      %v254 = vld [vmem:[#allocation2 + $0x520] sm:$0xff]
      %v255 = vld [vmem:[#allocation2 + $0x528] sm:$0xff]
      %v256 = vld [vmem:[#allocation2 + $0x530] sm:$0xff]
      %v257 = vld [vmem:[#allocation2 + $0x538] sm:$0xff]
      %v258 = vld [vmem:[#allocation2 + $0x540] sm:$0xff]
      %v259 = vld [vmem:[#allocation2 + $0x548] sm:$0xff]
      %v260 = vld [vmem:[#allocation2 + $0x550] sm:$0xff]
      %v261 = vld [vmem:[#allocation2 + $0x558] sm:$0xff]
      %v262 = vld [vmem:[#allocation2 + $0x560] sm:$0xff]
      %v263 = vld [vmem:[#allocation2 + $0x568] sm:$0xff]
      %v264 = vld [vmem:[#allocation2 + $0x570] sm:$0xff]
      %v265 = vld [vmem:[#allocation2 + $0x578] sm:$0xff]
      %v266 = vld [vmem:[#allocation2 + $0x580] sm:$0xff]
      %v267 = vld [vmem:[#allocation2 + $0x588] sm:$0xff]
      %v268 = vld [vmem:[#allocation2 + $0x590] sm:$0xff]
      %v269 = vld [vmem:[#allocation2 + $0x598] sm:$0xff]
      %v270 = vld [vmem:[#allocation2 + $0x5a0] sm:$0xff]
      %v271 = vld [vmem:[#allocation2 + $0x5a8] sm:$0xff]
      %v272 = vld [vmem:[#allocation2 + $0x5b0] sm:$0xff]
      %v273 = vld [vmem:[#allocation2 + $0x5b8] sm:$0xff]
      %v274 = vld [vmem:[#allocation2 + $0x5c0] sm:$0xff]
      %v275 = vld [vmem:[#allocation2 + $0x5c8] sm:$0xff]
      %v276 = vld [vmem:[#allocation2 + $0x5d0] sm:$0xff]
      %v277 = vld [vmem:[#allocation2 + $0x5d8] sm:$0xff]
      %v278 = vld [vmem:[#allocation2 + $0x5e0] sm:$0xff]
      %v279 = vld [vmem:[#allocation2 + $0x5e8] sm:$0xff]
      %v280 = vld [vmem:[#allocation2 + $0x5f0] sm:$0xff]
      %v281 = vld [vmem:[#allocation2 + $0x5f8] sm:$0xff]
      %v282 = vld [vmem:[#allocation2 + $0x600] sm:$0xff]
      %v283 = vld [vmem:[#allocation2 + $0x608] sm:$0xff]
      %v284 = vld [vmem:[#allocation2 + $0x610] sm:$0xff]
      %v285 = vld [vmem:[#allocation2 + $0x618] sm:$0xff]
      %v286 = vld [vmem:[#allocation2 + $0x620] sm:$0xff]
      %v287 = vld [vmem:[#allocation2 + $0x628] sm:$0xff]
      %v288 = vld [vmem:[#allocation2 + $0x630] sm:$0xff]
      %v289 = vld [vmem:[#allocation2 + $0x638] sm:$0xff]
      %v290 = vld [vmem:[#allocation2 + $0x640] sm:$0xff]
      %v291 = vld [vmem:[#allocation2 + $0x648] sm:$0xff]
      %v292 = vld [vmem:[#allocation2 + $0x650] sm:$0xff]
      %v293 = vld [vmem:[#allocation2 + $0x658] sm:$0xff]
      %v294 = vld [vmem:[#allocation2 + $0x660] sm:$0xff]
      %v295 = vld [vmem:[#allocation2 + $0x668] sm:$0xff]
      %v296 = vld [vmem:[#allocation2 + $0x670] sm:$0xff]
      %v297 = vld [vmem:[#allocation2 + $0x678] sm:$0xff]
      %v298 = vld [vmem:[#allocation2 + $0x680] sm:$0xff]
      %v299 = vld [vmem:[#allocation2 + $0x688] sm:$0xff]
      %v300 = vld [vmem:[#allocation2 + $0x690] sm:$0xff]
      %v301 = vld [vmem:[#allocation2 + $0x698] sm:$0xff]
      %v302 = vld [vmem:[#allocation2 + $0x6a0] sm:$0xff]
      %v303 = vld [vmem:[#allocation2 + $0x6a8] sm:$0xff]
      %v304 = vld [vmem:[#allocation2 + $0x6b0] sm:$0xff]
      %v305 = vld [vmem:[#allocation2 + $0x6b8] sm:$0xff]
      %v306 = vld [vmem:[#allocation2 + $0x6c0] sm:$0xff]
      %v307 = vld [vmem:[#allocation2 + $0x6c8] sm:$0xff]
      %v308 = vld [vmem:[#allocation2 + $0x6d0] sm:$0xff]
      %v309 = vld [vmem:[#allocation2 + $0x6d8] sm:$0xff]
      %v310 = vld [vmem:[#allocation2 + $0x6e0] sm:$0xff]
      %v311 = vld [vmem:[#allocation2 + $0x6e8] sm:$0xff]
      %v312 = vld [vmem:[#allocation2 + $0x6f0] sm:$0xff]
      %v313 = vld [vmem:[#allocation2 + $0x6f8] sm:$0xff]
      %v314 = vld [vmem:[#allocation2 + $0x700] sm:$0xff]
      %v315 = vld [vmem:[#allocation2 + $0x708] sm:$0xff]
      %v316 = vld [vmem:[#allocation2 + $0x710] sm:$0xff]
      %v317 = vld [vmem:[#allocation2 + $0x718] sm:$0xff]
      %v318 = vld [vmem:[#allocation2 + $0x720] sm:$0xff]
      %v319 = vld [vmem:[#allocation2 + $0x728] sm:$0xff]
      %v320 = vld [vmem:[#allocation2 + $0x730] sm:$0xff]
      %v321 = vld [vmem:[#allocation2 + $0x738] sm:$0xff]
      %v322 = vld [vmem:[#allocation2 + $0x740] sm:$0xff]
      %v323 = vld [vmem:[#allocation2 + $0x748] sm:$0xff]
      %v324 = vld [vmem:[#allocation2 + $0x750] sm:$0xff]
      %v325 = vld [vmem:[#allocation2 + $0x758] sm:$0xff]
      %v326 = vld [vmem:[#allocation2 + $0x760] sm:$0xff]
      %v327 = vld [vmem:[#allocation2 + $0x768] sm:$0xff]
      %v328 = vld [vmem:[#allocation2 + $0x770] sm:$0xff]
      %v329 = vld [vmem:[#allocation2 + $0x778] sm:$0xff]
      %v330 = vld [vmem:[#allocation2 + $0x780] sm:$0xff]
      %v331 = vld [vmem:[#allocation2 + $0x788] sm:$0xff]
      %v332 = vld [vmem:[#allocation2 + $0x790] sm:$0xff]
      %v333 = vld [vmem:[#allocation2 + $0x798] sm:$0xff]
      %v334 = vld [vmem:[#allocation2 + $0x7a0] sm:$0xff]
      %v335 = vld [vmem:[#allocation2 + $0x7a8] sm:$0xff]
      %v336 = vld [vmem:[#allocation2 + $0x7b0] sm:$0xff]
      %v337 = vld [vmem:[#allocation2 + $0x7b8] sm:$0xff]
      %v338 = vld [vmem:[#allocation2 + $0x7c0] sm:$0xff]
      %v339 = vld [vmem:[#allocation2 + $0x7c8] sm:$0xff]
      %v340 = vld [vmem:[#allocation2 + $0x7d0] sm:$0xff]
      %v341 = vld [vmem:[#allocation2 + $0x7d8] sm:$0xff]
      %v342 = vld [vmem:[#allocation2 + $0x7e0] sm:$0xff]
      %v343 = vld [vmem:[#allocation2 + $0x7e8] sm:$0xff]
      %v344 = vld [vmem:[#allocation2 + $0x7f0] sm:$0xff]
      %v345 = vld [vmem:[#allocation2 + $0x7f8] sm:$0xff]
      %v346 = vmax.f32 %v90, 1e-07
      %v347 = vmax.f32 %v91, 1e-07
      %v348 = vmax.f32 %v92, 1e-07
      %v349 = vmax.f32 %v93, 1e-07
      %v350 = vmax.f32 %v94, 1e-07
      %v351 = vmax.f32 %v95, 1e-07
      %v352 = vmax.f32 %v96, 1e-07
      %v353 = vmax.f32 %v97, 1e-07
      %v354 = vmax.f32 %v98, 1e-07
      %v355 = vmax.f32 %v99, 1e-07
      %v356 = vmax.f32 %v100, 1e-07
      %v357 = vmax.f32 %v101, 1e-07
      %v358 = vmax.f32 %v102, 1e-07
      %v359 = vmax.f32 %v103, 1e-07
      %v360 = vmax.f32 %v104, 1e-07
      %v361 = vmax.f32 %v105, 1e-07
      %v362 = vmax.f32 %v106, 1e-07
      %v363 = vmax.f32 %v107, 1e-07
      %v364 = vmax.f32 %v108, 1e-07
      %v365 = vmax.f32 %v109, 1e-07
      %v366 = vmax.f32 %v110, 1e-07
      %v367 = vmax.f32 %v111, 1e-07
      %v368 = vmax.f32 %v112, 1e-07
      %v369 = vmax.f32 %v113, 1e-07
      %v370 = vmax.f32 %v114, 1e-07
      %v371 = vmax.f32 %v115, 1e-07
      %v372 = vmax.f32 %v116, 1e-07
      %v373 = vmax.f32 %v117, 1e-07
      %v374 = vmax.f32 %v118, 1e-07
      %v375 = vmax.f32 %v119, 1e-07
      %v376 = vmax.f32 %v120, 1e-07
      %v377 = vmax.f32 %v121, 1e-07
      %v378 = vmax.f32 %v122, 1e-07
      %v379 = vmax.f32 %v123, 1e-07
      %v380 = vmax.f32 %v124, 1e-07
      %v381 = vmax.f32 %v125, 1e-07
      %v382 = vmax.f32 %v126, 1e-07
      %v383 = vmax.f32 %v127, 1e-07
      %v384 = vmax.f32 %v128, 1e-07
      %v385 = vmax.f32 %v129, 1e-07
      %v386 = vmax.f32 %v130, 1e-07
      %v387 = vmax.f32 %v131, 1e-07
      %v388 = vmax.f32 %v132, 1e-07
      %v389 = vmax.f32 %v133, 1e-07
      %v390 = vmax.f32 %v134, 1e-07
      %v391 = vmax.f32 %v135, 1e-07
      %v392 = vmax.f32 %v136, 1e-07
      %v393 = vmax.f32 %v137, 1e-07
      %v394 = vmax.f32 %v138, 1e-07
      %v395 = vmax.f32 %v139, 1e-07
      %v396 = vmax.f32 %v140, 1e-07
      %v397 = vmax.f32 %v141, 1e-07
      %v398 = vmax.f32 %v142, 1e-07
      %v399 = vmax.f32 %v143, 1e-07
      %v400 = vmax.f32 %v144, 1e-07
      %v401 = vmax.f32 %v145, 1e-07
      %v402 = vmax.f32 %v146, 1e-07
      %v403 = vmax.f32 %v147, 1e-07
      %v404 = vmax.f32 %v148, 1e-07
      %v405 = vmax.f32 %v149, 1e-07
      %v406 = vmax.f32 %v150, 1e-07
      %v407 = vmax.f32 %v151, 1e-07
      %v408 = vmax.f32 %v152, 1e-07
      %v409 = vmax.f32 %v153, 1e-07
      %v410 = vmax.f32 %v154, 1e-07
      %v411 = vmax.f32 %v155, 1e-07
      %v412 = vmax.f32 %v156, 1e-07
      %v413 = vmax.f32 %v157, 1e-07
      %v414 = vmax.f32 %v158, 1e-07
      %v415 = vmax.f32 %v159, 1e-07
      %v416 = vmax.f32 %v160, 1e-07
      %v417 = vmax.f32 %v161, 1e-07
      %v418 = vmax.f32 %v162, 1e-07
      %v419 = vmax.f32 %v163, 1e-07
      %v420 = vmax.f32 %v164, 1e-07
      %v421 = vmax.f32 %v165, 1e-07
      %v422 = vmax.f32 %v166, 1e-07
      %v423 = vmax.f32 %v167, 1e-07
      %v424 = vmax.f32 %v168, 1e-07
      %v425 = vmax.f32 %v169, 1e-07
      %v426 = vmax.f32 %v170, 1e-07
      %v427 = vmax.f32 %v171, 1e-07
      %v428 = vmax.f32 %v172, 1e-07
      %v429 = vmax.f32 %v173, 1e-07
      %v430 = vmax.f32 %v174, 1e-07
      %v431 = vmax.f32 %v175, 1e-07
      %v432 = vmax.f32 %v176, 1e-07
      %v433 = vmax.f32 %v177, 1e-07
      %v434 = vmax.f32 %v178, 1e-07
      %v435 = vmax.f32 %v179, 1e-07
      %v436 = vmax.f32 %v180, 1e-07
      %v437 = vmax.f32 %v181, 1e-07
      %v438 = vmax.f32 %v182, 1e-07
      %v439 = vmax.f32 %v183, 1e-07
      %v440 = vmax.f32 %v184, 1e-07
      %v441 = vmax.f32 %v185, 1e-07
      %v442 = vmax.f32 %v186, 1e-07
      %v443 = vmax.f32 %v187, 1e-07
      %v444 = vmax.f32 %v188, 1e-07
      %v445 = vmax.f32 %v189, 1e-07
      %v446 = vmax.f32 %v190, 1e-07
      %v447 = vmax.f32 %v191, 1e-07
      %v448 = vmax.f32 %v192, 1e-07
      %v449 = vmax.f32 %v193, 1e-07
      %v450 = vmax.f32 %v194, 1e-07
      %v451 = vmax.f32 %v195, 1e-07
      %v452 = vmax.f32 %v196, 1e-07
      %v453 = vmax.f32 %v197, 1e-07
      %v454 = vmax.f32 %v198, 1e-07
      %v455 = vmax.f32 %v199, 1e-07
      %v456 = vmax.f32 %v200, 1e-07
      %v457 = vmax.f32 %v201, 1e-07
      %v458 = vmax.f32 %v202, 1e-07
      %v459 = vmax.f32 %v203, 1e-07
      %v460 = vmax.f32 %v204, 1e-07
      %v461 = vmax.f32 %v205, 1e-07
      %v462 = vmax.f32 %v206, 1e-07
      %v463 = vmax.f32 %v207, 1e-07
      %v464 = vmax.f32 %v208, 1e-07
      %v465 = vmax.f32 %v209, 1e-07
      %v466 = vmax.f32 %v210, 1e-07
      %v467 = vmax.f32 %v211, 1e-07
      %v468 = vmax.f32 %v212, 1e-07
      %v469 = vmax.f32 %v213, 1e-07
      %v470 = vmax.f32 %v214, 1e-07
      %v471 = vmax.f32 %v215, 1e-07
      %v472 = vmax.f32 %v216, 1e-07
      %v473 = vmax.f32 %v217, 1e-07
      %v474 = vmax.f32 %v218, 1e-07
      %v475 = vmax.f32 %v219, 1e-07
      %v476 = vmax.f32 %v220, 1e-07
      %v477 = vmax.f32 %v221, 1e-07
      %v478 = vmax.f32 %v222, 1e-07
      %v479 = vmax.f32 %v223, 1e-07
      %v480 = vmax.f32 %v224, 1e-07
      %v481 = vmax.f32 %v225, 1e-07
      %v482 = vmax.f32 %v226, 1e-07
      %v483 = vmax.f32 %v227, 1e-07
      %v484 = vmax.f32 %v228, 1e-07
      %v485 = vmax.f32 %v229, 1e-07
      %v486 = vmax.f32 %v230, 1e-07
      %v487 = vmax.f32 %v231, 1e-07
      %v488 = vmax.f32 %v232, 1e-07
      %v489 = vmax.f32 %v233, 1e-07
      %v490 = vmax.f32 %v234, 1e-07
      %v491 = vmax.f32 %v235, 1e-07
      %v492 = vmax.f32 %v236, 1e-07
      %v493 = vmax.f32 %v237, 1e-07
      %v494 = vmax.f32 %v238, 1e-07
      %v495 = vmax.f32 %v239, 1e-07
      %v496 = vmax.f32 %v240, 1e-07
      %v497 = vmax.f32 %v241, 1e-07
      %v498 = vmax.f32 %v242, 1e-07
      %v499 = vmax.f32 %v243, 1e-07
      %v500 = vmax.f32 %v244, 1e-07
      %v501 = vmax.f32 %v245, 1e-07
      %v502 = vmax.f32 %v246, 1e-07
      %v503 = vmax.f32 %v247, 1e-07
      %v504 = vmax.f32 %v248, 1e-07
      %v505 = vmax.f32 %v249, 1e-07
      %v506 = vmax.f32 %v250, 1e-07
      %v507 = vmax.f32 %v251, 1e-07
      %v508 = vmax.f32 %v252, 1e-07
      %v509 = vmax.f32 %v253, 1e-07
      %v510 = vmax.f32 %v254, 1e-07
      %v511 = vmax.f32 %v255, 1e-07
      %v512 = vmax.f32 %v256, 1e-07
      %v513 = vmax.f32 %v257, 1e-07
      %v514 = vmax.f32 %v258, 1e-07
      %v515 = vmax.f32 %v259, 1e-07
      %v516 = vmax.f32 %v260, 1e-07
      %v517 = vmax.f32 %v261, 1e-07
      %v518 = vmax.f32 %v262, 1e-07
      %v519 = vmax.f32 %v263, 1e-07
      %v520 = vmax.f32 %v264, 1e-07
      %v521 = vmax.f32 %v265, 1e-07
      %v522 = vmax.f32 %v266, 1e-07
      %v523 = vmax.f32 %v267, 1e-07
      %v524 = vmax.f32 %v268, 1e-07
      %v525 = vmax.f32 %v269, 1e-07
      %v526 = vmax.f32 %v270, 1e-07
      %v527 = vmax.f32 %v271, 1e-07
      %v528 = vmax.f32 %v272, 1e-07
      %v529 = vmax.f32 %v273, 1e-07
      %v530 = vmax.f32 %v274, 1e-07
      %v531 = vmax.f32 %v275, 1e-07
      %v532 = vmax.f32 %v276, 1e-07
      %v533 = vmax.f32 %v277, 1e-07
      %v534 = vmax.f32 %v278, 1e-07
      %v535 = vmax.f32 %v279, 1e-07
      %v536 = vmax.f32 %v280, 1e-07
      %v537 = vmax.f32 %v281, 1e-07
      %v538 = vmax.f32 %v282, 1e-07
      %v539 = vmax.f32 %v283, 1e-07
      %v540 = vmax.f32 %v284, 1e-07
      %v541 = vmax.f32 %v285, 1e-07
      %v542 = vmax.f32 %v286, 1e-07
      %v543 = vmax.f32 %v287, 1e-07
      %v544 = vmax.f32 %v288, 1e-07
      %v545 = vmax.f32 %v289, 1e-07
      %v546 = vmax.f32 %v290, 1e-07
      %v547 = vmax.f32 %v291, 1e-07
      %v548 = vmax.f32 %v292, 1e-07
      %v549 = vmax.f32 %v293, 1e-07
      %v550 = vmax.f32 %v294, 1e-07
      %v551 = vmax.f32 %v295, 1e-07
      %v552 = vmax.f32 %v296, 1e-07
      %v553 = vmax.f32 %v297, 1e-07
      %v554 = vmax.f32 %v298, 1e-07
      %v555 = vmax.f32 %v299, 1e-07
      %v556 = vmax.f32 %v300, 1e-07
      %v557 = vmax.f32 %v301, 1e-07
      %v558 = vmax.f32 %v302, 1e-07
      %v559 = vmax.f32 %v303, 1e-07
      %v560 = vmax.f32 %v304, 1e-07
      %v561 = vmax.f32 %v305, 1e-07
      %v562 = vmax.f32 %v306, 1e-07
      %v563 = vmax.f32 %v307, 1e-07
      %v564 = vmax.f32 %v308, 1e-07
      %v565 = vmax.f32 %v309, 1e-07
      %v566 = vmax.f32 %v310, 1e-07
      %v567 = vmax.f32 %v311, 1e-07
      %v568 = vmax.f32 %v312, 1e-07
      %v569 = vmax.f32 %v313, 1e-07
      %v570 = vmax.f32 %v314, 1e-07
      %v571 = vmax.f32 %v315, 1e-07
      %v572 = vmax.f32 %v316, 1e-07
      %v573 = vmax.f32 %v317, 1e-07
      %v574 = vmax.f32 %v318, 1e-07
      %v575 = vmax.f32 %v319, 1e-07
      %v576 = vmax.f32 %v320, 1e-07
      %v577 = vmax.f32 %v321, 1e-07
      %v578 = vmax.f32 %v322, 1e-07
      %v579 = vmax.f32 %v323, 1e-07
      %v580 = vmax.f32 %v324, 1e-07
      %v581 = vmax.f32 %v325, 1e-07
      %v582 = vmax.f32 %v326, 1e-07
      %v583 = vmax.f32 %v327, 1e-07
      %v584 = vmax.f32 %v328, 1e-07
      %v585 = vmax.f32 %v329, 1e-07
      %v586 = vmax.f32 %v330, 1e-07
      %v587 = vmax.f32 %v331, 1e-07
      %v588 = vmax.f32 %v332, 1e-07
      %v589 = vmax.f32 %v333, 1e-07
      %v590 = vmax.f32 %v334, 1e-07
      %v591 = vmax.f32 %v335, 1e-07
      %v592 = vmax.f32 %v336, 1e-07
      %v593 = vmax.f32 %v337, 1e-07
      %v594 = vmax.f32 %v338, 1e-07
      %v595 = vmax.f32 %v339, 1e-07
      %v596 = vmax.f32 %v340, 1e-07
      %v597 = vmax.f32 %v341, 1e-07
      %v598 = vmax.f32 %v342, 1e-07
      %v599 = vmax.f32 %v343, 1e-07
      %v600 = vmax.f32 %v344, 1e-07
      %v601 = vmax.f32 %v345, 1e-07
      %v602 = vld [vmem:[#allocation5] sm:$0xff]
      %v603 = vld [vmem:[#allocation5 + $0x8] sm:$0xff]
      %v604 = vld [vmem:[#allocation5 + $0x10] sm:$0xff]
      %v605 = vld [vmem:[#allocation5 + $0x18] sm:$0xff]
      %v606 = vld [vmem:[#allocation5 + $0x20] sm:$0xff]
      %v607 = vld [vmem:[#allocation5 + $0x28] sm:$0xff]
      %v608 = vld [vmem:[#allocation5 + $0x30] sm:$0xff]
      %v609 = vld [vmem:[#allocation5 + $0x38] sm:$0xff]
      %v610 = vld [vmem:[#allocation5 + $0x40] sm:$0xff]
      %v611 = vld [vmem:[#allocation5 + $0x48] sm:$0xff]
      %v612 = vld [vmem:[#allocation5 + $0x50] sm:$0xff]
      %v613 = vld [vmem:[#allocation5 + $0x58] sm:$0xff]
      %v614 = vld [vmem:[#allocation5 + $0x60] sm:$0xff]
      %v615 = vld [vmem:[#allocation5 + $0x68] sm:$0xff]
      %v616 = vld [vmem:[#allocation5 + $0x70] sm:$0xff]
      %v617 = vld [vmem:[#allocation5 + $0x78] sm:$0xff]
      %v618 = vld [vmem:[#allocation5 + $0x80] sm:$0xff]
      %v619 = vld [vmem:[#allocation5 + $0x88] sm:$0xff]
      %v620 = vld [vmem:[#allocation5 + $0x90] sm:$0xff]
      %v621 = vld [vmem:[#allocation5 + $0x98] sm:$0xff]
      %v622 = vld [vmem:[#allocation5 + $0xa0] sm:$0xff]
      %v623 = vld [vmem:[#allocation5 + $0xa8] sm:$0xff]
      %v624 = vld [vmem:[#allocation5 + $0xb0] sm:$0xff]
      %v625 = vld [vmem:[#allocation5 + $0xb8] sm:$0xff]
      %v626 = vld [vmem:[#allocation5 + $0xc0] sm:$0xff]
      %v627 = vld [vmem:[#allocation5 + $0xc8] sm:$0xff]
      %v628 = vld [vmem:[#allocation5 + $0xd0] sm:$0xff]
      %v629 = vld [vmem:[#allocation5 + $0xd8] sm:$0xff]
      %v630 = vld [vmem:[#allocation5 + $0xe0] sm:$0xff]
      %v631 = vld [vmem:[#allocation5 + $0xe8] sm:$0xff]
      %v632 = vld [vmem:[#allocation5 + $0xf0] sm:$0xff]
      %v633 = vld [vmem:[#allocation5 + $0xf8] sm:$0xff]
      %v634 = vld [vmem:[#allocation5 + $0x100] sm:$0xff]
      %v635 = vld [vmem:[#allocation5 + $0x108] sm:$0xff]
      %v636 = vld [vmem:[#allocation5 + $0x110] sm:$0xff]
      %v637 = vld [vmem:[#allocation5 + $0x118] sm:$0xff]
      %v638 = vld [vmem:[#allocation5 + $0x120] sm:$0xff]
      %v639 = vld [vmem:[#allocation5 + $0x128] sm:$0xff]
      %v640 = vld [vmem:[#allocation5 + $0x130] sm:$0xff]
      %v641 = vld [vmem:[#allocation5 + $0x138] sm:$0xff]
      %v642 = vld [vmem:[#allocation5 + $0x140] sm:$0xff]
      %v643 = vld [vmem:[#allocation5 + $0x148] sm:$0xff]
      %v644 = vld [vmem:[#allocation5 + $0x150] sm:$0xff]
      %v645 = vld [vmem:[#allocation5 + $0x158] sm:$0xff]
      %v646 = vld [vmem:[#allocation5 + $0x160] sm:$0xff]
      %v647 = vld [vmem:[#allocation5 + $0x168] sm:$0xff]
      %v648 = vld [vmem:[#allocation5 + $0x170] sm:$0xff]
      %v649 = vld [vmem:[#allocation5 + $0x178] sm:$0xff]
      %v650 = vld [vmem:[#allocation5 + $0x180] sm:$0xff]
      %v651 = vld [vmem:[#allocation5 + $0x188] sm:$0xff]
      %v652 = vld [vmem:[#allocation5 + $0x190] sm:$0xff]
      %v653 = vld [vmem:[#allocation5 + $0x198] sm:$0xff]
      %v654 = vld [vmem:[#allocation5 + $0x1a0] sm:$0xff]
      %v655 = vld [vmem:[#allocation5 + $0x1a8] sm:$0xff]
      %v656 = vld [vmem:[#allocation5 + $0x1b0] sm:$0xff]
      %v657 = vld [vmem:[#allocation5 + $0x1b8] sm:$0xff]
      %v658 = vld [vmem:[#allocation5 + $0x1c0] sm:$0xff]
      %v659 = vld [vmem:[#allocation5 + $0x1c8] sm:$0xff]
      %v660 = vld [vmem:[#allocation5 + $0x1d0] sm:$0xff]
      %v661 = vld [vmem:[#allocation5 + $0x1d8] sm:$0xff]
      %v662 = vld [vmem:[#allocation5 + $0x1e0] sm:$0xff]
      %v663 = vld [vmem:[#allocation5 + $0x1e8] sm:$0xff]
      %v664 = vld [vmem:[#allocation5 + $0x1f0] sm:$0xff]
      %v665 = vld [vmem:[#allocation5 + $0x1f8] sm:$0xff]
      %v666 = vld [vmem:[#allocation5 + $0x200] sm:$0xff]
      %v667 = vld [vmem:[#allocation5 + $0x208] sm:$0xff]
      %v668 = vld [vmem:[#allocation5 + $0x210] sm:$0xff]
      %v669 = vld [vmem:[#allocation5 + $0x218] sm:$0xff]
      %v670 = vld [vmem:[#allocation5 + $0x220] sm:$0xff]
      %v671 = vld [vmem:[#allocation5 + $0x228] sm:$0xff]
      %v672 = vld [vmem:[#allocation5 + $0x230] sm:$0xff]
      %v673 = vld [vmem:[#allocation5 + $0x238] sm:$0xff]
      %v674 = vld [vmem:[#allocation5 + $0x240] sm:$0xff]
      %v675 = vld [vmem:[#allocation5 + $0x248] sm:$0xff]
      %v676 = vld [vmem:[#allocation5 + $0x250] sm:$0xff]
      %v677 = vld [vmem:[#allocation5 + $0x258] sm:$0xff]
      %v678 = vld [vmem:[#allocation5 + $0x260] sm:$0xff]
      %v679 = vld [vmem:[#allocation5 + $0x268] sm:$0xff]
      %v680 = vld [vmem:[#allocation5 + $0x270] sm:$0xff]
      %v681 = vld [vmem:[#allocation5 + $0x278] sm:$0xff]
      %v682 = vld [vmem:[#allocation5 + $0x280] sm:$0xff]
      %v683 = vld [vmem:[#allocation5 + $0x288] sm:$0xff]
      %v684 = vld [vmem:[#allocation5 + $0x290] sm:$0xff]
      %v685 = vld [vmem:[#allocation5 + $0x298] sm:$0xff]
      %v686 = vld [vmem:[#allocation5 + $0x2a0] sm:$0xff]
      %v687 = vld [vmem:[#allocation5 + $0x2a8] sm:$0xff]
      %v688 = vld [vmem:[#allocation5 + $0x2b0] sm:$0xff]
      %v689 = vld [vmem:[#allocation5 + $0x2b8] sm:$0xff]
      %v690 = vld [vmem:[#allocation5 + $0x2c0] sm:$0xff]
      %v691 = vld [vmem:[#allocation5 + $0x2c8] sm:$0xff]
      %v692 = vld [vmem:[#allocation5 + $0x2d0] sm:$0xff]
      %v693 = vld [vmem:[#allocation5 + $0x2d8] sm:$0xff]
      %v694 = vld [vmem:[#allocation5 + $0x2e0] sm:$0xff]
      %v695 = vld [vmem:[#allocation5 + $0x2e8] sm:$0xff]
      %v696 = vld [vmem:[#allocation5 + $0x2f0] sm:$0xff]
      %v697 = vld [vmem:[#allocation5 + $0x2f8] sm:$0xff]
      %v698 = vld [vmem:[#allocation5 + $0x300] sm:$0xff]
      %v699 = vld [vmem:[#allocation5 + $0x308] sm:$0xff]
      %v700 = vld [vmem:[#allocation5 + $0x310] sm:$0xff]
      %v701 = vld [vmem:[#allocation5 + $0x318] sm:$0xff]
      %v702 = vld [vmem:[#allocation5 + $0x320] sm:$0xff]
      %v703 = vld [vmem:[#allocation5 + $0x328] sm:$0xff]
      %v704 = vld [vmem:[#allocation5 + $0x330] sm:$0xff]
      %v705 = vld [vmem:[#allocation5 + $0x338] sm:$0xff]
      %v706 = vld [vmem:[#allocation5 + $0x340] sm:$0xff]
      %v707 = vld [vmem:[#allocation5 + $0x348] sm:$0xff]
      %v708 = vld [vmem:[#allocation5 + $0x350] sm:$0xff]
      %v709 = vld [vmem:[#allocation5 + $0x358] sm:$0xff]
      %v710 = vld [vmem:[#allocation5 + $0x360] sm:$0xff]
      %v711 = vld [vmem:[#allocation5 + $0x368] sm:$0xff]
      %v712 = vld [vmem:[#allocation5 + $0x370] sm:$0xff]
      %v713 = vld [vmem:[#allocation5 + $0x378] sm:$0xff]
      %v714 = vld [vmem:[#allocation5 + $0x380] sm:$0xff]
      %v715 = vld [vmem:[#allocation5 + $0x388] sm:$0xff]
      %v716 = vld [vmem:[#allocation5 + $0x390] sm:$0xff]
      %v717 = vld [vmem:[#allocation5 + $0x398] sm:$0xff]
      %v718 = vld [vmem:[#allocation5 + $0x3a0] sm:$0xff]
      %v719 = vld [vmem:[#allocation5 + $0x3a8] sm:$0xff]
      %v720 = vld [vmem:[#allocation5 + $0x3b0] sm:$0xff]
      %v721 = vld [vmem:[#allocation5 + $0x3b8] sm:$0xff]
      %v722 = vld [vmem:[#allocation5 + $0x3c0] sm:$0xff]
      %v723 = vld [vmem:[#allocation5 + $0x3c8] sm:$0xff]
      %v724 = vld [vmem:[#allocation5 + $0x3d0] sm:$0xff]
      %v725 = vld [vmem:[#allocation5 + $0x3d8] sm:$0xff]
      %v726 = vld [vmem:[#allocation5 + $0x3e0] sm:$0xff]
      %v727 = vld [vmem:[#allocation5 + $0x3e8] sm:$0xff]
      %v728 = vld [vmem:[#allocation5 + $0x3f0] sm:$0xff]
      %v729 = vld [vmem:[#allocation5 + $0x3f8] sm:$0xff]
      %v730 = vld [vmem:[#allocation5 + $0x400] sm:$0xff]
      %v731 = vld [vmem:[#allocation5 + $0x408] sm:$0xff]
      %v732 = vld [vmem:[#allocation5 + $0x410] sm:$0xff]
      %v733 = vld [vmem:[#allocation5 + $0x418] sm:$0xff]
      %v734 = vld [vmem:[#allocation5 + $0x420] sm:$0xff]
      %v735 = vld [vmem:[#allocation5 + $0x428] sm:$0xff]
      %v736 = vld [vmem:[#allocation5 + $0x430] sm:$0xff]
      %v737 = vld [vmem:[#allocation5 + $0x438] sm:$0xff]
      %v738 = vld [vmem:[#allocation5 + $0x440] sm:$0xff]
      %v739 = vld [vmem:[#allocation5 + $0x448] sm:$0xff]
      %v740 = vld [vmem:[#allocation5 + $0x450] sm:$0xff]
      %v741 = vld [vmem:[#allocation5 + $0x458] sm:$0xff]
      %v742 = vld [vmem:[#allocation5 + $0x460] sm:$0xff]
      %v743 = vld [vmem:[#allocation5 + $0x468] sm:$0xff]
      %v744 = vld [vmem:[#allocation5 + $0x470] sm:$0xff]
      %v745 = vld [vmem:[#allocation5 + $0x478] sm:$0xff]
      %v746 = vld [vmem:[#allocation5 + $0x480] sm:$0xff]
      %v747 = vld [vmem:[#allocation5 + $0x488] sm:$0xff]
      %v748 = vld [vmem:[#allocation5 + $0x490] sm:$0xff]
      %v749 = vld [vmem:[#allocation5 + $0x498] sm:$0xff]
      %v750 = vld [vmem:[#allocation5 + $0x4a0] sm:$0xff]
      %v751 = vld [vmem:[#allocation5 + $0x4a8] sm:$0xff]
      %v752 = vld [vmem:[#allocation5 + $0x4b0] sm:$0xff]
      %v753 = vld [vmem:[#allocation5 + $0x4b8] sm:$0xff]
      %v754 = vld [vmem:[#allocation5 + $0x4c0] sm:$0xff]
      %v755 = vld [vmem:[#allocation5 + $0x4c8] sm:$0xff]
      %v756 = vld [vmem:[#allocation5 + $0x4d0] sm:$0xff]
      %v757 = vld [vmem:[#allocation5 + $0x4d8] sm:$0xff]
      %v758 = vld [vmem:[#allocation5 + $0x4e0] sm:$0xff]
      %v759 = vld [vmem:[#allocation5 + $0x4e8] sm:$0xff]
      %v760 = vld [vmem:[#allocation5 + $0x4f0] sm:$0xff]
      %v761 = vld [vmem:[#allocation5 + $0x4f8] sm:$0xff]
      %v762 = vld [vmem:[#allocation5 + $0x500] sm:$0xff]
      %v763 = vld [vmem:[#allocation5 + $0x508] sm:$0xff]
      %v764 = vld [vmem:[#allocation5 + $0x510] sm:$0xff]
      %v765 = vld [vmem:[#allocation5 + $0x518] sm:$0xff]
      %v766 = vld [vmem:[#allocation5 + $0x520] sm:$0xff]
      %v767 = vld [vmem:[#allocation5 + $0x528] sm:$0xff]
      %v768 = vld [vmem:[#allocation5 + $0x530] sm:$0xff]
      %v769 = vld [vmem:[#allocation5 + $0x538] sm:$0xff]
      %v770 = vld [vmem:[#allocation5 + $0x540] sm:$0xff]
      %v771 = vld [vmem:[#allocation5 + $0x548] sm:$0xff]
      %v772 = vld [vmem:[#allocation5 + $0x550] sm:$0xff]
      %v773 = vld [vmem:[#allocation5 + $0x558] sm:$0xff]
      %v774 = vld [vmem:[#allocation5 + $0x560] sm:$0xff]
      %v775 = vld [vmem:[#allocation5 + $0x568] sm:$0xff]
      %v776 = vld [vmem:[#allocation5 + $0x570] sm:$0xff]
      %v777 = vld [vmem:[#allocation5 + $0x578] sm:$0xff]
      %v778 = vld [vmem:[#allocation5 + $0x580] sm:$0xff]
      %v779 = vld [vmem:[#allocation5 + $0x588] sm:$0xff]
      %v780 = vld [vmem:[#allocation5 + $0x590] sm:$0xff]
      %v781 = vld [vmem:[#allocation5 + $0x598] sm:$0xff]
      %v782 = vld [vmem:[#allocation5 + $0x5a0] sm:$0xff]
      %v783 = vld [vmem:[#allocation5 + $0x5a8] sm:$0xff]
      %v784 = vld [vmem:[#allocation5 + $0x5b0] sm:$0xff]
      %v785 = vld [vmem:[#allocation5 + $0x5b8] sm:$0xff]
      %v786 = vld [vmem:[#allocation5 + $0x5c0] sm:$0xff]
      %v787 = vld [vmem:[#allocation5 + $0x5c8] sm:$0xff]
      %v788 = vld [vmem:[#allocation5 + $0x5d0] sm:$0xff]
      %v789 = vld [vmem:[#allocation5 + $0x5d8] sm:$0xff]
      %v790 = vld [vmem:[#allocation5 + $0x5e0] sm:$0xff]
      %v791 = vld [vmem:[#allocation5 + $0x5e8] sm:$0xff]
      %v792 = vld [vmem:[#allocation5 + $0x5f0] sm:$0xff]
      %v793 = vld [vmem:[#allocation5 + $0x5f8] sm:$0xff]
      %v794 = vld [vmem:[#allocation5 + $0x600] sm:$0xff]
      %v795 = vld [vmem:[#allocation5 + $0x608] sm:$0xff]
      %v796 = vld [vmem:[#allocation5 + $0x610] sm:$0xff]
      %v797 = vld [vmem:[#allocation5 + $0x618] sm:$0xff]
      %v798 = vld [vmem:[#allocation5 + $0x620] sm:$0xff]
      %v799 = vld [vmem:[#allocation5 + $0x628] sm:$0xff]
      %v800 = vld [vmem:[#allocation5 + $0x630] sm:$0xff]
      %v801 = vld [vmem:[#allocation5 + $0x638] sm:$0xff]
      %v802 = vld [vmem:[#allocation5 + $0x640] sm:$0xff]
      %v803 = vld [vmem:[#allocation5 + $0x648] sm:$0xff]
      %v804 = vld [vmem:[#allocation5 + $0x650] sm:$0xff]
      %v805 = vld [vmem:[#allocation5 + $0x658] sm:$0xff]
      %v806 = vld [vmem:[#allocation5 + $0x660] sm:$0xff]
      %v807 = vld [vmem:[#allocation5 + $0x668] sm:$0xff]
      %v808 = vld [vmem:[#allocation5 + $0x670] sm:$0xff]
      %v809 = vld [vmem:[#allocation5 + $0x678] sm:$0xff]
      %v810 = vld [vmem:[#allocation5 + $0x680] sm:$0xff]
      %v811 = vld [vmem:[#allocation5 + $0x688] sm:$0xff]
      %v812 = vld [vmem:[#allocation5 + $0x690] sm:$0xff]
      %v813 = vld [vmem:[#allocation5 + $0x698] sm:$0xff]
      %v814 = vld [vmem:[#allocation5 + $0x6a0] sm:$0xff]
      %v815 = vld [vmem:[#allocation5 + $0x6a8] sm:$0xff]
      %v816 = vld [vmem:[#allocation5 + $0x6b0] sm:$0xff]
      %v817 = vld [vmem:[#allocation5 + $0x6b8] sm:$0xff]
      %v818 = vld [vmem:[#allocation5 + $0x6c0] sm:$0xff]
      %v819 = vld [vmem:[#allocation5 + $0x6c8] sm:$0xff]
      %v820 = vld [vmem:[#allocation5 + $0x6d0] sm:$0xff]
      %v821 = vld [vmem:[#allocation5 + $0x6d8] sm:$0xff]
      %v822 = vld [vmem:[#allocation5 + $0x6e0] sm:$0xff]
      %v823 = vld [vmem:[#allocation5 + $0x6e8] sm:$0xff]
      %v824 = vld [vmem:[#allocation5 + $0x6f0] sm:$0xff]
      %v825 = vld [vmem:[#allocation5 + $0x6f8] sm:$0xff]
      %v826 = vld [vmem:[#allocation5 + $0x700] sm:$0xff]
      %v827 = vld [vmem:[#allocation5 + $0x708] sm:$0xff]
      %v828 = vld [vmem:[#allocation5 + $0x710] sm:$0xff]
      %v829 = vld [vmem:[#allocation5 + $0x718] sm:$0xff]
      %v830 = vld [vmem:[#allocation5 + $0x720] sm:$0xff]
      %v831 = vld [vmem:[#allocation5 + $0x728] sm:$0xff]
      %v832 = vld [vmem:[#allocation5 + $0x730] sm:$0xff]
      %v833 = vld [vmem:[#allocation5 + $0x738] sm:$0xff]
      %v834 = vld [vmem:[#allocation5 + $0x740] sm:$0xff]
      %v835 = vld [vmem:[#allocation5 + $0x748] sm:$0xff]
      %v836 = vld [vmem:[#allocation5 + $0x750] sm:$0xff]
      %v837 = vld [vmem:[#allocation5 + $0x758] sm:$0xff]
      %v838 = vld [vmem:[#allocation5 + $0x760] sm:$0xff]
      %v839 = vld [vmem:[#allocation5 + $0x768] sm:$0xff]
      %v840 = vld [vmem:[#allocation5 + $0x770] sm:$0xff]
      %v841 = vld [vmem:[#allocation5 + $0x778] sm:$0xff]
      %v842 = vld [vmem:[#allocation5 + $0x780] sm:$0xff]
      %v843 = vld [vmem:[#allocation5 + $0x788] sm:$0xff]
      %v844 = vld [vmem:[#allocation5 + $0x790] sm:$0xff]
      %v845 = vld [vmem:[#allocation5 + $0x798] sm:$0xff]
      %v846 = vld [vmem:[#allocation5 + $0x7a0] sm:$0xff]
      %v847 = vld [vmem:[#allocation5 + $0x7a8] sm:$0xff]
      %v848 = vld [vmem:[#allocation5 + $0x7b0] sm:$0xff]
      %v849 = vld [vmem:[#allocation5 + $0x7b8] sm:$0xff]
      %v850 = vld [vmem:[#allocation5 + $0x7c0] sm:$0xff]
      %v851 = vld [vmem:[#allocation5 + $0x7c8] sm:$0xff]
      %v852 = vld [vmem:[#allocation5 + $0x7d0] sm:$0xff]
      %v853 = vld [vmem:[#allocation5 + $0x7d8] sm:$0xff]
      %v854 = vld [vmem:[#allocation5 + $0x7e0] sm:$0xff]
      %v855 = vld [vmem:[#allocation5 + $0x7e8] sm:$0xff]
      %v856 = vld [vmem:[#allocation5 + $0x7f0] sm:$0xff]
      %v857 = vld [vmem:[#allocation5 + $0x7f8] sm:$0xff]
      %v858 = vmax.f32 %v602, 1e-07
      %v859 = vmax.f32 %v603, 1e-07
      %v860 = vmax.f32 %v604, 1e-07
      %v861 = vmax.f32 %v605, 1e-07
      %v862 = vmax.f32 %v606, 1e-07
      %v863 = vmax.f32 %v607, 1e-07
      %v864 = vmax.f32 %v608, 1e-07
      %v865 = vmax.f32 %v609, 1e-07
      %v866 = vmax.f32 %v610, 1e-07
      %v867 = vmax.f32 %v611, 1e-07
      %v868 = vmax.f32 %v612, 1e-07
      %v869 = vmax.f32 %v613, 1e-07
      %v870 = vmax.f32 %v614, 1e-07
      %v871 = vmax.f32 %v615, 1e-07
      %v872 = vmax.f32 %v616, 1e-07
      %v873 = vmax.f32 %v617, 1e-07
      %v874 = vmax.f32 %v618, 1e-07
      %v875 = vmax.f32 %v619, 1e-07
      %v876 = vmax.f32 %v620, 1e-07
      %v877 = vmax.f32 %v621, 1e-07
      %v878 = vmax.f32 %v622, 1e-07
      %v879 = vmax.f32 %v623, 1e-07
      %v880 = vmax.f32 %v624, 1e-07
      %v881 = vmax.f32 %v625, 1e-07
      %v882 = vmax.f32 %v626, 1e-07
      %v883 = vmax.f32 %v627, 1e-07
      %v884 = vmax.f32 %v628, 1e-07
      %v885 = vmax.f32 %v629, 1e-07
      %v886 = vmax.f32 %v630, 1e-07
      %v887 = vmax.f32 %v631, 1e-07
      %v888 = vmax.f32 %v632, 1e-07
      %v889 = vmax.f32 %v633, 1e-07
      %v890 = vmax.f32 %v634, 1e-07
      %v891 = vmax.f32 %v635, 1e-07
      %v892 = vmax.f32 %v636, 1e-07
      %v893 = vmax.f32 %v637, 1e-07
      %v894 = vmax.f32 %v638, 1e-07
      %v895 = vmax.f32 %v639, 1e-07
      %v896 = vmax.f32 %v640, 1e-07
      %v897 = vmax.f32 %v641, 1e-07
      %v898 = vmax.f32 %v642, 1e-07
      %v899 = vmax.f32 %v643, 1e-07
      %v900 = vmax.f32 %v644, 1e-07
      %v901 = vmax.f32 %v645, 1e-07
      %v902 = vmax.f32 %v646, 1e-07
      %v903 = vmax.f32 %v647, 1e-07
      %v904 = vmax.f32 %v648, 1e-07
      %v905 = vmax.f32 %v649, 1e-07
      %v906 = vmax.f32 %v650, 1e-07
      %v907 = vmax.f32 %v651, 1e-07
      %v908 = vmax.f32 %v652, 1e-07
      %v909 = vmax.f32 %v653, 1e-07
      %v910 = vmax.f32 %v654, 1e-07
      %v911 = vmax.f32 %v655, 1e-07
      %v912 = vmax.f32 %v656, 1e-07
      %v913 = vmax.f32 %v657, 1e-07
      %v914 = vmax.f32 %v658, 1e-07
      %v915 = vmax.f32 %v659, 1e-07
      %v916 = vmax.f32 %v660, 1e-07
      %v917 = vmax.f32 %v661, 1e-07
      %v918 = vmax.f32 %v662, 1e-07
      %v919 = vmax.f32 %v663, 1e-07
      %v920 = vmax.f32 %v664, 1e-07
      %v921 = vmax.f32 %v665, 1e-07
      %v922 = vmax.f32 %v666, 1e-07
      %v923 = vmax.f32 %v667, 1e-07
      %v924 = vmax.f32 %v668, 1e-07
      %v925 = vmax.f32 %v669, 1e-07
      %v926 = vmax.f32 %v670, 1e-07
      %v927 = vmax.f32 %v671, 1e-07
      %v928 = vmax.f32 %v672, 1e-07
      %v929 = vmax.f32 %v673, 1e-07
      %v930 = vmax.f32 %v674, 1e-07
      %v931 = vmax.f32 %v675, 1e-07
      %v932 = vmax.f32 %v676, 1e-07
      %v933 = vmax.f32 %v677, 1e-07
      %v934 = vmax.f32 %v678, 1e-07
      %v935 = vmax.f32 %v679, 1e-07
      %v936 = vmax.f32 %v680, 1e-07
      %v937 = vmax.f32 %v681, 1e-07
      %v938 = vmax.f32 %v682, 1e-07
      %v939 = vmax.f32 %v683, 1e-07
      %v940 = vmax.f32 %v684, 1e-07
      %v941 = vmax.f32 %v685, 1e-07
      %v942 = vmax.f32 %v686, 1e-07
      %v943 = vmax.f32 %v687, 1e-07
      %v944 = vmax.f32 %v688, 1e-07
      %v945 = vmax.f32 %v689, 1e-07
      %v946 = vmax.f32 %v690, 1e-07
      %v947 = vmax.f32 %v691, 1e-07
      %v948 = vmax.f32 %v692, 1e-07
      %v949 = vmax.f32 %v693, 1e-07
      %v950 = vmax.f32 %v694, 1e-07
      %v951 = vmax.f32 %v695, 1e-07
      %v952 = vmax.f32 %v696, 1e-07
      %v953 = vmax.f32 %v697, 1e-07
      %v954 = vmax.f32 %v698, 1e-07
      %v955 = vmax.f32 %v699, 1e-07
      %v956 = vmax.f32 %v700, 1e-07
      %v957 = vmax.f32 %v701, 1e-07
      %v958 = vmax.f32 %v702, 1e-07
      %v959 = vmax.f32 %v703, 1e-07
      %v960 = vmax.f32 %v704, 1e-07
      %v961 = vmax.f32 %v705, 1e-07
      %v962 = vmax.f32 %v706, 1e-07
      %v963 = vmax.f32 %v707, 1e-07
      %v964 = vmax.f32 %v708, 1e-07
      %v965 = vmax.f32 %v709, 1e-07
      %v966 = vmax.f32 %v710, 1e-07
      %v967 = vmax.f32 %v711, 1e-07
      %v968 = vmax.f32 %v712, 1e-07
      %v969 = vmax.f32 %v713, 1e-07
      %v970 = vmax.f32 %v714, 1e-07
      %v971 = vmax.f32 %v715, 1e-07
      %v972 = vmax.f32 %v716, 1e-07
      %v973 = vmax.f32 %v717, 1e-07
      %v974 = vmax.f32 %v718, 1e-07
      %v975 = vmax.f32 %v719, 1e-07
      %v976 = vmax.f32 %v720, 1e-07
      %v977 = vmax.f32 %v721, 1e-07
      %v978 = vmax.f32 %v722, 1e-07
      %v979 = vmax.f32 %v723, 1e-07
      %v980 = vmax.f32 %v724, 1e-07
      %v981 = vmax.f32 %v725, 1e-07
      %v982 = vmax.f32 %v726, 1e-07
      %v983 = vmax.f32 %v727, 1e-07
      %v984 = vmax.f32 %v728, 1e-07
      %v985 = vmax.f32 %v729, 1e-07
      %v986 = vmax.f32 %v730, 1e-07
      %v987 = vmax.f32 %v731, 1e-07
      %v988 = vmax.f32 %v732, 1e-07
      %v989 = vmax.f32 %v733, 1e-07
      %v990 = vmax.f32 %v734, 1e-07
      %v991 = vmax.f32 %v735, 1e-07
      %v992 = vmax.f32 %v736, 1e-07
      %v993 = vmax.f32 %v737, 1e-07
      %v994 = vmax.f32 %v738, 1e-07
      %v995 = vmax.f32 %v739, 1e-07
      %v996 = vmax.f32 %v740, 1e-07
      %v997 = vmax.f32 %v741, 1e-07
      %v998 = vmax.f32 %v742, 1e-07
      %v999 = vmax.f32 %v743, 1e-07
      %v1000 = vmax.f32 %v744, 1e-07
      %v1001 = vmax.f32 %v745, 1e-07
      %v1002 = vmax.f32 %v746, 1e-07
      %v1003 = vmax.f32 %v747, 1e-07
      %v1004 = vmax.f32 %v748, 1e-07
      %v1005 = vmax.f32 %v749, 1e-07
      %v1006 = vmax.f32 %v750, 1e-07
      %v1007 = vmax.f32 %v751, 1e-07
      %v1008 = vmax.f32 %v752, 1e-07
      %v1009 = vmax.f32 %v753, 1e-07
      %v1010 = vmax.f32 %v754, 1e-07
      %v1011 = vmax.f32 %v755, 1e-07
      %v1012 = vmax.f32 %v756, 1e-07
      %v1013 = vmax.f32 %v757, 1e-07
      %v1014 = vmax.f32 %v758, 1e-07
      %v1015 = vmax.f32 %v759, 1e-07
      %v1016 = vmax.f32 %v760, 1e-07
      %v1017 = vmax.f32 %v761, 1e-07
      %v1018 = vmax.f32 %v762, 1e-07
      %v1019 = vmax.f32 %v763, 1e-07
      %v1020 = vmax.f32 %v764, 1e-07
      %v1021 = vmax.f32 %v765, 1e-07
      %v1022 = vmax.f32 %v766, 1e-07
      %v1023 = vmax.f32 %v767, 1e-07
      %v1024 = vmax.f32 %v768, 1e-07
      %v1025 = vmax.f32 %v769, 1e-07
      %v1026 = vmax.f32 %v770, 1e-07
      %v1027 = vmax.f32 %v771, 1e-07
      %v1028 = vmax.f32 %v772, 1e-07
      %v1029 = vmax.f32 %v773, 1e-07
      %v1030 = vmax.f32 %v774, 1e-07
      %v1031 = vmax.f32 %v775, 1e-07
      %v1032 = vmax.f32 %v776, 1e-07
      %v1033 = vmax.f32 %v777, 1e-07
      %v1034 = vmax.f32 %v778, 1e-07
      %v1035 = vmax.f32 %v779, 1e-07
      %v1036 = vmax.f32 %v780, 1e-07
      %v1037 = vmax.f32 %v781, 1e-07
      %v1038 = vmax.f32 %v782, 1e-07
      %v1039 = vmax.f32 %v783, 1e-07
      %v1040 = vmax.f32 %v784, 1e-07
      %v1041 = vmax.f32 %v785, 1e-07
      %v1042 = vmax.f32 %v786, 1e-07
      %v1043 = vmax.f32 %v787, 1e-07
      %v1044 = vmax.f32 %v788, 1e-07
      %v1045 = vmax.f32 %v789, 1e-07
      %v1046 = vmax.f32 %v790, 1e-07
      %v1047 = vmax.f32 %v791, 1e-07
      %v1048 = vmax.f32 %v792, 1e-07
      %v1049 = vmax.f32 %v793, 1e-07
      %v1050 = vmax.f32 %v794, 1e-07
      %v1051 = vmax.f32 %v795, 1e-07
      %v1052 = vmax.f32 %v796, 1e-07
      %v1053 = vmax.f32 %v797, 1e-07
      %v1054 = vmax.f32 %v798, 1e-07
      %v1055 = vmax.f32 %v799, 1e-07
      %v1056 = vmax.f32 %v800, 1e-07
      %v1057 = vmax.f32 %v801, 1e-07
      %v1058 = vmax.f32 %v802, 1e-07
      %v1059 = vmax.f32 %v803, 1e-07
      %v1060 = vmax.f32 %v804, 1e-07
      %v1061 = vmax.f32 %v805, 1e-07
      %v1062 = vmax.f32 %v806, 1e-07
      %v1063 = vmax.f32 %v807, 1e-07
      %v1064 = vmax.f32 %v808, 1e-07
      %v1065 = vmax.f32 %v809, 1e-07
      %v1066 = vmax.f32 %v810, 1e-07
      %v1067 = vmax.f32 %v811, 1e-07
      %v1068 = vmax.f32 %v812, 1e-07
      %v1069 = vmax.f32 %v813, 1e-07
      %v1070 = vmax.f32 %v814, 1e-07
      %v1071 = vmax.f32 %v815, 1e-07
      %v1072 = vmax.f32 %v816, 1e-07
      %v1073 = vmax.f32 %v817, 1e-07
      %v1074 = vmax.f32 %v818, 1e-07
      %v1075 = vmax.f32 %v819, 1e-07
      %v1076 = vmax.f32 %v820, 1e-07
      %v1077 = vmax.f32 %v821, 1e-07
      %v1078 = vmax.f32 %v822, 1e-07
      %v1079 = vmax.f32 %v823, 1e-07
      %v1080 = vmax.f32 %v824, 1e-07
      %v1081 = vmax.f32 %v825, 1e-07
      %v1082 = vmax.f32 %v826, 1e-07
      %v1083 = vmax.f32 %v827, 1e-07
      %v1084 = vmax.f32 %v828, 1e-07
      %v1085 = vmax.f32 %v829, 1e-07
      %v1086 = vmax.f32 %v830, 1e-07
      %v1087 = vmax.f32 %v831, 1e-07
      %v1088 = vmax.f32 %v832, 1e-07
      %v1089 = vmax.f32 %v833, 1e-07
      %v1090 = vmax.f32 %v834, 1e-07
      %v1091 = vmax.f32 %v835, 1e-07
      %v1092 = vmax.f32 %v836, 1e-07
      %v1093 = vmax.f32 %v837, 1e-07
      %v1094 = vmax.f32 %v838, 1e-07
      %v1095 = vmax.f32 %v839, 1e-07
      %v1096 = vmax.f32 %v840, 1e-07
      %v1097 = vmax.f32 %v841, 1e-07
      %v1098 = vmax.f32 %v842, 1e-07
      %v1099 = vmax.f32 %v843, 1e-07
      %v1100 = vmax.f32 %v844, 1e-07
      %v1101 = vmax.f32 %v845, 1e-07
      %v1102 = vmax.f32 %v846, 1e-07
      %v1103 = vmax.f32 %v847, 1e-07
      %v1104 = vmax.f32 %v848, 1e-07
      %v1105 = vmax.f32 %v849, 1e-07
      %v1106 = vmax.f32 %v850, 1e-07
      %v1107 = vmax.f32 %v851, 1e-07
      %v1108 = vmax.f32 %v852, 1e-07
      %v1109 = vmax.f32 %v853, 1e-07
      %v1110 = vmax.f32 %v854, 1e-07
      %v1111 = vmax.f32 %v855, 1e-07
      %v1112 = vmax.f32 %v856, 1e-07
      %v1113 = vmax.f32 %v857, 1e-07
      %v1114 = vadd.f32 %v346, 1.0
      %v1115 = vadd.f32 %v347, 1.0
      %v1116 = vadd.f32 %v348, 1.0
      %v1117 = vadd.f32 %v349, 1.0
      %v1118 = vadd.f32 %v350, 1.0
      %v1119 = vadd.f32 %v351, 1.0
      %v1120 = vadd.f32 %v352, 1.0
      %v1121 = vadd.f32 %v353, 1.0
      %v1122 = vadd.f32 %v354, 1.0
      %v1123 = vadd.f32 %v355, 1.0
      %v1124 = vadd.f32 %v356, 1.0
      %v1125 = vadd.f32 %v357, 1.0
      %v1126 = vadd.f32 %v358, 1.0
      %v1127 = vadd.f32 %v359, 1.0
      %v1128 = vadd.f32 %v360, 1.0
      %v1129 = vadd.f32 %v361, 1.0
      %v1130 = vadd.f32 %v362, 1.0
      %v1131 = vadd.f32 %v363, 1.0
      %v1132 = vadd.f32 %v364, 1.0
      %v1133 = vadd.f32 %v365, 1.0
      %v1134 = vadd.f32 %v366, 1.0
      %v1135 = vadd.f32 %v367, 1.0
      %v1136 = vadd.f32 %v368, 1.0
      %v1137 = vadd.f32 %v369, 1.0
      %v1138 = vadd.f32 %v370, 1.0
      %v1139 = vadd.f32 %v371, 1.0
      %v1140 = vadd.f32 %v372, 1.0
      %v1141 = vadd.f32 %v373, 1.0
      %v1142 = vadd.f32 %v374, 1.0
      %v1143 = vadd.f32 %v375, 1.0
      %v1144 = vadd.f32 %v376, 1.0
      %v1145 = vadd.f32 %v377, 1.0
      %v1146 = vadd.f32 %v378, 1.0
      %v1147 = vadd.f32 %v379, 1.0
      %v1148 = vadd.f32 %v380, 1.0
      %v1149 = vadd.f32 %v381, 1.0
      %v1150 = vadd.f32 %v382, 1.0
      %v1151 = vadd.f32 %v383, 1.0
      %v1152 = vadd.f32 %v384, 1.0
      %v1153 = vadd.f32 %v385, 1.0
      %v1154 = vadd.f32 %v386, 1.0
      %v1155 = vadd.f32 %v387, 1.0
      %v1156 = vadd.f32 %v388, 1.0
      %v1157 = vadd.f32 %v389, 1.0
      %v1158 = vadd.f32 %v390, 1.0
      %v1159 = vadd.f32 %v391, 1.0
      %v1160 = vadd.f32 %v392, 1.0
      %v1161 = vadd.f32 %v393, 1.0
      %v1162 = vadd.f32 %v394, 1.0
      %v1163 = vadd.f32 %v395, 1.0
      %v1164 = vadd.f32 %v396, 1.0
      %v1165 = vadd.f32 %v397, 1.0
      %v1166 = vadd.f32 %v398, 1.0
      %v1167 = vadd.f32 %v399, 1.0
      %v1168 = vadd.f32 %v400, 1.0
      %v1169 = vadd.f32 %v401, 1.0
      %v1170 = vadd.f32 %v402, 1.0
      %v1171 = vadd.f32 %v403, 1.0
      %v1172 = vadd.f32 %v404, 1.0
      %v1173 = vadd.f32 %v405, 1.0
      %v1174 = vadd.f32 %v406, 1.0
      %v1175 = vadd.f32 %v407, 1.0
      %v1176 = vadd.f32 %v408, 1.0
      %v1177 = vadd.f32 %v409, 1.0
      %v1178 = vadd.f32 %v410, 1.0
      %v1179 = vadd.f32 %v411, 1.0
      %v1180 = vadd.f32 %v412, 1.0
      %v1181 = vadd.f32 %v413, 1.0
      %v1182 = vadd.f32 %v414, 1.0
      %v1183 = vadd.f32 %v415, 1.0
      %v1184 = vadd.f32 %v416, 1.0
      %v1185 = vadd.f32 %v417, 1.0
      %v1186 = vadd.f32 %v418, 1.0
      %v1187 = vadd.f32 %v419, 1.0
      %v1188 = vadd.f32 %v420, 1.0
      %v1189 = vadd.f32 %v421, 1.0
      %v1190 = vadd.f32 %v422, 1.0
      %v1191 = vadd.f32 %v423, 1.0
      %v1192 = vadd.f32 %v424, 1.0
      %v1193 = vadd.f32 %v425, 1.0
      %v1194 = vadd.f32 %v426, 1.0
      %v1195 = vadd.f32 %v427, 1.0
      %v1196 = vadd.f32 %v428, 1.0
      %v1197 = vadd.f32 %v429, 1.0
      %v1198 = vadd.f32 %v430, 1.0
      %v1199 = vadd.f32 %v431, 1.0
      %v1200 = vadd.f32 %v432, 1.0
      %v1201 = vadd.f32 %v433, 1.0
      %v1202 = vadd.f32 %v434, 1.0
      %v1203 = vadd.f32 %v435, 1.0
      %v1204 = vadd.f32 %v436, 1.0
      %v1205 = vadd.f32 %v437, 1.0
      %v1206 = vadd.f32 %v438, 1.0
      %v1207 = vadd.f32 %v439, 1.0
      %v1208 = vadd.f32 %v440, 1.0
      %v1209 = vadd.f32 %v441, 1.0
      %v1210 = vadd.f32 %v442, 1.0
      %v1211 = vadd.f32 %v443, 1.0
      %v1212 = vadd.f32 %v444, 1.0
      %v1213 = vadd.f32 %v445, 1.0
      %v1214 = vadd.f32 %v446, 1.0
      %v1215 = vadd.f32 %v447, 1.0
      %v1216 = vadd.f32 %v448, 1.0
      %v1217 = vadd.f32 %v449, 1.0
      %v1218 = vadd.f32 %v450, 1.0
      %v1219 = vadd.f32 %v451, 1.0
      %v1220 = vadd.f32 %v452, 1.0
      %v1221 = vadd.f32 %v453, 1.0
      %v1222 = vadd.f32 %v454, 1.0
      %v1223 = vadd.f32 %v455, 1.0
      %v1224 = vadd.f32 %v456, 1.0
      %v1225 = vadd.f32 %v457, 1.0
      %v1226 = vadd.f32 %v458, 1.0
      %v1227 = vadd.f32 %v459, 1.0
      %v1228 = vadd.f32 %v460, 1.0
      %v1229 = vadd.f32 %v461, 1.0
      %v1230 = vadd.f32 %v462, 1.0
      %v1231 = vadd.f32 %v463, 1.0
      %v1232 = vadd.f32 %v464, 1.0
      %v1233 = vadd.f32 %v465, 1.0
      %v1234 = vadd.f32 %v466, 1.0
      %v1235 = vadd.f32 %v467, 1.0
      %v1236 = vadd.f32 %v468, 1.0
      %v1237 = vadd.f32 %v469, 1.0
      %v1238 = vadd.f32 %v470, 1.0
      %v1239 = vadd.f32 %v471, 1.0
      %v1240 = vadd.f32 %v472, 1.0
      %v1241 = vadd.f32 %v473, 1.0
      %v1242 = vadd.f32 %v474, 1.0
      %v1243 = vadd.f32 %v475, 1.0
      %v1244 = vadd.f32 %v476, 1.0
      %v1245 = vadd.f32 %v477, 1.0
      %v1246 = vadd.f32 %v478, 1.0
      %v1247 = vadd.f32 %v479, 1.0
      %v1248 = vadd.f32 %v480, 1.0
      %v1249 = vadd.f32 %v481, 1.0
      %v1250 = vadd.f32 %v482, 1.0
      %v1251 = vadd.f32 %v483, 1.0
      %v1252 = vadd.f32 %v484, 1.0
      %v1253 = vadd.f32 %v485, 1.0
      %v1254 = vadd.f32 %v486, 1.0
      %v1255 = vadd.f32 %v487, 1.0
      %v1256 = vadd.f32 %v488, 1.0
      %v1257 = vadd.f32 %v489, 1.0
      %v1258 = vadd.f32 %v490, 1.0
      %v1259 = vadd.f32 %v491, 1.0
      %v1260 = vadd.f32 %v492, 1.0
      %v1261 = vadd.f32 %v493, 1.0
      %v1262 = vadd.f32 %v494, 1.0
      %v1263 = vadd.f32 %v495, 1.0
      %v1264 = vadd.f32 %v496, 1.0
      %v1265 = vadd.f32 %v497, 1.0
      %v1266 = vadd.f32 %v498, 1.0
      %v1267 = vadd.f32 %v499, 1.0
      %v1268 = vadd.f32 %v500, 1.0
      %v1269 = vadd.f32 %v501, 1.0
      %v1270 = vadd.f32 %v502, 1.0
      %v1271 = vadd.f32 %v503, 1.0
      %v1272 = vadd.f32 %v504, 1.0
      %v1273 = vadd.f32 %v505, 1.0
      %v1274 = vadd.f32 %v506, 1.0
      %v1275 = vadd.f32 %v507, 1.0
      %v1276 = vadd.f32 %v508, 1.0
      %v1277 = vadd.f32 %v509, 1.0
      %v1278 = vadd.f32 %v510, 1.0
      %v1279 = vadd.f32 %v511, 1.0
      %v1280 = vadd.f32 %v512, 1.0
      %v1281 = vadd.f32 %v513, 1.0
      %v1282 = vadd.f32 %v514, 1.0
      %v1283 = vadd.f32 %v515, 1.0
      %v1284 = vadd.f32 %v516, 1.0
      %v1285 = vadd.f32 %v517, 1.0
      %v1286 = vadd.f32 %v518, 1.0
      %v1287 = vadd.f32 %v519, 1.0
      %v1288 = vadd.f32 %v520, 1.0
      %v1289 = vadd.f32 %v521, 1.0
      %v1290 = vadd.f32 %v522, 1.0
      %v1291 = vadd.f32 %v523, 1.0
      %v1292 = vadd.f32 %v524, 1.0
      %v1293 = vadd.f32 %v525, 1.0
      %v1294 = vadd.f32 %v526, 1.0
      %v1295 = vadd.f32 %v527, 1.0
      %v1296 = vadd.f32 %v528, 1.0
      %v1297 = vadd.f32 %v529, 1.0
      %v1298 = vadd.f32 %v530, 1.0
      %v1299 = vadd.f32 %v531, 1.0
      %v1300 = vadd.f32 %v532, 1.0
      %v1301 = vadd.f32 %v533, 1.0
      %v1302 = vadd.f32 %v534, 1.0
      %v1303 = vadd.f32 %v535, 1.0
      %v1304 = vadd.f32 %v536, 1.0
      %v1305 = vadd.f32 %v537, 1.0
      %v1306 = vadd.f32 %v538, 1.0
      %v1307 = vadd.f32 %v539, 1.0
      %v1308 = vadd.f32 %v540, 1.0
      %v1309 = vadd.f32 %v541, 1.0
      %v1310 = vadd.f32 %v542, 1.0
      %v1311 = vadd.f32 %v543, 1.0
      %v1312 = vadd.f32 %v544, 1.0
      %v1313 = vadd.f32 %v545, 1.0
      %v1314 = vadd.f32 %v546, 1.0
      %v1315 = vadd.f32 %v547, 1.0
      %v1316 = vadd.f32 %v548, 1.0
      %v1317 = vadd.f32 %v549, 1.0
      %v1318 = vadd.f32 %v550, 1.0
      %v1319 = vadd.f32 %v551, 1.0
      %v1320 = vadd.f32 %v552, 1.0
      %v1321 = vadd.f32 %v553, 1.0
      %v1322 = vadd.f32 %v554, 1.0
      %v1323 = vadd.f32 %v555, 1.0
      %v1324 = vadd.f32 %v556, 1.0
      %v1325 = vadd.f32 %v557, 1.0
      %v1326 = vadd.f32 %v558, 1.0
      %v1327 = vadd.f32 %v559, 1.0
      %v1328 = vadd.f32 %v560, 1.0
      %v1329 = vadd.f32 %v561, 1.0
      %v1330 = vadd.f32 %v562, 1.0
      %v1331 = vadd.f32 %v563, 1.0
      %v1332 = vadd.f32 %v564, 1.0
      %v1333 = vadd.f32 %v565, 1.0
      %v1334 = vadd.f32 %v566, 1.0
      %v1335 = vadd.f32 %v567, 1.0
      %v1336 = vadd.f32 %v568, 1.0
      %v1337 = vadd.f32 %v569, 1.0
      %v1338 = vadd.f32 %v570, 1.0
      %v1339 = vadd.f32 %v571, 1.0
      %v1340 = vadd.f32 %v572, 1.0
      %v1341 = vadd.f32 %v573, 1.0
      %v1342 = vadd.f32 %v574, 1.0
      %v1343 = vadd.f32 %v575, 1.0
      %v1344 = vadd.f32 %v576, 1.0
      %v1345 = vadd.f32 %v577, 1.0
      %v1346 = vadd.f32 %v578, 1.0
      %v1347 = vadd.f32 %v579, 1.0
      %v1348 = vadd.f32 %v580, 1.0
      %v1349 = vadd.f32 %v581, 1.0
      %v1350 = vadd.f32 %v582, 1.0
      %v1351 = vadd.f32 %v583, 1.0
      %v1352 = vadd.f32 %v584, 1.0
      %v1353 = vadd.f32 %v585, 1.0
      %v1354 = vadd.f32 %v586, 1.0
      %v1355 = vadd.f32 %v587, 1.0
      %v1356 = vadd.f32 %v588, 1.0
      %v1357 = vadd.f32 %v589, 1.0
      %v1358 = vadd.f32 %v590, 1.0
      %v1359 = vadd.f32 %v591, 1.0
      %v1360 = vadd.f32 %v592, 1.0
      %v1361 = vadd.f32 %v593, 1.0
      %v1362 = vadd.f32 %v594, 1.0
      %v1363 = vadd.f32 %v595, 1.0
      %v1364 = vadd.f32 %v596, 1.0
      %v1365 = vadd.f32 %v597, 1.0
      %v1366 = vadd.f32 %v598, 1.0
      %v1367 = vadd.f32 %v599, 1.0
      %v1368 = vadd.f32 %v600, 1.0
      %v1369 = vadd.f32 %v601, 1.0
      %v1370 = vlog2.pop %v1114
      %v1371 = vmul.f32 %v1370, 0.6931472
      %v1372 = vlog2.pop %v1115
      %v1373 = vmul.f32 %v1372, 0.6931472
      %v1374 = vlog2.pop %v1116
      %v1375 = vmul.f32 %v1374, 0.6931472
      %v1376 = vlog2.pop %v1117
      %v1377 = vmul.f32 %v1376, 0.6931472
      %v1378 = vlog2.pop %v1118
      %v1379 = vmul.f32 %v1378, 0.6931472
      %v1380 = vlog2.pop %v1119
      %v1381 = vmul.f32 %v1380, 0.6931472
      %v1382 = vlog2.pop %v1120
      %v1383 = vmul.f32 %v1382, 0.6931472
      %v1384 = vlog2.pop %v1121
      %v1385 = vmul.f32 %v1384, 0.6931472
      %v1386 = vlog2.pop %v1122
      %v1387 = vmul.f32 %v1386, 0.6931472
      %v1388 = vlog2.pop %v1123
      %v1389 = vmul.f32 %v1388, 0.6931472
      %v1390 = vlog2.pop %v1124
      %v1391 = vmul.f32 %v1390, 0.6931472
      %v1392 = vlog2.pop %v1125
      %v1393 = vmul.f32 %v1392, 0.6931472
      %v1394 = vlog2.pop %v1126
      %v1395 = vmul.f32 %v1394, 0.6931472
      %v1396 = vlog2.pop %v1127
      %v1397 = vmul.f32 %v1396, 0.6931472
      %v1398 = vlog2.pop %v1128
      %v1399 = vmul.f32 %v1398, 0.6931472
      %v1400 = vlog2.pop %v1129
      %v1401 = vmul.f32 %v1400, 0.6931472
      %v1402 = vlog2.pop %v1130
      %v1403 = vmul.f32 %v1402, 0.6931472
      %v1404 = vlog2.pop %v1131
      %v1405 = vmul.f32 %v1404, 0.6931472
      %v1406 = vlog2.pop %v1132
      %v1407 = vmul.f32 %v1406, 0.6931472
      %v1408 = vlog2.pop %v1133
      %v1409 = vmul.f32 %v1408, 0.6931472
      %v1410 = vlog2.pop %v1134
      %v1411 = vmul.f32 %v1410, 0.6931472
      %v1412 = vlog2.pop %v1135
      %v1413 = vmul.f32 %v1412, 0.6931472
      %v1414 = vlog2.pop %v1136
      %v1415 = vmul.f32 %v1414, 0.6931472
      %v1416 = vlog2.pop %v1137
      %v1417 = vmul.f32 %v1416, 0.6931472
      %v1418 = vlog2.pop %v1138
      %v1419 = vmul.f32 %v1418, 0.6931472
      %v1420 = vlog2.pop %v1139
      %v1421 = vmul.f32 %v1420, 0.6931472
      %v1422 = vlog2.pop %v1140
      %v1423 = vmul.f32 %v1422, 0.6931472
      %v1424 = vlog2.pop %v1141
      %v1425 = vmul.f32 %v1424, 0.6931472
      %v1426 = vlog2.pop %v1142
      %v1427 = vmul.f32 %v1426, 0.6931472
      %v1428 = vlog2.pop %v1143
      %v1429 = vmul.f32 %v1428, 0.6931472
      %v1430 = vlog2.pop %v1144
      %v1431 = vmul.f32 %v1430, 0.6931472
      %v1432 = vlog2.pop %v1145
      %v1433 = vmul.f32 %v1432, 0.6931472
      %v1434 = vlog2.pop %v1146
      %v1435 = vmul.f32 %v1434, 0.6931472
      %v1436 = vlog2.pop %v1147
      %v1437 = vmul.f32 %v1436, 0.6931472
      %v1438 = vlog2.pop %v1148
      %v1439 = vmul.f32 %v1438, 0.6931472
      %v1440 = vlog2.pop %v1149
      %v1441 = vmul.f32 %v1440, 0.6931472
      %v1442 = vlog2.pop %v1150
      %v1443 = vmul.f32 %v1442, 0.6931472
      %v1444 = vlog2.pop %v1151
      %v1445 = vmul.f32 %v1444, 0.6931472
      %v1446 = vlog2.pop %v1152
      %v1447 = vmul.f32 %v1446, 0.6931472
      %v1448 = vlog2.pop %v1153
      %v1449 = vmul.f32 %v1448, 0.6931472
      %v1450 = vlog2.pop %v1154
      %v1451 = vmul.f32 %v1450, 0.6931472
      %v1452 = vlog2.pop %v1155
      %v1453 = vmul.f32 %v1452, 0.6931472
      %v1454 = vlog2.pop %v1156
      %v1455 = vmul.f32 %v1454, 0.6931472
      %v1456 = vlog2.pop %v1157
      %v1457 = vmul.f32 %v1456, 0.6931472
      %v1458 = vlog2.pop %v1158
      %v1459 = vmul.f32 %v1458, 0.6931472
      %v1460 = vlog2.pop %v1159
      %v1461 = vmul.f32 %v1460, 0.6931472
      %v1462 = vlog2.pop %v1160
      %v1463 = vmul.f32 %v1462, 0.6931472
      %v1464 = vlog2.pop %v1161
      %v1465 = vmul.f32 %v1464, 0.6931472
      %v1466 = vlog2.pop %v1162
      %v1467 = vmul.f32 %v1466, 0.6931472
      %v1468 = vlog2.pop %v1163
      %v1469 = vmul.f32 %v1468, 0.6931472
      %v1470 = vlog2.pop %v1164
      %v1471 = vmul.f32 %v1470, 0.6931472
      %v1472 = vlog2.pop %v1165
      %v1473 = vmul.f32 %v1472, 0.6931472
      %v1474 = vlog2.pop %v1166
      %v1475 = vmul.f32 %v1474, 0.6931472
      %v1476 = vlog2.pop %v1167
      %v1477 = vmul.f32 %v1476, 0.6931472
      %v1478 = vlog2.pop %v1168
      %v1479 = vmul.f32 %v1478, 0.6931472
      %v1480 = vlog2.pop %v1169
      %v1481 = vmul.f32 %v1480, 0.6931472
      %v1482 = vlog2.pop %v1170
      %v1483 = vmul.f32 %v1482, 0.6931472
      %v1484 = vlog2.pop %v1171
      %v1485 = vmul.f32 %v1484, 0.6931472
      %v1486 = vlog2.pop %v1172
      %v1487 = vmul.f32 %v1486, 0.6931472
      %v1488 = vlog2.pop %v1173
      %v1489 = vmul.f32 %v1488, 0.6931472
      %v1490 = vlog2.pop %v1174
      %v1491 = vmul.f32 %v1490, 0.6931472
      %v1492 = vlog2.pop %v1175
      %v1493 = vmul.f32 %v1492, 0.6931472
      %v1494 = vlog2.pop %v1176
      %v1495 = vmul.f32 %v1494, 0.6931472
      %v1496 = vlog2.pop %v1177
      %v1497 = vmul.f32 %v1496, 0.6931472
      %v1498 = vlog2.pop %v1178
      %v1499 = vmul.f32 %v1498, 0.6931472
      %v1500 = vlog2.pop %v1179
      %v1501 = vmul.f32 %v1500, 0.6931472
      %v1502 = vlog2.pop %v1180
      %v1503 = vmul.f32 %v1502, 0.6931472
      %v1504 = vlog2.pop %v1181
      %v1505 = vmul.f32 %v1504, 0.6931472
      %v1506 = vlog2.pop %v1182
      %v1507 = vmul.f32 %v1506, 0.6931472
      %v1508 = vlog2.pop %v1183
      %v1509 = vmul.f32 %v1508, 0.6931472
      %v1510 = vlog2.pop %v1184
      %v1511 = vmul.f32 %v1510, 0.6931472
      %v1512 = vlog2.pop %v1185
      %v1513 = vmul.f32 %v1512, 0.6931472
      %v1514 = vlog2.pop %v1186
      %v1515 = vmul.f32 %v1514, 0.6931472
      %v1516 = vlog2.pop %v1187
      %v1517 = vmul.f32 %v1516, 0.6931472
      %v1518 = vlog2.pop %v1188
      %v1519 = vmul.f32 %v1518, 0.6931472
      %v1520 = vlog2.pop %v1189
      %v1521 = vmul.f32 %v1520, 0.6931472
      %v1522 = vlog2.pop %v1190
      %v1523 = vmul.f32 %v1522, 0.6931472
      %v1524 = vlog2.pop %v1191
      %v1525 = vmul.f32 %v1524, 0.6931472
      %v1526 = vlog2.pop %v1192
      %v1527 = vmul.f32 %v1526, 0.6931472
      %v1528 = vlog2.pop %v1193
      %v1529 = vmul.f32 %v1528, 0.6931472
      %v1530 = vlog2.pop %v1194
      %v1531 = vmul.f32 %v1530, 0.6931472
      %v1532 = vlog2.pop %v1195
      %v1533 = vmul.f32 %v1532, 0.6931472
      %v1534 = vlog2.pop %v1196
      %v1535 = vmul.f32 %v1534, 0.6931472
      %v1536 = vlog2.pop %v1197
      %v1537 = vmul.f32 %v1536, 0.6931472
      %v1538 = vlog2.pop %v1198
      %v1539 = vmul.f32 %v1538, 0.6931472
      %v1540 = vlog2.pop %v1199
      %v1541 = vmul.f32 %v1540, 0.6931472
      %v1542 = vlog2.pop %v1200
      %v1543 = vmul.f32 %v1542, 0.6931472
      %v1544 = vlog2.pop %v1201
      %v1545 = vmul.f32 %v1544, 0.6931472
      %v1546 = vlog2.pop %v1202
      %v1547 = vmul.f32 %v1546, 0.6931472
      %v1548 = vlog2.pop %v1203
      %v1549 = vmul.f32 %v1548, 0.6931472
      %v1550 = vlog2.pop %v1204
      %v1551 = vmul.f32 %v1550, 0.6931472
      %v1552 = vlog2.pop %v1205
      %v1553 = vmul.f32 %v1552, 0.6931472
      %v1554 = vlog2.pop %v1206
      %v1555 = vmul.f32 %v1554, 0.6931472
      %v1556 = vlog2.pop %v1207
      %v1557 = vmul.f32 %v1556, 0.6931472
      %v1558 = vlog2.pop %v1208
      %v1559 = vmul.f32 %v1558, 0.6931472
      %v1560 = vlog2.pop %v1209
      %v1561 = vmul.f32 %v1560, 0.6931472
      %v1562 = vlog2.pop %v1210
      %v1563 = vmul.f32 %v1562, 0.6931472
      %v1564 = vlog2.pop %v1211
      %v1565 = vmul.f32 %v1564, 0.6931472
      %v1566 = vlog2.pop %v1212
      %v1567 = vmul.f32 %v1566, 0.6931472
      %v1568 = vlog2.pop %v1213
      %v1569 = vmul.f32 %v1568, 0.6931472
      %v1570 = vlog2.pop %v1214
      %v1571 = vmul.f32 %v1570, 0.6931472
      %v1572 = vlog2.pop %v1215
      %v1573 = vmul.f32 %v1572, 0.6931472
      %v1574 = vlog2.pop %v1216
      %v1575 = vmul.f32 %v1574, 0.6931472
      %v1576 = vlog2.pop %v1217
      %v1577 = vmul.f32 %v1576, 0.6931472
      %v1578 = vlog2.pop %v1218
      %v1579 = vmul.f32 %v1578, 0.6931472
      %v1580 = vlog2.pop %v1219
      %v1581 = vmul.f32 %v1580, 0.6931472
      %v1582 = vlog2.pop %v1220
      %v1583 = vmul.f32 %v1582, 0.6931472
      %v1584 = vlog2.pop %v1221
      %v1585 = vmul.f32 %v1584, 0.6931472
      %v1586 = vlog2.pop %v1222
      %v1587 = vmul.f32 %v1586, 0.6931472
      %v1588 = vlog2.pop %v1223
      %v1589 = vmul.f32 %v1588, 0.6931472
      %v1590 = vlog2.pop %v1224
      %v1591 = vmul.f32 %v1590, 0.6931472
      %v1592 = vlog2.pop %v1225
      %v1593 = vmul.f32 %v1592, 0.6931472
      %v1594 = vlog2.pop %v1226
      %v1595 = vmul.f32 %v1594, 0.6931472
      %v1596 = vlog2.pop %v1227
      %v1597 = vmul.f32 %v1596, 0.6931472
      %v1598 = vlog2.pop %v1228
      %v1599 = vmul.f32 %v1598, 0.6931472
      %v1600 = vlog2.pop %v1229
      %v1601 = vmul.f32 %v1600, 0.6931472
      %v1602 = vlog2.pop %v1230
      %v1603 = vmul.f32 %v1602, 0.6931472
      %v1604 = vlog2.pop %v1231
      %v1605 = vmul.f32 %v1604, 0.6931472
      %v1606 = vlog2.pop %v1232
      %v1607 = vmul.f32 %v1606, 0.6931472
      %v1608 = vlog2.pop %v1233
      %v1609 = vmul.f32 %v1608, 0.6931472
      %v1610 = vlog2.pop %v1234
      %v1611 = vmul.f32 %v1610, 0.6931472
      %v1612 = vlog2.pop %v1235
      %v1613 = vmul.f32 %v1612, 0.6931472
      %v1614 = vlog2.pop %v1236
      %v1615 = vmul.f32 %v1614, 0.6931472
      %v1616 = vlog2.pop %v1237
      %v1617 = vmul.f32 %v1616, 0.6931472
      %v1618 = vlog2.pop %v1238
      %v1619 = vmul.f32 %v1618, 0.6931472
      %v1620 = vlog2.pop %v1239
      %v1621 = vmul.f32 %v1620, 0.6931472
      %v1622 = vlog2.pop %v1240
      %v1623 = vmul.f32 %v1622, 0.6931472
      %v1624 = vlog2.pop %v1241
      %v1625 = vmul.f32 %v1624, 0.6931472
      %v1626 = vlog2.pop %v1242
      %v1627 = vmul.f32 %v1626, 0.6931472
      %v1628 = vlog2.pop %v1243
      %v1629 = vmul.f32 %v1628, 0.6931472
      %v1630 = vlog2.pop %v1244
      %v1631 = vmul.f32 %v1630, 0.6931472
      %v1632 = vlog2.pop %v1245
      %v1633 = vmul.f32 %v1632, 0.6931472
      %v1634 = vlog2.pop %v1246
      %v1635 = vmul.f32 %v1634, 0.6931472
      %v1636 = vlog2.pop %v1247
      %v1637 = vmul.f32 %v1636, 0.6931472
      %v1638 = vlog2.pop %v1248
      %v1639 = vmul.f32 %v1638, 0.6931472
      %v1640 = vlog2.pop %v1249
      %v1641 = vmul.f32 %v1640, 0.6931472
      %v1642 = vlog2.pop %v1250
      %v1643 = vmul.f32 %v1642, 0.6931472
      %v1644 = vlog2.pop %v1251
      %v1645 = vmul.f32 %v1644, 0.6931472
      %v1646 = vlog2.pop %v1252
      %v1647 = vmul.f32 %v1646, 0.6931472
      %v1648 = vlog2.pop %v1253
      %v1649 = vmul.f32 %v1648, 0.6931472
      %v1650 = vlog2.pop %v1254
      %v1651 = vmul.f32 %v1650, 0.6931472
      %v1652 = vlog2.pop %v1255
      %v1653 = vmul.f32 %v1652, 0.6931472
      %v1654 = vlog2.pop %v1256
      %v1655 = vmul.f32 %v1654, 0.6931472
      %v1656 = vlog2.pop %v1257
      %v1657 = vmul.f32 %v1656, 0.6931472
      %v1658 = vlog2.pop %v1258
      %v1659 = vmul.f32 %v1658, 0.6931472
      %v1660 = vlog2.pop %v1259
      %v1661 = vmul.f32 %v1660, 0.6931472
      %v1662 = vlog2.pop %v1260
      %v1663 = vmul.f32 %v1662, 0.6931472
      %v1664 = vlog2.pop %v1261
      %v1665 = vmul.f32 %v1664, 0.6931472
      %v1666 = vlog2.pop %v1262
      %v1667 = vmul.f32 %v1666, 0.6931472
      %v1668 = vlog2.pop %v1263
      %v1669 = vmul.f32 %v1668, 0.6931472
      %v1670 = vlog2.pop %v1264
      %v1671 = vmul.f32 %v1670, 0.6931472
      %v1672 = vlog2.pop %v1265
      %v1673 = vmul.f32 %v1672, 0.6931472
      %v1674 = vlog2.pop %v1266
      %v1675 = vmul.f32 %v1674, 0.6931472
      %v1676 = vlog2.pop %v1267
      %v1677 = vmul.f32 %v1676, 0.6931472
      %v1678 = vlog2.pop %v1268
      %v1679 = vmul.f32 %v1678, 0.6931472
      %v1680 = vlog2.pop %v1269
      %v1681 = vmul.f32 %v1680, 0.6931472
      %v1682 = vlog2.pop %v1270
      %v1683 = vmul.f32 %v1682, 0.6931472
      %v1684 = vlog2.pop %v1271
      %v1685 = vmul.f32 %v1684, 0.6931472
      %v1686 = vlog2.pop %v1272
      %v1687 = vmul.f32 %v1686, 0.6931472
      %v1688 = vlog2.pop %v1273
      %v1689 = vmul.f32 %v1688, 0.6931472
      %v1690 = vlog2.pop %v1274
      %v1691 = vmul.f32 %v1690, 0.6931472
      %v1692 = vlog2.pop %v1275
      %v1693 = vmul.f32 %v1692, 0.6931472
      %v1694 = vlog2.pop %v1276
      %v1695 = vmul.f32 %v1694, 0.6931472
      %v1696 = vlog2.pop %v1277
      %v1697 = vmul.f32 %v1696, 0.6931472
      %v1698 = vlog2.pop %v1278
      %v1699 = vmul.f32 %v1698, 0.6931472
      %v1700 = vlog2.pop %v1279
      %v1701 = vmul.f32 %v1700, 0.6931472
      %v1702 = vlog2.pop %v1280
      %v1703 = vmul.f32 %v1702, 0.6931472
      %v1704 = vlog2.pop %v1281
      %v1705 = vmul.f32 %v1704, 0.6931472
      %v1706 = vlog2.pop %v1282
      %v1707 = vmul.f32 %v1706, 0.6931472
      %v1708 = vlog2.pop %v1283
      %v1709 = vmul.f32 %v1708, 0.6931472
      %v1710 = vlog2.pop %v1284
      %v1711 = vmul.f32 %v1710, 0.6931472
      %v1712 = vlog2.pop %v1285
      %v1713 = vmul.f32 %v1712, 0.6931472
      %v1714 = vlog2.pop %v1286
      %v1715 = vmul.f32 %v1714, 0.6931472
      %v1716 = vlog2.pop %v1287
      %v1717 = vmul.f32 %v1716, 0.6931472
      %v1718 = vlog2.pop %v1288
      %v1719 = vmul.f32 %v1718, 0.6931472
      %v1720 = vlog2.pop %v1289
      %v1721 = vmul.f32 %v1720, 0.6931472
      %v1722 = vlog2.pop %v1290
      %v1723 = vmul.f32 %v1722, 0.6931472
      %v1724 = vlog2.pop %v1291
      %v1725 = vmul.f32 %v1724, 0.6931472
      %v1726 = vlog2.pop %v1292
      %v1727 = vmul.f32 %v1726, 0.6931472
      %v1728 = vlog2.pop %v1293
      %v1729 = vmul.f32 %v1728, 0.6931472
      %v1730 = vlog2.pop %v1294
      %v1731 = vmul.f32 %v1730, 0.6931472
      %v1732 = vlog2.pop %v1295
      %v1733 = vmul.f32 %v1732, 0.6931472
      %v1734 = vlog2.pop %v1296
      %v1735 = vmul.f32 %v1734, 0.6931472
      %v1736 = vlog2.pop %v1297
      %v1737 = vmul.f32 %v1736, 0.6931472
      %v1738 = vlog2.pop %v1298
      %v1739 = vmul.f32 %v1738, 0.6931472
      %v1740 = vlog2.pop %v1299
      %v1741 = vmul.f32 %v1740, 0.6931472
      %v1742 = vlog2.pop %v1300
      %v1743 = vmul.f32 %v1742, 0.6931472
      %v1744 = vlog2.pop %v1301
      %v1745 = vmul.f32 %v1744, 0.6931472
      %v1746 = vlog2.pop %v1302
      %v1747 = vmul.f32 %v1746, 0.6931472
      %v1748 = vlog2.pop %v1303
      %v1749 = vmul.f32 %v1748, 0.6931472
      %v1750 = vlog2.pop %v1304
      %v1751 = vmul.f32 %v1750, 0.6931472
      %v1752 = vlog2.pop %v1305
      %v1753 = vmul.f32 %v1752, 0.6931472
      %v1754 = vlog2.pop %v1306
      %v1755 = vmul.f32 %v1754, 0.6931472
      %v1756 = vlog2.pop %v1307
      %v1757 = vmul.f32 %v1756, 0.6931472
      %v1758 = vlog2.pop %v1308
      %v1759 = vmul.f32 %v1758, 0.6931472
      %v1760 = vlog2.pop %v1309
      %v1761 = vmul.f32 %v1760, 0.6931472
      %v1762 = vlog2.pop %v1310
      %v1763 = vmul.f32 %v1762, 0.6931472
      %v1764 = vlog2.pop %v1311
      %v1765 = vmul.f32 %v1764, 0.6931472
      %v1766 = vlog2.pop %v1312
      %v1767 = vmul.f32 %v1766, 0.6931472
      %v1768 = vlog2.pop %v1313
      %v1769 = vmul.f32 %v1768, 0.6931472
      %v1770 = vlog2.pop %v1314
      %v1771 = vmul.f32 %v1770, 0.6931472
      %v1772 = vlog2.pop %v1315
      %v1773 = vmul.f32 %v1772, 0.6931472
      %v1774 = vlog2.pop %v1316
      %v1775 = vmul.f32 %v1774, 0.6931472
      %v1776 = vlog2.pop %v1317
      %v1777 = vmul.f32 %v1776, 0.6931472
      %v1778 = vlog2.pop %v1318
      %v1779 = vmul.f32 %v1778, 0.6931472
      %v1780 = vlog2.pop %v1319
      %v1781 = vmul.f32 %v1780, 0.6931472
      %v1782 = vlog2.pop %v1320
      %v1783 = vmul.f32 %v1782, 0.6931472
      %v1784 = vlog2.pop %v1321
      %v1785 = vmul.f32 %v1784, 0.6931472
      %v1786 = vlog2.pop %v1322
      %v1787 = vmul.f32 %v1786, 0.6931472
      %v1788 = vlog2.pop %v1323
      %v1789 = vmul.f32 %v1788, 0.6931472
      %v1790 = vlog2.pop %v1324
      %v1791 = vmul.f32 %v1790, 0.6931472
      %v1792 = vlog2.pop %v1325
      %v1793 = vmul.f32 %v1792, 0.6931472
      %v1794 = vlog2.pop %v1326
      %v1795 = vmul.f32 %v1794, 0.6931472
      %v1796 = vlog2.pop %v1327
      %v1797 = vmul.f32 %v1796, 0.6931472
      %v1798 = vlog2.pop %v1328
      %v1799 = vmul.f32 %v1798, 0.6931472
      %v1800 = vlog2.pop %v1329
      %v1801 = vmul.f32 %v1800, 0.6931472
      %v1802 = vlog2.pop %v1330
      %v1803 = vmul.f32 %v1802, 0.6931472
      %v1804 = vlog2.pop %v1331
      %v1805 = vmul.f32 %v1804, 0.6931472
      %v1806 = vlog2.pop %v1332
      %v1807 = vmul.f32 %v1806, 0.6931472
      %v1808 = vlog2.pop %v1333
      %v1809 = vmul.f32 %v1808, 0.6931472
      %v1810 = vlog2.pop %v1334
      %v1811 = vmul.f32 %v1810, 0.6931472
      %v1812 = vlog2.pop %v1335
      %v1813 = vmul.f32 %v1812, 0.6931472
      %v1814 = vlog2.pop %v1336
      %v1815 = vmul.f32 %v1814, 0.6931472
      %v1816 = vlog2.pop %v1337
      %v1817 = vmul.f32 %v1816, 0.6931472
      %v1818 = vlog2.pop %v1338
      %v1819 = vmul.f32 %v1818, 0.6931472
      %v1820 = vlog2.pop %v1339
      %v1821 = vmul.f32 %v1820, 0.6931472
      %v1822 = vlog2.pop %v1340
      %v1823 = vmul.f32 %v1822, 0.6931472
      %v1824 = vlog2.pop %v1341
      %v1825 = vmul.f32 %v1824, 0.6931472
      %v1826 = vlog2.pop %v1342
      %v1827 = vmul.f32 %v1826, 0.6931472
      %v1828 = vlog2.pop %v1343
      %v1829 = vmul.f32 %v1828, 0.6931472
      %v1830 = vlog2.pop %v1344
      %v1831 = vmul.f32 %v1830, 0.6931472
      %v1832 = vlog2.pop %v1345
      %v1833 = vmul.f32 %v1832, 0.6931472
      %v1834 = vlog2.pop %v1346
      %v1835 = vmul.f32 %v1834, 0.6931472
      %v1836 = vlog2.pop %v1347
      %v1837 = vmul.f32 %v1836, 0.6931472
      %v1838 = vlog2.pop %v1348
      %v1839 = vmul.f32 %v1838, 0.6931472
      %v1840 = vlog2.pop %v1349
      %v1841 = vmul.f32 %v1840, 0.6931472
      %v1842 = vlog2.pop %v1350
      %v1843 = vmul.f32 %v1842, 0.6931472
      %v1844 = vlog2.pop %v1351
      %v1845 = vmul.f32 %v1844, 0.6931472
      %v1846 = vlog2.pop %v1352
      %v1847 = vmul.f32 %v1846, 0.6931472
      %v1848 = vlog2.pop %v1353
      %v1849 = vmul.f32 %v1848, 0.6931472
      %v1850 = vlog2.pop %v1354
      %v1851 = vmul.f32 %v1850, 0.6931472
      %v1852 = vlog2.pop %v1355
      %v1853 = vmul.f32 %v1852, 0.6931472
      %v1854 = vlog2.pop %v1356
      %v1855 = vmul.f32 %v1854, 0.6931472
      %v1856 = vlog2.pop %v1357
      %v1857 = vmul.f32 %v1856, 0.6931472
      %v1858 = vlog2.pop %v1358
      %v1859 = vmul.f32 %v1858, 0.6931472
      %v1860 = vlog2.pop %v1359
      %v1861 = vmul.f32 %v1860, 0.6931472
      %v1862 = vlog2.pop %v1360
      %v1863 = vmul.f32 %v1862, 0.6931472
      %v1864 = vlog2.pop %v1361
      %v1865 = vmul.f32 %v1864, 0.6931472
      %v1866 = vlog2.pop %v1362
      %v1867 = vmul.f32 %v1866, 0.6931472
      %v1868 = vlog2.pop %v1363
      %v1869 = vmul.f32 %v1868, 0.6931472
      %v1870 = vlog2.pop %v1364
      %v1871 = vmul.f32 %v1870, 0.6931472
      %v1872 = vlog2.pop %v1365
      %v1873 = vmul.f32 %v1872, 0.6931472
      %v1874 = vlog2.pop %v1366
      %v1875 = vmul.f32 %v1874, 0.6931472
      %v1876 = vlog2.pop %v1367
      %v1877 = vmul.f32 %v1876, 0.6931472
      %v1878 = vlog2.pop %v1368
      %v1879 = vmul.f32 %v1878, 0.6931472
      %v1880 = vlog2.pop %v1369
      %v1881 = vmul.f32 %v1880, 0.6931472
      %v1882 = vrcp.pop 0.6931472
      %v1883 = vmul.f32 %v1371, %v1882
      %v1884 = vmul.f32 %v1373, %v1882
      %v1885 = vmul.f32 %v1375, %v1882
      %v1886 = vmul.f32 %v1377, %v1882
      %v1887 = vmul.f32 %v1379, %v1882
      %v1888 = vmul.f32 %v1381, %v1882
      %v1889 = vmul.f32 %v1383, %v1882
      %v1890 = vmul.f32 %v1385, %v1882
      %v1891 = vmul.f32 %v1387, %v1882
      %v1892 = vmul.f32 %v1389, %v1882
      %v1893 = vmul.f32 %v1391, %v1882
      %v1894 = vmul.f32 %v1393, %v1882
      %v1895 = vmul.f32 %v1395, %v1882
      %v1896 = vmul.f32 %v1397, %v1882
      %v1897 = vmul.f32 %v1399, %v1882
      %v1898 = vmul.f32 %v1401, %v1882
      %v1899 = vmul.f32 %v1403, %v1882
      %v1900 = vmul.f32 %v1405, %v1882
      %v1901 = vmul.f32 %v1407, %v1882
      %v1902 = vmul.f32 %v1409, %v1882
      %v1903 = vmul.f32 %v1411, %v1882
      %v1904 = vmul.f32 %v1413, %v1882
      %v1905 = vmul.f32 %v1415, %v1882
      %v1906 = vmul.f32 %v1417, %v1882
      %v1907 = vmul.f32 %v1419, %v1882
      %v1908 = vmul.f32 %v1421, %v1882
      %v1909 = vmul.f32 %v1423, %v1882
      %v1910 = vmul.f32 %v1425, %v1882
      %v1911 = vmul.f32 %v1427, %v1882
      %v1912 = vmul.f32 %v1429, %v1882
      %v1913 = vmul.f32 %v1431, %v1882
      %v1914 = vmul.f32 %v1433, %v1882
      %v1915 = vmul.f32 %v1435, %v1882
      %v1916 = vmul.f32 %v1437, %v1882
      %v1917 = vmul.f32 %v1439, %v1882
      %v1918 = vmul.f32 %v1441, %v1882
      %v1919 = vmul.f32 %v1443, %v1882
      %v1920 = vmul.f32 %v1445, %v1882
      %v1921 = vmul.f32 %v1447, %v1882
      %v1922 = vmul.f32 %v1449, %v1882
      %v1923 = vmul.f32 %v1451, %v1882
      %v1924 = vmul.f32 %v1453, %v1882
      %v1925 = vmul.f32 %v1455, %v1882
      %v1926 = vmul.f32 %v1457, %v1882
      %v1927 = vmul.f32 %v1459, %v1882
      %v1928 = vmul.f32 %v1461, %v1882
      %v1929 = vmul.f32 %v1463, %v1882
      %v1930 = vmul.f32 %v1465, %v1882
      %v1931 = vmul.f32 %v1467, %v1882
      %v1932 = vmul.f32 %v1469, %v1882
      %v1933 = vmul.f32 %v1471, %v1882
      %v1934 = vmul.f32 %v1473, %v1882
      %v1935 = vmul.f32 %v1475, %v1882
      %v1936 = vmul.f32 %v1477, %v1882
      %v1937 = vmul.f32 %v1479, %v1882
      %v1938 = vmul.f32 %v1481, %v1882
      %v1939 = vmul.f32 %v1483, %v1882
      %v1940 = vmul.f32 %v1485, %v1882
      %v1941 = vmul.f32 %v1487, %v1882
      %v1942 = vmul.f32 %v1489, %v1882
      %v1943 = vmul.f32 %v1491, %v1882
      %v1944 = vmul.f32 %v1493, %v1882
      %v1945 = vmul.f32 %v1495, %v1882
      %v1946 = vmul.f32 %v1497, %v1882
      %v1947 = vmul.f32 %v1499, %v1882
      %v1948 = vmul.f32 %v1501, %v1882
      %v1949 = vmul.f32 %v1503, %v1882
      %v1950 = vmul.f32 %v1505, %v1882
      %v1951 = vmul.f32 %v1507, %v1882
      %v1952 = vmul.f32 %v1509, %v1882
      %v1953 = vmul.f32 %v1511, %v1882
      %v1954 = vmul.f32 %v1513, %v1882
      %v1955 = vmul.f32 %v1515, %v1882
      %v1956 = vmul.f32 %v1517, %v1882
      %v1957 = vmul.f32 %v1519, %v1882
      %v1958 = vmul.f32 %v1521, %v1882
      %v1959 = vmul.f32 %v1523, %v1882
      %v1960 = vmul.f32 %v1525, %v1882
      %v1961 = vmul.f32 %v1527, %v1882
      %v1962 = vmul.f32 %v1529, %v1882
      %v1963 = vmul.f32 %v1531, %v1882
      %v1964 = vmul.f32 %v1533, %v1882
      %v1965 = vmul.f32 %v1535, %v1882
      %v1966 = vmul.f32 %v1537, %v1882
      %v1967 = vmul.f32 %v1539, %v1882
      %v1968 = vmul.f32 %v1541, %v1882
      %v1969 = vmul.f32 %v1543, %v1882
      %v1970 = vmul.f32 %v1545, %v1882
      %v1971 = vmul.f32 %v1547, %v1882
      %v1972 = vmul.f32 %v1549, %v1882
      %v1973 = vmul.f32 %v1551, %v1882
      %v1974 = vmul.f32 %v1553, %v1882
      %v1975 = vmul.f32 %v1555, %v1882
      %v1976 = vmul.f32 %v1557, %v1882
      %v1977 = vmul.f32 %v1559, %v1882
      %v1978 = vmul.f32 %v1561, %v1882
      %v1979 = vmul.f32 %v1563, %v1882
      %v1980 = vmul.f32 %v1565, %v1882
      %v1981 = vmul.f32 %v1567, %v1882
      %v1982 = vmul.f32 %v1569, %v1882
      %v1983 = vmul.f32 %v1571, %v1882
      %v1984 = vmul.f32 %v1573, %v1882
      %v1985 = vmul.f32 %v1575, %v1882
      %v1986 = vmul.f32 %v1577, %v1882
      %v1987 = vmul.f32 %v1579, %v1882
      %v1988 = vmul.f32 %v1581, %v1882
      %v1989 = vmul.f32 %v1583, %v1882
      %v1990 = vmul.f32 %v1585, %v1882
      %v1991 = vmul.f32 %v1587, %v1882
      %v1992 = vmul.f32 %v1589, %v1882
      %v1993 = vmul.f32 %v1591, %v1882
      %v1994 = vmul.f32 %v1593, %v1882
      %v1995 = vmul.f32 %v1595, %v1882
      %v1996 = vmul.f32 %v1597, %v1882
      %v1997 = vmul.f32 %v1599, %v1882
      %v1998 = vmul.f32 %v1601, %v1882
      %v1999 = vmul.f32 %v1603, %v1882
      %v2000 = vmul.f32 %v1605, %v1882
      %v2001 = vmul.f32 %v1607, %v1882
      %v2002 = vmul.f32 %v1609, %v1882
      %v2003 = vmul.f32 %v1611, %v1882
      %v2004 = vmul.f32 %v1613, %v1882
      %v2005 = vmul.f32 %v1615, %v1882
      %v2006 = vmul.f32 %v1617, %v1882
      %v2007 = vmul.f32 %v1619, %v1882
      %v2008 = vmul.f32 %v1621, %v1882
      %v2009 = vmul.f32 %v1623, %v1882
      %v2010 = vmul.f32 %v1625, %v1882
      %v2011 = vmul.f32 %v1627, %v1882
      %v2012 = vmul.f32 %v1629, %v1882
      %v2013 = vmul.f32 %v1631, %v1882
      %v2014 = vmul.f32 %v1633, %v1882
      %v2015 = vmul.f32 %v1635, %v1882
      %v2016 = vmul.f32 %v1637, %v1882
      %v2017 = vmul.f32 %v1639, %v1882
      %v2018 = vmul.f32 %v1641, %v1882
      %v2019 = vmul.f32 %v1643, %v1882
      %v2020 = vmul.f32 %v1645, %v1882
      %v2021 = vmul.f32 %v1647, %v1882
      %v2022 = vmul.f32 %v1649, %v1882
      %v2023 = vmul.f32 %v1651, %v1882
      %v2024 = vmul.f32 %v1653, %v1882
      %v2025 = vmul.f32 %v1655, %v1882
      %v2026 = vmul.f32 %v1657, %v1882
      %v2027 = vmul.f32 %v1659, %v1882
      %v2028 = vmul.f32 %v1661, %v1882
      %v2029 = vmul.f32 %v1663, %v1882
      %v2030 = vmul.f32 %v1665, %v1882
      %v2031 = vmul.f32 %v1667, %v1882
      %v2032 = vmul.f32 %v1669, %v1882
      %v2033 = vmul.f32 %v1671, %v1882
      %v2034 = vmul.f32 %v1673, %v1882
      %v2035 = vmul.f32 %v1675, %v1882
      %v2036 = vmul.f32 %v1677, %v1882
      %v2037 = vmul.f32 %v1679, %v1882
      %v2038 = vmul.f32 %v1681, %v1882
      %v2039 = vmul.f32 %v1683, %v1882
      %v2040 = vmul.f32 %v1685, %v1882
      %v2041 = vmul.f32 %v1687, %v1882
      %v2042 = vmul.f32 %v1689, %v1882
      %v2043 = vmul.f32 %v1691, %v1882
      %v2044 = vmul.f32 %v1693, %v1882
      %v2045 = vmul.f32 %v1695, %v1882
      %v2046 = vmul.f32 %v1697, %v1882
      %v2047 = vmul.f32 %v1699, %v1882
      %v2048 = vmul.f32 %v1701, %v1882
      %v2049 = vmul.f32 %v1703, %v1882
      %v2050 = vmul.f32 %v1705, %v1882
      %v2051 = vmul.f32 %v1707, %v1882
      %v2052 = vmul.f32 %v1709, %v1882
      %v2053 = vmul.f32 %v1711, %v1882
      %v2054 = vmul.f32 %v1713, %v1882
      %v2055 = vmul.f32 %v1715, %v1882
      %v2056 = vmul.f32 %v1717, %v1882
      %v2057 = vmul.f32 %v1719, %v1882
      %v2058 = vmul.f32 %v1721, %v1882
      %v2059 = vmul.f32 %v1723, %v1882
      %v2060 = vmul.f32 %v1725, %v1882
      %v2061 = vmul.f32 %v1727, %v1882
      %v2062 = vmul.f32 %v1729, %v1882
      %v2063 = vmul.f32 %v1731, %v1882
      %v2064 = vmul.f32 %v1733, %v1882
      %v2065 = vmul.f32 %v1735, %v1882
      %v2066 = vmul.f32 %v1737, %v1882
      %v2067 = vmul.f32 %v1739, %v1882
      %v2068 = vmul.f32 %v1741, %v1882
      %v2069 = vmul.f32 %v1743, %v1882
      %v2070 = vmul.f32 %v1745, %v1882
      %v2071 = vmul.f32 %v1747, %v1882
      %v2072 = vmul.f32 %v1749, %v1882
      %v2073 = vmul.f32 %v1751, %v1882
      %v2074 = vmul.f32 %v1753, %v1882
      %v2075 = vmul.f32 %v1755, %v1882
      %v2076 = vmul.f32 %v1757, %v1882
      %v2077 = vmul.f32 %v1759, %v1882
      %v2078 = vmul.f32 %v1761, %v1882
      %v2079 = vmul.f32 %v1763, %v1882
      %v2080 = vmul.f32 %v1765, %v1882
      %v2081 = vmul.f32 %v1767, %v1882
      %v2082 = vmul.f32 %v1769, %v1882
      %v2083 = vmul.f32 %v1771, %v1882
      %v2084 = vmul.f32 %v1773, %v1882
      %v2085 = vmul.f32 %v1775, %v1882
      %v2086 = vmul.f32 %v1777, %v1882
      %v2087 = vmul.f32 %v1779, %v1882
      %v2088 = vmul.f32 %v1781, %v1882
      %v2089 = vmul.f32 %v1783, %v1882
      %v2090 = vmul.f32 %v1785, %v1882
      %v2091 = vmul.f32 %v1787, %v1882
      %v2092 = vmul.f32 %v1789, %v1882
      %v2093 = vmul.f32 %v1791, %v1882
      %v2094 = vmul.f32 %v1793, %v1882
      %v2095 = vmul.f32 %v1795, %v1882
      %v2096 = vmul.f32 %v1797, %v1882
      %v2097 = vmul.f32 %v1799, %v1882
      %v2098 = vmul.f32 %v1801, %v1882
      %v2099 = vmul.f32 %v1803, %v1882
      %v2100 = vmul.f32 %v1805, %v1882
      %v2101 = vmul.f32 %v1807, %v1882
      %v2102 = vmul.f32 %v1809, %v1882
      %v2103 = vmul.f32 %v1811, %v1882
      %v2104 = vmul.f32 %v1813, %v1882
      %v2105 = vmul.f32 %v1815, %v1882
      %v2106 = vmul.f32 %v1817, %v1882
      %v2107 = vmul.f32 %v1819, %v1882
      %v2108 = vmul.f32 %v1821, %v1882
      %v2109 = vmul.f32 %v1823, %v1882
      %v2110 = vmul.f32 %v1825, %v1882
      %v2111 = vmul.f32 %v1827, %v1882
      %v2112 = vmul.f32 %v1829, %v1882
      %v2113 = vmul.f32 %v1831, %v1882
      %v2114 = vmul.f32 %v1833, %v1882
      %v2115 = vmul.f32 %v1835, %v1882
      %v2116 = vmul.f32 %v1837, %v1882
      %v2117 = vmul.f32 %v1839, %v1882
      %v2118 = vmul.f32 %v1841, %v1882
      %v2119 = vmul.f32 %v1843, %v1882
      %v2120 = vmul.f32 %v1845, %v1882
      %v2121 = vmul.f32 %v1847, %v1882
      %v2122 = vmul.f32 %v1849, %v1882
      %v2123 = vmul.f32 %v1851, %v1882
      %v2124 = vmul.f32 %v1853, %v1882
      %v2125 = vmul.f32 %v1855, %v1882
      %v2126 = vmul.f32 %v1857, %v1882
      %v2127 = vmul.f32 %v1859, %v1882
      %v2128 = vmul.f32 %v1861, %v1882
      %v2129 = vmul.f32 %v1863, %v1882
      %v2130 = vmul.f32 %v1865, %v1882
      %v2131 = vmul.f32 %v1867, %v1882
      %v2132 = vmul.f32 %v1869, %v1882
      %v2133 = vmul.f32 %v1871, %v1882
      %v2134 = vmul.f32 %v1873, %v1882
      %v2135 = vmul.f32 %v1875, %v1882
      %v2136 = vmul.f32 %v1877, %v1882
      %v2137 = vmul.f32 %v1879, %v1882
      %v2138 = vmul.f32 %v1881, %v1882
      %v2139 = vadd.f32 %v858, 1.0
      %v2140 = vadd.f32 %v859, 1.0
      %v2141 = vadd.f32 %v860, 1.0
      %v2142 = vadd.f32 %v861, 1.0
      %v2143 = vadd.f32 %v862, 1.0
      %v2144 = vadd.f32 %v863, 1.0
      %v2145 = vadd.f32 %v864, 1.0
      %v2146 = vadd.f32 %v865, 1.0
      %v2147 = vadd.f32 %v866, 1.0
      %v2148 = vadd.f32 %v867, 1.0
      %v2149 = vadd.f32 %v868, 1.0
      %v2150 = vadd.f32 %v869, 1.0
      %v2151 = vadd.f32 %v870, 1.0
      %v2152 = vadd.f32 %v871, 1.0
      %v2153 = vadd.f32 %v872, 1.0
      %v2154 = vadd.f32 %v873, 1.0
      %v2155 = vadd.f32 %v874, 1.0
      %v2156 = vadd.f32 %v875, 1.0
      %v2157 = vadd.f32 %v876, 1.0
      %v2158 = vadd.f32 %v877, 1.0
      %v2159 = vadd.f32 %v878, 1.0
      %v2160 = vadd.f32 %v879, 1.0
      %v2161 = vadd.f32 %v880, 1.0
      %v2162 = vadd.f32 %v881, 1.0
      %v2163 = vadd.f32 %v882, 1.0
      %v2164 = vadd.f32 %v883, 1.0
      %v2165 = vadd.f32 %v884, 1.0
      %v2166 = vadd.f32 %v885, 1.0
      %v2167 = vadd.f32 %v886, 1.0
      %v2168 = vadd.f32 %v887, 1.0
      %v2169 = vadd.f32 %v888, 1.0
      %v2170 = vadd.f32 %v889, 1.0
      %v2171 = vadd.f32 %v890, 1.0
      %v2172 = vadd.f32 %v891, 1.0
      %v2173 = vadd.f32 %v892, 1.0
      %v2174 = vadd.f32 %v893, 1.0
      %v2175 = vadd.f32 %v894, 1.0
      %v2176 = vadd.f32 %v895, 1.0
      %v2177 = vadd.f32 %v896, 1.0
      %v2178 = vadd.f32 %v897, 1.0
      %v2179 = vadd.f32 %v898, 1.0
      %v2180 = vadd.f32 %v899, 1.0
      %v2181 = vadd.f32 %v900, 1.0
      %v2182 = vadd.f32 %v901, 1.0
      %v2183 = vadd.f32 %v902, 1.0
      %v2184 = vadd.f32 %v903, 1.0
      %v2185 = vadd.f32 %v904, 1.0
      %v2186 = vadd.f32 %v905, 1.0
      %v2187 = vadd.f32 %v906, 1.0
      %v2188 = vadd.f32 %v907, 1.0
      %v2189 = vadd.f32 %v908, 1.0
      %v2190 = vadd.f32 %v909, 1.0
      %v2191 = vadd.f32 %v910, 1.0
      %v2192 = vadd.f32 %v911, 1.0
      %v2193 = vadd.f32 %v912, 1.0
      %v2194 = vadd.f32 %v913, 1.0
      %v2195 = vadd.f32 %v914, 1.0
      %v2196 = vadd.f32 %v915, 1.0
      %v2197 = vadd.f32 %v916, 1.0
      %v2198 = vadd.f32 %v917, 1.0
      %v2199 = vadd.f32 %v918, 1.0
      %v2200 = vadd.f32 %v919, 1.0
      %v2201 = vadd.f32 %v920, 1.0
      %v2202 = vadd.f32 %v921, 1.0
      %v2203 = vadd.f32 %v922, 1.0
      %v2204 = vadd.f32 %v923, 1.0
      %v2205 = vadd.f32 %v924, 1.0
      %v2206 = vadd.f32 %v925, 1.0
      %v2207 = vadd.f32 %v926, 1.0
      %v2208 = vadd.f32 %v927, 1.0
      %v2209 = vadd.f32 %v928, 1.0
      %v2210 = vadd.f32 %v929, 1.0
      %v2211 = vadd.f32 %v930, 1.0
      %v2212 = vadd.f32 %v931, 1.0
      %v2213 = vadd.f32 %v932, 1.0
      %v2214 = vadd.f32 %v933, 1.0
      %v2215 = vadd.f32 %v934, 1.0
      %v2216 = vadd.f32 %v935, 1.0
      %v2217 = vadd.f32 %v936, 1.0
      %v2218 = vadd.f32 %v937, 1.0
      %v2219 = vadd.f32 %v938, 1.0
      %v2220 = vadd.f32 %v939, 1.0
      %v2221 = vadd.f32 %v940, 1.0
      %v2222 = vadd.f32 %v941, 1.0
      %v2223 = vadd.f32 %v942, 1.0
      %v2224 = vadd.f32 %v943, 1.0
      %v2225 = vadd.f32 %v944, 1.0
      %v2226 = vadd.f32 %v945, 1.0
      %v2227 = vadd.f32 %v946, 1.0
      %v2228 = vadd.f32 %v947, 1.0
      %v2229 = vadd.f32 %v948, 1.0
      %v2230 = vadd.f32 %v949, 1.0
      %v2231 = vadd.f32 %v950, 1.0
      %v2232 = vadd.f32 %v951, 1.0
      %v2233 = vadd.f32 %v952, 1.0
      %v2234 = vadd.f32 %v953, 1.0
      %v2235 = vadd.f32 %v954, 1.0
      %v2236 = vadd.f32 %v955, 1.0
      %v2237 = vadd.f32 %v956, 1.0
      %v2238 = vadd.f32 %v957, 1.0
      %v2239 = vadd.f32 %v958, 1.0
      %v2240 = vadd.f32 %v959, 1.0
      %v2241 = vadd.f32 %v960, 1.0
      %v2242 = vadd.f32 %v961, 1.0
      %v2243 = vadd.f32 %v962, 1.0
      %v2244 = vadd.f32 %v963, 1.0
      %v2245 = vadd.f32 %v964, 1.0
      %v2246 = vadd.f32 %v965, 1.0
      %v2247 = vadd.f32 %v966, 1.0
      %v2248 = vadd.f32 %v967, 1.0
      %v2249 = vadd.f32 %v968, 1.0
      %v2250 = vadd.f32 %v969, 1.0
      %v2251 = vadd.f32 %v970, 1.0
      %v2252 = vadd.f32 %v971, 1.0
      %v2253 = vadd.f32 %v972, 1.0
      %v2254 = vadd.f32 %v973, 1.0
      %v2255 = vadd.f32 %v974, 1.0
      %v2256 = vadd.f32 %v975, 1.0
      %v2257 = vadd.f32 %v976, 1.0
      %v2258 = vadd.f32 %v977, 1.0
      %v2259 = vadd.f32 %v978, 1.0
      %v2260 = vadd.f32 %v979, 1.0
      %v2261 = vadd.f32 %v980, 1.0
      %v2262 = vadd.f32 %v981, 1.0
      %v2263 = vadd.f32 %v982, 1.0
      %v2264 = vadd.f32 %v983, 1.0
      %v2265 = vadd.f32 %v984, 1.0
      %v2266 = vadd.f32 %v985, 1.0
      %v2267 = vadd.f32 %v986, 1.0
      %v2268 = vadd.f32 %v987, 1.0
      %v2269 = vadd.f32 %v988, 1.0
      %v2270 = vadd.f32 %v989, 1.0
      %v2271 = vadd.f32 %v990, 1.0
      %v2272 = vadd.f32 %v991, 1.0
      %v2273 = vadd.f32 %v992, 1.0
      %v2274 = vadd.f32 %v993, 1.0
      %v2275 = vadd.f32 %v994, 1.0
      %v2276 = vadd.f32 %v995, 1.0
      %v2277 = vadd.f32 %v996, 1.0
      %v2278 = vadd.f32 %v997, 1.0
      %v2279 = vadd.f32 %v998, 1.0
      %v2280 = vadd.f32 %v999, 1.0
      %v2281 = vadd.f32 %v1000, 1.0
      %v2282 = vadd.f32 %v1001, 1.0
      %v2283 = vadd.f32 %v1002, 1.0
      %v2284 = vadd.f32 %v1003, 1.0
      %v2285 = vadd.f32 %v1004, 1.0
      %v2286 = vadd.f32 %v1005, 1.0
      %v2287 = vadd.f32 %v1006, 1.0
      %v2288 = vadd.f32 %v1007, 1.0
      %v2289 = vadd.f32 %v1008, 1.0
      %v2290 = vadd.f32 %v1009, 1.0
      %v2291 = vadd.f32 %v1010, 1.0
      %v2292 = vadd.f32 %v1011, 1.0
      %v2293 = vadd.f32 %v1012, 1.0
      %v2294 = vadd.f32 %v1013, 1.0
      %v2295 = vadd.f32 %v1014, 1.0
      %v2296 = vadd.f32 %v1015, 1.0
      %v2297 = vadd.f32 %v1016, 1.0
      %v2298 = vadd.f32 %v1017, 1.0
      %v2299 = vadd.f32 %v1018, 1.0
      %v2300 = vadd.f32 %v1019, 1.0
      %v2301 = vadd.f32 %v1020, 1.0
      %v2302 = vadd.f32 %v1021, 1.0
      %v2303 = vadd.f32 %v1022, 1.0
      %v2304 = vadd.f32 %v1023, 1.0
      %v2305 = vadd.f32 %v1024, 1.0
      %v2306 = vadd.f32 %v1025, 1.0
      %v2307 = vadd.f32 %v1026, 1.0
      %v2308 = vadd.f32 %v1027, 1.0
      %v2309 = vadd.f32 %v1028, 1.0
      %v2310 = vadd.f32 %v1029, 1.0
      %v2311 = vadd.f32 %v1030, 1.0
      %v2312 = vadd.f32 %v1031, 1.0
      %v2313 = vadd.f32 %v1032, 1.0
      %v2314 = vadd.f32 %v1033, 1.0
      %v2315 = vadd.f32 %v1034, 1.0
      %v2316 = vadd.f32 %v1035, 1.0
      %v2317 = vadd.f32 %v1036, 1.0
      %v2318 = vadd.f32 %v1037, 1.0
      %v2319 = vadd.f32 %v1038, 1.0
      %v2320 = vadd.f32 %v1039, 1.0
      %v2321 = vadd.f32 %v1040, 1.0
      %v2322 = vadd.f32 %v1041, 1.0
      %v2323 = vadd.f32 %v1042, 1.0
      %v2324 = vadd.f32 %v1043, 1.0
      %v2325 = vadd.f32 %v1044, 1.0
      %v2326 = vadd.f32 %v1045, 1.0
      %v2327 = vadd.f32 %v1046, 1.0
      %v2328 = vadd.f32 %v1047, 1.0
      %v2329 = vadd.f32 %v1048, 1.0
      %v2330 = vadd.f32 %v1049, 1.0
      %v2331 = vadd.f32 %v1050, 1.0
      %v2332 = vadd.f32 %v1051, 1.0
      %v2333 = vadd.f32 %v1052, 1.0
      %v2334 = vadd.f32 %v1053, 1.0
      %v2335 = vadd.f32 %v1054, 1.0
      %v2336 = vadd.f32 %v1055, 1.0
      %v2337 = vadd.f32 %v1056, 1.0
      %v2338 = vadd.f32 %v1057, 1.0
      %v2339 = vadd.f32 %v1058, 1.0
      %v2340 = vadd.f32 %v1059, 1.0
      %v2341 = vadd.f32 %v1060, 1.0
      %v2342 = vadd.f32 %v1061, 1.0
      %v2343 = vadd.f32 %v1062, 1.0
      %v2344 = vadd.f32 %v1063, 1.0
      %v2345 = vadd.f32 %v1064, 1.0
      %v2346 = vadd.f32 %v1065, 1.0
      %v2347 = vadd.f32 %v1066, 1.0
      %v2348 = vadd.f32 %v1067, 1.0
      %v2349 = vadd.f32 %v1068, 1.0
      %v2350 = vadd.f32 %v1069, 1.0
      %v2351 = vadd.f32 %v1070, 1.0
      %v2352 = vadd.f32 %v1071, 1.0
      %v2353 = vadd.f32 %v1072, 1.0
      %v2354 = vadd.f32 %v1073, 1.0
      %v2355 = vadd.f32 %v1074, 1.0
      %v2356 = vadd.f32 %v1075, 1.0
      %v2357 = vadd.f32 %v1076, 1.0
      %v2358 = vadd.f32 %v1077, 1.0
      %v2359 = vadd.f32 %v1078, 1.0
      %v2360 = vadd.f32 %v1079, 1.0
      %v2361 = vadd.f32 %v1080, 1.0
      %v2362 = vadd.f32 %v1081, 1.0
      %v2363 = vadd.f32 %v1082, 1.0
      %v2364 = vadd.f32 %v1083, 1.0
      %v2365 = vadd.f32 %v1084, 1.0
      %v2366 = vadd.f32 %v1085, 1.0
      %v2367 = vadd.f32 %v1086, 1.0
      %v2368 = vadd.f32 %v1087, 1.0
      %v2369 = vadd.f32 %v1088, 1.0
      %v2370 = vadd.f32 %v1089, 1.0
      %v2371 = vadd.f32 %v1090, 1.0
      %v2372 = vadd.f32 %v1091, 1.0
      %v2373 = vadd.f32 %v1092, 1.0
      %v2374 = vadd.f32 %v1093, 1.0
      %v2375 = vadd.f32 %v1094, 1.0
      %v2376 = vadd.f32 %v1095, 1.0
      %v2377 = vadd.f32 %v1096, 1.0
      %v2378 = vadd.f32 %v1097, 1.0
      %v2379 = vadd.f32 %v1098, 1.0
      %v2380 = vadd.f32 %v1099, 1.0
      %v2381 = vadd.f32 %v1100, 1.0
      %v2382 = vadd.f32 %v1101, 1.0
      %v2383 = vadd.f32 %v1102, 1.0
      %v2384 = vadd.f32 %v1103, 1.0
      %v2385 = vadd.f32 %v1104, 1.0
      %v2386 = vadd.f32 %v1105, 1.0
      %v2387 = vadd.f32 %v1106, 1.0
      %v2388 = vadd.f32 %v1107, 1.0
      %v2389 = vadd.f32 %v1108, 1.0
      %v2390 = vadd.f32 %v1109, 1.0
      %v2391 = vadd.f32 %v1110, 1.0
      %v2392 = vadd.f32 %v1111, 1.0
      %v2393 = vadd.f32 %v1112, 1.0
      %v2394 = vadd.f32 %v1113, 1.0
      %v2395 = vlog2.pop %v2139
      %v2396 = vmul.f32 %v2395, 0.6931472
      %v2397 = vlog2.pop %v2140
      %v2398 = vmul.f32 %v2397, 0.6931472
      %v2399 = vlog2.pop %v2141
      %v2400 = vmul.f32 %v2399, 0.6931472
      %v2401 = vlog2.pop %v2142
      %v2402 = vmul.f32 %v2401, 0.6931472
      %v2403 = vlog2.pop %v2143
      %v2404 = vmul.f32 %v2403, 0.6931472
      %v2405 = vlog2.pop %v2144
      %v2406 = vmul.f32 %v2405, 0.6931472
      %v2407 = vlog2.pop %v2145
      %v2408 = vmul.f32 %v2407, 0.6931472
      %v2409 = vlog2.pop %v2146
      %v2410 = vmul.f32 %v2409, 0.6931472
      %v2411 = vlog2.pop %v2147
      %v2412 = vmul.f32 %v2411, 0.6931472
      %v2413 = vlog2.pop %v2148
      %v2414 = vmul.f32 %v2413, 0.6931472
      %v2415 = vlog2.pop %v2149
      %v2416 = vmul.f32 %v2415, 0.6931472
      %v2417 = vlog2.pop %v2150
      %v2418 = vmul.f32 %v2417, 0.6931472
      %v2419 = vlog2.pop %v2151
      %v2420 = vmul.f32 %v2419, 0.6931472
      %v2421 = vlog2.pop %v2152
      %v2422 = vmul.f32 %v2421, 0.6931472
      %v2423 = vlog2.pop %v2153
      %v2424 = vmul.f32 %v2423, 0.6931472
      %v2425 = vlog2.pop %v2154
      %v2426 = vmul.f32 %v2425, 0.6931472
      %v2427 = vlog2.pop %v2155
      %v2428 = vmul.f32 %v2427, 0.6931472
      %v2429 = vlog2.pop %v2156
      %v2430 = vmul.f32 %v2429, 0.6931472
      %v2431 = vlog2.pop %v2157
      %v2432 = vmul.f32 %v2431, 0.6931472
      %v2433 = vlog2.pop %v2158
      %v2434 = vmul.f32 %v2433, 0.6931472
      %v2435 = vlog2.pop %v2159
      %v2436 = vmul.f32 %v2435, 0.6931472
      %v2437 = vlog2.pop %v2160
      %v2438 = vmul.f32 %v2437, 0.6931472
      %v2439 = vlog2.pop %v2161
      %v2440 = vmul.f32 %v2439, 0.6931472
      %v2441 = vlog2.pop %v2162
      %v2442 = vmul.f32 %v2441, 0.6931472
      %v2443 = vlog2.pop %v2163
      %v2444 = vmul.f32 %v2443, 0.6931472
      %v2445 = vlog2.pop %v2164
      %v2446 = vmul.f32 %v2445, 0.6931472
      %v2447 = vlog2.pop %v2165
      %v2448 = vmul.f32 %v2447, 0.6931472
      %v2449 = vlog2.pop %v2166
      %v2450 = vmul.f32 %v2449, 0.6931472
      %v2451 = vlog2.pop %v2167
      %v2452 = vmul.f32 %v2451, 0.6931472
      %v2453 = vlog2.pop %v2168
      %v2454 = vmul.f32 %v2453, 0.6931472
      %v2455 = vlog2.pop %v2169
      %v2456 = vmul.f32 %v2455, 0.6931472
      %v2457 = vlog2.pop %v2170
      %v2458 = vmul.f32 %v2457, 0.6931472
      %v2459 = vlog2.pop %v2171
      %v2460 = vmul.f32 %v2459, 0.6931472
      %v2461 = vlog2.pop %v2172
      %v2462 = vmul.f32 %v2461, 0.6931472
      %v2463 = vlog2.pop %v2173
      %v2464 = vmul.f32 %v2463, 0.6931472
      %v2465 = vlog2.pop %v2174
      %v2466 = vmul.f32 %v2465, 0.6931472
      %v2467 = vlog2.pop %v2175
      %v2468 = vmul.f32 %v2467, 0.6931472
      %v2469 = vlog2.pop %v2176
      %v2470 = vmul.f32 %v2469, 0.6931472
      %v2471 = vlog2.pop %v2177
      %v2472 = vmul.f32 %v2471, 0.6931472
      %v2473 = vlog2.pop %v2178
      %v2474 = vmul.f32 %v2473, 0.6931472
      %v2475 = vlog2.pop %v2179
      %v2476 = vmul.f32 %v2475, 0.6931472
      %v2477 = vlog2.pop %v2180
      %v2478 = vmul.f32 %v2477, 0.6931472
      %v2479 = vlog2.pop %v2181
      %v2480 = vmul.f32 %v2479, 0.6931472
      %v2481 = vlog2.pop %v2182
      %v2482 = vmul.f32 %v2481, 0.6931472
      %v2483 = vlog2.pop %v2183
      %v2484 = vmul.f32 %v2483, 0.6931472
      %v2485 = vlog2.pop %v2184
      %v2486 = vmul.f32 %v2485, 0.6931472
      %v2487 = vlog2.pop %v2185
      %v2488 = vmul.f32 %v2487, 0.6931472
      %v2489 = vlog2.pop %v2186
      %v2490 = vmul.f32 %v2489, 0.6931472
      %v2491 = vlog2.pop %v2187
      %v2492 = vmul.f32 %v2491, 0.6931472
      %v2493 = vlog2.pop %v2188
      %v2494 = vmul.f32 %v2493, 0.6931472
      %v2495 = vlog2.pop %v2189
      %v2496 = vmul.f32 %v2495, 0.6931472
      %v2497 = vlog2.pop %v2190
      %v2498 = vmul.f32 %v2497, 0.6931472
      %v2499 = vlog2.pop %v2191
      %v2500 = vmul.f32 %v2499, 0.6931472
      %v2501 = vlog2.pop %v2192
      %v2502 = vmul.f32 %v2501, 0.6931472
      %v2503 = vlog2.pop %v2193
      %v2504 = vmul.f32 %v2503, 0.6931472
      %v2505 = vlog2.pop %v2194
      %v2506 = vmul.f32 %v2505, 0.6931472
      %v2507 = vlog2.pop %v2195
      %v2508 = vmul.f32 %v2507, 0.6931472
      %v2509 = vlog2.pop %v2196
      %v2510 = vmul.f32 %v2509, 0.6931472
      %v2511 = vlog2.pop %v2197
      %v2512 = vmul.f32 %v2511, 0.6931472
      %v2513 = vlog2.pop %v2198
      %v2514 = vmul.f32 %v2513, 0.6931472
      %v2515 = vlog2.pop %v2199
      %v2516 = vmul.f32 %v2515, 0.6931472
      %v2517 = vlog2.pop %v2200
      %v2518 = vmul.f32 %v2517, 0.6931472
      %v2519 = vlog2.pop %v2201
      %v2520 = vmul.f32 %v2519, 0.6931472
      %v2521 = vlog2.pop %v2202
      %v2522 = vmul.f32 %v2521, 0.6931472
      %v2523 = vlog2.pop %v2203
      %v2524 = vmul.f32 %v2523, 0.6931472
      %v2525 = vlog2.pop %v2204
      %v2526 = vmul.f32 %v2525, 0.6931472
      %v2527 = vlog2.pop %v2205
      %v2528 = vmul.f32 %v2527, 0.6931472
      %v2529 = vlog2.pop %v2206
      %v2530 = vmul.f32 %v2529, 0.6931472
      %v2531 = vlog2.pop %v2207
      %v2532 = vmul.f32 %v2531, 0.6931472
      %v2533 = vlog2.pop %v2208
      %v2534 = vmul.f32 %v2533, 0.6931472
      %v2535 = vlog2.pop %v2209
      %v2536 = vmul.f32 %v2535, 0.6931472
      %v2537 = vlog2.pop %v2210
      %v2538 = vmul.f32 %v2537, 0.6931472
      %v2539 = vlog2.pop %v2211
      %v2540 = vmul.f32 %v2539, 0.6931472
      %v2541 = vlog2.pop %v2212
      %v2542 = vmul.f32 %v2541, 0.6931472
      %v2543 = vlog2.pop %v2213
      %v2544 = vmul.f32 %v2543, 0.6931472
      %v2545 = vlog2.pop %v2214
      %v2546 = vmul.f32 %v2545, 0.6931472
      %v2547 = vlog2.pop %v2215
      %v2548 = vmul.f32 %v2547, 0.6931472
      %v2549 = vlog2.pop %v2216
      %v2550 = vmul.f32 %v2549, 0.6931472
      %v2551 = vlog2.pop %v2217
      %v2552 = vmul.f32 %v2551, 0.6931472
      %v2553 = vlog2.pop %v2218
      %v2554 = vmul.f32 %v2553, 0.6931472
      %v2555 = vlog2.pop %v2219
      %v2556 = vmul.f32 %v2555, 0.6931472
      %v2557 = vlog2.pop %v2220
      %v2558 = vmul.f32 %v2557, 0.6931472
      %v2559 = vlog2.pop %v2221
      %v2560 = vmul.f32 %v2559, 0.6931472
      %v2561 = vlog2.pop %v2222
      %v2562 = vmul.f32 %v2561, 0.6931472
      %v2563 = vlog2.pop %v2223
      %v2564 = vmul.f32 %v2563, 0.6931472
      %v2565 = vlog2.pop %v2224
      %v2566 = vmul.f32 %v2565, 0.6931472
      %v2567 = vlog2.pop %v2225
      %v2568 = vmul.f32 %v2567, 0.6931472
      %v2569 = vlog2.pop %v2226
      %v2570 = vmul.f32 %v2569, 0.6931472
      %v2571 = vlog2.pop %v2227
      %v2572 = vmul.f32 %v2571, 0.6931472
      %v2573 = vlog2.pop %v2228
      %v2574 = vmul.f32 %v2573, 0.6931472
      %v2575 = vlog2.pop %v2229
      %v2576 = vmul.f32 %v2575, 0.6931472
      %v2577 = vlog2.pop %v2230
      %v2578 = vmul.f32 %v2577, 0.6931472
      %v2579 = vlog2.pop %v2231
      %v2580 = vmul.f32 %v2579, 0.6931472
      %v2581 = vlog2.pop %v2232
      %v2582 = vmul.f32 %v2581, 0.6931472
      %v2583 = vlog2.pop %v2233
      %v2584 = vmul.f32 %v2583, 0.6931472
      %v2585 = vlog2.pop %v2234
      %v2586 = vmul.f32 %v2585, 0.6931472
      %v2587 = vlog2.pop %v2235
      %v2588 = vmul.f32 %v2587, 0.6931472
      %v2589 = vlog2.pop %v2236
      %v2590 = vmul.f32 %v2589, 0.6931472
      %v2591 = vlog2.pop %v2237
      %v2592 = vmul.f32 %v2591, 0.6931472
      %v2593 = vlog2.pop %v2238
      %v2594 = vmul.f32 %v2593, 0.6931472
      %v2595 = vlog2.pop %v2239
      %v2596 = vmul.f32 %v2595, 0.6931472
      %v2597 = vlog2.pop %v2240
      %v2598 = vmul.f32 %v2597, 0.6931472
      %v2599 = vlog2.pop %v2241
      %v2600 = vmul.f32 %v2599, 0.6931472
      %v2601 = vlog2.pop %v2242
      %v2602 = vmul.f32 %v2601, 0.6931472
      %v2603 = vlog2.pop %v2243
      %v2604 = vmul.f32 %v2603, 0.6931472
      %v2605 = vlog2.pop %v2244
      %v2606 = vmul.f32 %v2605, 0.6931472
      %v2607 = vlog2.pop %v2245
      %v2608 = vmul.f32 %v2607, 0.6931472
      %v2609 = vlog2.pop %v2246
      %v2610 = vmul.f32 %v2609, 0.6931472
      %v2611 = vlog2.pop %v2247
      %v2612 = vmul.f32 %v2611, 0.6931472
      %v2613 = vlog2.pop %v2248
      %v2614 = vmul.f32 %v2613, 0.6931472
      %v2615 = vlog2.pop %v2249
      %v2616 = vmul.f32 %v2615, 0.6931472
      %v2617 = vlog2.pop %v2250
      %v2618 = vmul.f32 %v2617, 0.6931472
      %v2619 = vlog2.pop %v2251
      %v2620 = vmul.f32 %v2619, 0.6931472
      %v2621 = vlog2.pop %v2252
      %v2622 = vmul.f32 %v2621, 0.6931472
      %v2623 = vlog2.pop %v2253
      %v2624 = vmul.f32 %v2623, 0.6931472
      %v2625 = vlog2.pop %v2254
      %v2626 = vmul.f32 %v2625, 0.6931472
      %v2627 = vlog2.pop %v2255
      %v2628 = vmul.f32 %v2627, 0.6931472
      %v2629 = vlog2.pop %v2256
      %v2630 = vmul.f32 %v2629, 0.6931472
      %v2631 = vlog2.pop %v2257
      %v2632 = vmul.f32 %v2631, 0.6931472
      %v2633 = vlog2.pop %v2258
      %v2634 = vmul.f32 %v2633, 0.6931472
      %v2635 = vlog2.pop %v2259
      %v2636 = vmul.f32 %v2635, 0.6931472
      %v2637 = vlog2.pop %v2260
      %v2638 = vmul.f32 %v2637, 0.6931472
      %v2639 = vlog2.pop %v2261
      %v2640 = vmul.f32 %v2639, 0.6931472
      %v2641 = vlog2.pop %v2262
      %v2642 = vmul.f32 %v2641, 0.6931472
      %v2643 = vlog2.pop %v2263
      %v2644 = vmul.f32 %v2643, 0.6931472
      %v2645 = vlog2.pop %v2264
      %v2646 = vmul.f32 %v2645, 0.6931472
      %v2647 = vlog2.pop %v2265
      %v2648 = vmul.f32 %v2647, 0.6931472
      %v2649 = vlog2.pop %v2266
      %v2650 = vmul.f32 %v2649, 0.6931472
      %v2651 = vlog2.pop %v2267
      %v2652 = vmul.f32 %v2651, 0.6931472
      %v2653 = vlog2.pop %v2268
      %v2654 = vmul.f32 %v2653, 0.6931472
      %v2655 = vlog2.pop %v2269
      %v2656 = vmul.f32 %v2655, 0.6931472
      %v2657 = vlog2.pop %v2270
      %v2658 = vmul.f32 %v2657, 0.6931472
      %v2659 = vlog2.pop %v2271
      %v2660 = vmul.f32 %v2659, 0.6931472
      %v2661 = vlog2.pop %v2272
      %v2662 = vmul.f32 %v2661, 0.6931472
      %v2663 = vlog2.pop %v2273
      %v2664 = vmul.f32 %v2663, 0.6931472
      %v2665 = vlog2.pop %v2274
      %v2666 = vmul.f32 %v2665, 0.6931472
      %v2667 = vlog2.pop %v2275
      %v2668 = vmul.f32 %v2667, 0.6931472
      %v2669 = vlog2.pop %v2276
      %v2670 = vmul.f32 %v2669, 0.6931472
      %v2671 = vlog2.pop %v2277
      %v2672 = vmul.f32 %v2671, 0.6931472
      %v2673 = vlog2.pop %v2278
      %v2674 = vmul.f32 %v2673, 0.6931472
      %v2675 = vlog2.pop %v2279
      %v2676 = vmul.f32 %v2675, 0.6931472
      %v2677 = vlog2.pop %v2280
      %v2678 = vmul.f32 %v2677, 0.6931472
      %v2679 = vlog2.pop %v2281
      %v2680 = vmul.f32 %v2679, 0.6931472
      %v2681 = vlog2.pop %v2282
      %v2682 = vmul.f32 %v2681, 0.6931472
      %v2683 = vlog2.pop %v2283
      %v2684 = vmul.f32 %v2683, 0.6931472
      %v2685 = vlog2.pop %v2284
      %v2686 = vmul.f32 %v2685, 0.6931472
      %v2687 = vlog2.pop %v2285
      %v2688 = vmul.f32 %v2687, 0.6931472
      %v2689 = vlog2.pop %v2286
      %v2690 = vmul.f32 %v2689, 0.6931472
      %v2691 = vlog2.pop %v2287
      %v2692 = vmul.f32 %v2691, 0.6931472
      %v2693 = vlog2.pop %v2288
      %v2694 = vmul.f32 %v2693, 0.6931472
      %v2695 = vlog2.pop %v2289
      %v2696 = vmul.f32 %v2695, 0.6931472
      %v2697 = vlog2.pop %v2290
      %v2698 = vmul.f32 %v2697, 0.6931472
      %v2699 = vlog2.pop %v2291
      %v2700 = vmul.f32 %v2699, 0.6931472
      %v2701 = vlog2.pop %v2292
      %v2702 = vmul.f32 %v2701, 0.6931472
      %v2703 = vlog2.pop %v2293
      %v2704 = vmul.f32 %v2703, 0.6931472
      %v2705 = vlog2.pop %v2294
      %v2706 = vmul.f32 %v2705, 0.6931472
      %v2707 = vlog2.pop %v2295
      %v2708 = vmul.f32 %v2707, 0.6931472
      %v2709 = vlog2.pop %v2296
      %v2710 = vmul.f32 %v2709, 0.6931472
      %v2711 = vlog2.pop %v2297
      %v2712 = vmul.f32 %v2711, 0.6931472
      %v2713 = vlog2.pop %v2298
      %v2714 = vmul.f32 %v2713, 0.6931472
      %v2715 = vlog2.pop %v2299
      %v2716 = vmul.f32 %v2715, 0.6931472
      %v2717 = vlog2.pop %v2300
      %v2718 = vmul.f32 %v2717, 0.6931472
      %v2719 = vlog2.pop %v2301
      %v2720 = vmul.f32 %v2719, 0.6931472
      %v2721 = vlog2.pop %v2302
      %v2722 = vmul.f32 %v2721, 0.6931472
      %v2723 = vlog2.pop %v2303
      %v2724 = vmul.f32 %v2723, 0.6931472
      %v2725 = vlog2.pop %v2304
      %v2726 = vmul.f32 %v2725, 0.6931472
      %v2727 = vlog2.pop %v2305
      %v2728 = vmul.f32 %v2727, 0.6931472
      %v2729 = vlog2.pop %v2306
      %v2730 = vmul.f32 %v2729, 0.6931472
      %v2731 = vlog2.pop %v2307
      %v2732 = vmul.f32 %v2731, 0.6931472
      %v2733 = vlog2.pop %v2308
      %v2734 = vmul.f32 %v2733, 0.6931472
      %v2735 = vlog2.pop %v2309
      %v2736 = vmul.f32 %v2735, 0.6931472
      %v2737 = vlog2.pop %v2310
      %v2738 = vmul.f32 %v2737, 0.6931472
      %v2739 = vlog2.pop %v2311
      %v2740 = vmul.f32 %v2739, 0.6931472
      %v2741 = vlog2.pop %v2312
      %v2742 = vmul.f32 %v2741, 0.6931472
      %v2743 = vlog2.pop %v2313
      %v2744 = vmul.f32 %v2743, 0.6931472
      %v2745 = vlog2.pop %v2314
      %v2746 = vmul.f32 %v2745, 0.6931472
      %v2747 = vlog2.pop %v2315
      %v2748 = vmul.f32 %v2747, 0.6931472
      %v2749 = vlog2.pop %v2316
      %v2750 = vmul.f32 %v2749, 0.6931472
      %v2751 = vlog2.pop %v2317
      %v2752 = vmul.f32 %v2751, 0.6931472
      %v2753 = vlog2.pop %v2318
      %v2754 = vmul.f32 %v2753, 0.6931472
      %v2755 = vlog2.pop %v2319
      %v2756 = vmul.f32 %v2755, 0.6931472
      %v2757 = vlog2.pop %v2320
      %v2758 = vmul.f32 %v2757, 0.6931472
      %v2759 = vlog2.pop %v2321
      %v2760 = vmul.f32 %v2759, 0.6931472
      %v2761 = vlog2.pop %v2322
      %v2762 = vmul.f32 %v2761, 0.6931472
      %v2763 = vlog2.pop %v2323
      %v2764 = vmul.f32 %v2763, 0.6931472
      %v2765 = vlog2.pop %v2324
      %v2766 = vmul.f32 %v2765, 0.6931472
      %v2767 = vlog2.pop %v2325
      %v2768 = vmul.f32 %v2767, 0.6931472
      %v2769 = vlog2.pop %v2326
      %v2770 = vmul.f32 %v2769, 0.6931472
      %v2771 = vlog2.pop %v2327
      %v2772 = vmul.f32 %v2771, 0.6931472
      %v2773 = vlog2.pop %v2328
      %v2774 = vmul.f32 %v2773, 0.6931472
      %v2775 = vlog2.pop %v2329
      %v2776 = vmul.f32 %v2775, 0.6931472
      %v2777 = vlog2.pop %v2330
      %v2778 = vmul.f32 %v2777, 0.6931472
      %v2779 = vlog2.pop %v2331
      %v2780 = vmul.f32 %v2779, 0.6931472
      %v2781 = vlog2.pop %v2332
      %v2782 = vmul.f32 %v2781, 0.6931472
      %v2783 = vlog2.pop %v2333
      %v2784 = vmul.f32 %v2783, 0.6931472
      %v2785 = vlog2.pop %v2334
      %v2786 = vmul.f32 %v2785, 0.6931472
      %v2787 = vlog2.pop %v2335
      %v2788 = vmul.f32 %v2787, 0.6931472
      %v2789 = vlog2.pop %v2336
      %v2790 = vmul.f32 %v2789, 0.6931472
      %v2791 = vlog2.pop %v2337
      %v2792 = vmul.f32 %v2791, 0.6931472
      %v2793 = vlog2.pop %v2338
      %v2794 = vmul.f32 %v2793, 0.6931472
      %v2795 = vlog2.pop %v2339
      %v2796 = vmul.f32 %v2795, 0.6931472
      %v2797 = vlog2.pop %v2340
      %v2798 = vmul.f32 %v2797, 0.6931472
      %v2799 = vlog2.pop %v2341
      %v2800 = vmul.f32 %v2799, 0.6931472
      %v2801 = vlog2.pop %v2342
      %v2802 = vmul.f32 %v2801, 0.6931472
      %v2803 = vlog2.pop %v2343
      %v2804 = vmul.f32 %v2803, 0.6931472
      %v2805 = vlog2.pop %v2344
      %v2806 = vmul.f32 %v2805, 0.6931472
      %v2807 = vlog2.pop %v2345
      %v2808 = vmul.f32 %v2807, 0.6931472
      %v2809 = vlog2.pop %v2346
      %v2810 = vmul.f32 %v2809, 0.6931472
      %v2811 = vlog2.pop %v2347
      %v2812 = vmul.f32 %v2811, 0.6931472
      %v2813 = vlog2.pop %v2348
      %v2814 = vmul.f32 %v2813, 0.6931472
      %v2815 = vlog2.pop %v2349
      %v2816 = vmul.f32 %v2815, 0.6931472
      %v2817 = vlog2.pop %v2350
      %v2818 = vmul.f32 %v2817, 0.6931472
      %v2819 = vlog2.pop %v2351
      %v2820 = vmul.f32 %v2819, 0.6931472
      %v2821 = vlog2.pop %v2352
      %v2822 = vmul.f32 %v2821, 0.6931472
      %v2823 = vlog2.pop %v2353
      %v2824 = vmul.f32 %v2823, 0.6931472
      %v2825 = vlog2.pop %v2354
      %v2826 = vmul.f32 %v2825, 0.6931472
      %v2827 = vlog2.pop %v2355
      %v2828 = vmul.f32 %v2827, 0.6931472
      %v2829 = vlog2.pop %v2356
      %v2830 = vmul.f32 %v2829, 0.6931472
      %v2831 = vlog2.pop %v2357
      %v2832 = vmul.f32 %v2831, 0.6931472
      %v2833 = vlog2.pop %v2358
      %v2834 = vmul.f32 %v2833, 0.6931472
      %v2835 = vlog2.pop %v2359
      %v2836 = vmul.f32 %v2835, 0.6931472
      %v2837 = vlog2.pop %v2360
      %v2838 = vmul.f32 %v2837, 0.6931472
      %v2839 = vlog2.pop %v2361
      %v2840 = vmul.f32 %v2839, 0.6931472
      %v2841 = vlog2.pop %v2362
      %v2842 = vmul.f32 %v2841, 0.6931472
      %v2843 = vlog2.pop %v2363
      %v2844 = vmul.f32 %v2843, 0.6931472
      %v2845 = vlog2.pop %v2364
      %v2846 = vmul.f32 %v2845, 0.6931472
      %v2847 = vlog2.pop %v2365
      %v2848 = vmul.f32 %v2847, 0.6931472
      %v2849 = vlog2.pop %v2366
      %v2850 = vmul.f32 %v2849, 0.6931472
      %v2851 = vlog2.pop %v2367
      %v2852 = vmul.f32 %v2851, 0.6931472
      %v2853 = vlog2.pop %v2368
      %v2854 = vmul.f32 %v2853, 0.6931472
      %v2855 = vlog2.pop %v2369
      %v2856 = vmul.f32 %v2855, 0.6931472
      %v2857 = vlog2.pop %v2370
      %v2858 = vmul.f32 %v2857, 0.6931472
      %v2859 = vlog2.pop %v2371
      %v2860 = vmul.f32 %v2859, 0.6931472
      %v2861 = vlog2.pop %v2372
      %v2862 = vmul.f32 %v2861, 0.6931472
      %v2863 = vlog2.pop %v2373
      %v2864 = vmul.f32 %v2863, 0.6931472
      %v2865 = vlog2.pop %v2374
      %v2866 = vmul.f32 %v2865, 0.6931472
      %v2867 = vlog2.pop %v2375
      %v2868 = vmul.f32 %v2867, 0.6931472
      %v2869 = vlog2.pop %v2376
      %v2870 = vmul.f32 %v2869, 0.6931472
      %v2871 = vlog2.pop %v2377
      %v2872 = vmul.f32 %v2871, 0.6931472
      %v2873 = vlog2.pop %v2378
      %v2874 = vmul.f32 %v2873, 0.6931472
      %v2875 = vlog2.pop %v2379
      %v2876 = vmul.f32 %v2875, 0.6931472
      %v2877 = vlog2.pop %v2380
      %v2878 = vmul.f32 %v2877, 0.6931472
      %v2879 = vlog2.pop %v2381
      %v2880 = vmul.f32 %v2879, 0.6931472
      %v2881 = vlog2.pop %v2382
      %v2882 = vmul.f32 %v2881, 0.6931472
      %v2883 = vlog2.pop %v2383
      %v2884 = vmul.f32 %v2883, 0.6931472
      %v2885 = vlog2.pop %v2384
      %v2886 = vmul.f32 %v2885, 0.6931472
      %v2887 = vlog2.pop %v2385
      %v2888 = vmul.f32 %v2887, 0.6931472
      %v2889 = vlog2.pop %v2386
      %v2890 = vmul.f32 %v2889, 0.6931472
      %v2891 = vlog2.pop %v2387
      %v2892 = vmul.f32 %v2891, 0.6931472
      %v2893 = vlog2.pop %v2388
      %v2894 = vmul.f32 %v2893, 0.6931472
      %v2895 = vlog2.pop %v2389
      %v2896 = vmul.f32 %v2895, 0.6931472
      %v2897 = vlog2.pop %v2390
      %v2898 = vmul.f32 %v2897, 0.6931472
      %v2899 = vlog2.pop %v2391
      %v2900 = vmul.f32 %v2899, 0.6931472
      %v2901 = vlog2.pop %v2392
      %v2902 = vmul.f32 %v2901, 0.6931472
      %v2903 = vlog2.pop %v2393
      %v2904 = vmul.f32 %v2903, 0.6931472
      %v2905 = vlog2.pop %v2394
      %v2906 = vmul.f32 %v2905, 0.6931472
      %v2907 = vmul.f32 %v2396, %v1882
      %v2908 = vmul.f32 %v2398, %v1882
      %v2909 = vmul.f32 %v2400, %v1882
      %v2910 = vmul.f32 %v2402, %v1882
      %v2911 = vmul.f32 %v2404, %v1882
      %v2912 = vmul.f32 %v2406, %v1882
      %v2913 = vmul.f32 %v2408, %v1882
      %v2914 = vmul.f32 %v2410, %v1882
      %v2915 = vmul.f32 %v2412, %v1882
      %v2916 = vmul.f32 %v2414, %v1882
      %v2917 = vmul.f32 %v2416, %v1882
      %v2918 = vmul.f32 %v2418, %v1882
      %v2919 = vmul.f32 %v2420, %v1882
      %v2920 = vmul.f32 %v2422, %v1882
      %v2921 = vmul.f32 %v2424, %v1882
      %v2922 = vmul.f32 %v2426, %v1882
      %v2923 = vmul.f32 %v2428, %v1882
      %v2924 = vmul.f32 %v2430, %v1882
      %v2925 = vmul.f32 %v2432, %v1882
      %v2926 = vmul.f32 %v2434, %v1882
      %v2927 = vmul.f32 %v2436, %v1882
      %v2928 = vmul.f32 %v2438, %v1882
      %v2929 = vmul.f32 %v2440, %v1882
      %v2930 = vmul.f32 %v2442, %v1882
      %v2931 = vmul.f32 %v2444, %v1882
      %v2932 = vmul.f32 %v2446, %v1882
      %v2933 = vmul.f32 %v2448, %v1882
      %v2934 = vmul.f32 %v2450, %v1882
      %v2935 = vmul.f32 %v2452, %v1882
      %v2936 = vmul.f32 %v2454, %v1882
      %v2937 = vmul.f32 %v2456, %v1882
      %v2938 = vmul.f32 %v2458, %v1882
      %v2939 = vmul.f32 %v2460, %v1882
      %v2940 = vmul.f32 %v2462, %v1882
      %v2941 = vmul.f32 %v2464, %v1882
      %v2942 = vmul.f32 %v2466, %v1882
      %v2943 = vmul.f32 %v2468, %v1882
      %v2944 = vmul.f32 %v2470, %v1882
      %v2945 = vmul.f32 %v2472, %v1882
      %v2946 = vmul.f32 %v2474, %v1882
      %v2947 = vmul.f32 %v2476, %v1882
      %v2948 = vmul.f32 %v2478, %v1882
      %v2949 = vmul.f32 %v2480, %v1882
      %v2950 = vmul.f32 %v2482, %v1882
      %v2951 = vmul.f32 %v2484, %v1882
      %v2952 = vmul.f32 %v2486, %v1882
      %v2953 = vmul.f32 %v2488, %v1882
      %v2954 = vmul.f32 %v2490, %v1882
      %v2955 = vmul.f32 %v2492, %v1882
      %v2956 = vmul.f32 %v2494, %v1882
      %v2957 = vmul.f32 %v2496, %v1882
      %v2958 = vmul.f32 %v2498, %v1882
      %v2959 = vmul.f32 %v2500, %v1882
      %v2960 = vmul.f32 %v2502, %v1882
      %v2961 = vmul.f32 %v2504, %v1882
      %v2962 = vmul.f32 %v2506, %v1882
      %v2963 = vmul.f32 %v2508, %v1882
      %v2964 = vmul.f32 %v2510, %v1882
      %v2965 = vmul.f32 %v2512, %v1882
      %v2966 = vmul.f32 %v2514, %v1882
      %v2967 = vmul.f32 %v2516, %v1882
      %v2968 = vmul.f32 %v2518, %v1882
      %v2969 = vmul.f32 %v2520, %v1882
      %v2970 = vmul.f32 %v2522, %v1882
      %v2971 = vmul.f32 %v2524, %v1882
      %v2972 = vmul.f32 %v2526, %v1882
      %v2973 = vmul.f32 %v2528, %v1882
      %v2974 = vmul.f32 %v2530, %v1882
      %v2975 = vmul.f32 %v2532, %v1882
      %v2976 = vmul.f32 %v2534, %v1882
      %v2977 = vmul.f32 %v2536, %v1882
      %v2978 = vmul.f32 %v2538, %v1882
      %v2979 = vmul.f32 %v2540, %v1882
      %v2980 = vmul.f32 %v2542, %v1882
      %v2981 = vmul.f32 %v2544, %v1882
      %v2982 = vmul.f32 %v2546, %v1882
      %v2983 = vmul.f32 %v2548, %v1882
      %v2984 = vmul.f32 %v2550, %v1882
      %v2985 = vmul.f32 %v2552, %v1882
      %v2986 = vmul.f32 %v2554, %v1882
      %v2987 = vmul.f32 %v2556, %v1882
      %v2988 = vmul.f32 %v2558, %v1882
      %v2989 = vmul.f32 %v2560, %v1882
      %v2990 = vmul.f32 %v2562, %v1882
      %v2991 = vmul.f32 %v2564, %v1882
      %v2992 = vmul.f32 %v2566, %v1882
      %v2993 = vmul.f32 %v2568, %v1882
      %v2994 = vmul.f32 %v2570, %v1882
      %v2995 = vmul.f32 %v2572, %v1882
      %v2996 = vmul.f32 %v2574, %v1882
      %v2997 = vmul.f32 %v2576, %v1882
      %v2998 = vmul.f32 %v2578, %v1882
      %v2999 = vmul.f32 %v2580, %v1882
      %v3000 = vmul.f32 %v2582, %v1882
      %v3001 = vmul.f32 %v2584, %v1882
      %v3002 = vmul.f32 %v2586, %v1882
      %v3003 = vmul.f32 %v2588, %v1882
      %v3004 = vmul.f32 %v2590, %v1882
      %v3005 = vmul.f32 %v2592, %v1882
      %v3006 = vmul.f32 %v2594, %v1882
      %v3007 = vmul.f32 %v2596, %v1882
      %v3008 = vmul.f32 %v2598, %v1882
      %v3009 = vmul.f32 %v2600, %v1882
      %v3010 = vmul.f32 %v2602, %v1882
      %v3011 = vmul.f32 %v2604, %v1882
      %v3012 = vmul.f32 %v2606, %v1882
      %v3013 = vmul.f32 %v2608, %v1882
      %v3014 = vmul.f32 %v2610, %v1882
      %v3015 = vmul.f32 %v2612, %v1882
      %v3016 = vmul.f32 %v2614, %v1882
      %v3017 = vmul.f32 %v2616, %v1882
      %v3018 = vmul.f32 %v2618, %v1882
      %v3019 = vmul.f32 %v2620, %v1882
      %v3020 = vmul.f32 %v2622, %v1882
      %v3021 = vmul.f32 %v2624, %v1882
      %v3022 = vmul.f32 %v2626, %v1882
      %v3023 = vmul.f32 %v2628, %v1882
      %v3024 = vmul.f32 %v2630, %v1882
      %v3025 = vmul.f32 %v2632, %v1882
      %v3026 = vmul.f32 %v2634, %v1882
      %v3027 = vmul.f32 %v2636, %v1882
      %v3028 = vmul.f32 %v2638, %v1882
      %v3029 = vmul.f32 %v2640, %v1882
      %v3030 = vmul.f32 %v2642, %v1882
      %v3031 = vmul.f32 %v2644, %v1882
      %v3032 = vmul.f32 %v2646, %v1882
      %v3033 = vmul.f32 %v2648, %v1882
      %v3034 = vmul.f32 %v2650, %v1882
      %v3035 = vmul.f32 %v2652, %v1882
      %v3036 = vmul.f32 %v2654, %v1882
      %v3037 = vmul.f32 %v2656, %v1882
      %v3038 = vmul.f32 %v2658, %v1882
      %v3039 = vmul.f32 %v2660, %v1882
      %v3040 = vmul.f32 %v2662, %v1882
      %v3041 = vmul.f32 %v2664, %v1882
      %v3042 = vmul.f32 %v2666, %v1882
      %v3043 = vmul.f32 %v2668, %v1882
      %v3044 = vmul.f32 %v2670, %v1882
      %v3045 = vmul.f32 %v2672, %v1882
      %v3046 = vmul.f32 %v2674, %v1882
      %v3047 = vmul.f32 %v2676, %v1882
      %v3048 = vmul.f32 %v2678, %v1882
      %v3049 = vmul.f32 %v2680, %v1882
      %v3050 = vmul.f32 %v2682, %v1882
      %v3051 = vmul.f32 %v2684, %v1882
      %v3052 = vmul.f32 %v2686, %v1882
      %v3053 = vmul.f32 %v2688, %v1882
      %v3054 = vmul.f32 %v2690, %v1882
      %v3055 = vmul.f32 %v2692, %v1882
      %v3056 = vmul.f32 %v2694, %v1882
      %v3057 = vmul.f32 %v2696, %v1882
      %v3058 = vmul.f32 %v2698, %v1882
      %v3059 = vmul.f32 %v2700, %v1882
      %v3060 = vmul.f32 %v2702, %v1882
      %v3061 = vmul.f32 %v2704, %v1882
      %v3062 = vmul.f32 %v2706, %v1882
      %v3063 = vmul.f32 %v2708, %v1882
      %v3064 = vmul.f32 %v2710, %v1882
      %v3065 = vmul.f32 %v2712, %v1882
      %v3066 = vmul.f32 %v2714, %v1882
      %v3067 = vmul.f32 %v2716, %v1882
      %v3068 = vmul.f32 %v2718, %v1882
      %v3069 = vmul.f32 %v2720, %v1882
      %v3070 = vmul.f32 %v2722, %v1882
      %v3071 = vmul.f32 %v2724, %v1882
      %v3072 = vmul.f32 %v2726, %v1882
      %v3073 = vmul.f32 %v2728, %v1882
      %v3074 = vmul.f32 %v2730, %v1882
      %v3075 = vmul.f32 %v2732, %v1882
      %v3076 = vmul.f32 %v2734, %v1882
      %v3077 = vmul.f32 %v2736, %v1882
      %v3078 = vmul.f32 %v2738, %v1882
      %v3079 = vmul.f32 %v2740, %v1882
      %v3080 = vmul.f32 %v2742, %v1882
      %v3081 = vmul.f32 %v2744, %v1882
      %v3082 = vmul.f32 %v2746, %v1882
      %v3083 = vmul.f32 %v2748, %v1882
      %v3084 = vmul.f32 %v2750, %v1882
      %v3085 = vmul.f32 %v2752, %v1882
      %v3086 = vmul.f32 %v2754, %v1882
      %v3087 = vmul.f32 %v2756, %v1882
      %v3088 = vmul.f32 %v2758, %v1882
      %v3089 = vmul.f32 %v2760, %v1882
      %v3090 = vmul.f32 %v2762, %v1882
      %v3091 = vmul.f32 %v2764, %v1882
      %v3092 = vmul.f32 %v2766, %v1882
      %v3093 = vmul.f32 %v2768, %v1882
      %v3094 = vmul.f32 %v2770, %v1882
      %v3095 = vmul.f32 %v2772, %v1882
      %v3096 = vmul.f32 %v2774, %v1882
      %v3097 = vmul.f32 %v2776, %v1882
      %v3098 = vmul.f32 %v2778, %v1882
      %v3099 = vmul.f32 %v2780, %v1882
      %v3100 = vmul.f32 %v2782, %v1882
      %v3101 = vmul.f32 %v2784, %v1882
      %v3102 = vmul.f32 %v2786, %v1882
      %v3103 = vmul.f32 %v2788, %v1882
      %v3104 = vmul.f32 %v2790, %v1882
      %v3105 = vmul.f32 %v2792, %v1882
      %v3106 = vmul.f32 %v2794, %v1882
      %v3107 = vmul.f32 %v2796, %v1882
      %v3108 = vmul.f32 %v2798, %v1882
      %v3109 = vmul.f32 %v2800, %v1882
      %v3110 = vmul.f32 %v2802, %v1882
      %v3111 = vmul.f32 %v2804, %v1882
      %v3112 = vmul.f32 %v2806, %v1882
      %v3113 = vmul.f32 %v2808, %v1882
      %v3114 = vmul.f32 %v2810, %v1882
      %v3115 = vmul.f32 %v2812, %v1882
      %v3116 = vmul.f32 %v2814, %v1882
      %v3117 = vmul.f32 %v2816, %v1882
      %v3118 = vmul.f32 %v2818, %v1882
      %v3119 = vmul.f32 %v2820, %v1882
      %v3120 = vmul.f32 %v2822, %v1882
      %v3121 = vmul.f32 %v2824, %v1882
      %v3122 = vmul.f32 %v2826, %v1882
      %v3123 = vmul.f32 %v2828, %v1882
      %v3124 = vmul.f32 %v2830, %v1882
      %v3125 = vmul.f32 %v2832, %v1882
      %v3126 = vmul.f32 %v2834, %v1882
      %v3127 = vmul.f32 %v2836, %v1882
      %v3128 = vmul.f32 %v2838, %v1882
      %v3129 = vmul.f32 %v2840, %v1882
      %v3130 = vmul.f32 %v2842, %v1882
      %v3131 = vmul.f32 %v2844, %v1882
      %v3132 = vmul.f32 %v2846, %v1882
      %v3133 = vmul.f32 %v2848, %v1882
      %v3134 = vmul.f32 %v2850, %v1882
      %v3135 = vmul.f32 %v2852, %v1882
      %v3136 = vmul.f32 %v2854, %v1882
      %v3137 = vmul.f32 %v2856, %v1882
      %v3138 = vmul.f32 %v2858, %v1882
      %v3139 = vmul.f32 %v2860, %v1882
      %v3140 = vmul.f32 %v2862, %v1882
      %v3141 = vmul.f32 %v2864, %v1882
      %v3142 = vmul.f32 %v2866, %v1882
      %v3143 = vmul.f32 %v2868, %v1882
      %v3144 = vmul.f32 %v2870, %v1882
      %v3145 = vmul.f32 %v2872, %v1882
      %v3146 = vmul.f32 %v2874, %v1882
      %v3147 = vmul.f32 %v2876, %v1882
      %v3148 = vmul.f32 %v2878, %v1882
      %v3149 = vmul.f32 %v2880, %v1882
      %v3150 = vmul.f32 %v2882, %v1882
      %v3151 = vmul.f32 %v2884, %v1882
      %v3152 = vmul.f32 %v2886, %v1882
      %v3153 = vmul.f32 %v2888, %v1882
      %v3154 = vmul.f32 %v2890, %v1882
      %v3155 = vmul.f32 %v2892, %v1882
      %v3156 = vmul.f32 %v2894, %v1882
      %v3157 = vmul.f32 %v2896, %v1882
      %v3158 = vmul.f32 %v2898, %v1882
      %v3159 = vmul.f32 %v2900, %v1882
      %v3160 = vmul.f32 %v2902, %v1882
      %v3161 = vmul.f32 %v2904, %v1882
      %v3162 = vmul.f32 %v2906, %v1882
      %v3163 = vsub.f32 %v1883, %v2907
      %v3164 = vsub.f32 %v1884, %v2908
      %v3165 = vsub.f32 %v1885, %v2909
      %v3166 = vsub.f32 %v1886, %v2910
      %v3167 = vsub.f32 %v1887, %v2911
      %v3168 = vsub.f32 %v1888, %v2912
      %v3169 = vsub.f32 %v1889, %v2913
      %v3170 = vsub.f32 %v1890, %v2914
      %v3171 = vsub.f32 %v1891, %v2915
      %v3172 = vsub.f32 %v1892, %v2916
      %v3173 = vsub.f32 %v1893, %v2917
      %v3174 = vsub.f32 %v1894, %v2918
      %v3175 = vsub.f32 %v1895, %v2919
      %v3176 = vsub.f32 %v1896, %v2920
      %v3177 = vsub.f32 %v1897, %v2921
      %v3178 = vsub.f32 %v1898, %v2922
      %v3179 = vsub.f32 %v1899, %v2923
      %v3180 = vsub.f32 %v1900, %v2924
      %v3181 = vsub.f32 %v1901, %v2925
      %v3182 = vsub.f32 %v1902, %v2926
      %v3183 = vsub.f32 %v1903, %v2927
      %v3184 = vsub.f32 %v1904, %v2928
      %v3185 = vsub.f32 %v1905, %v2929
      %v3186 = vsub.f32 %v1906, %v2930
      %v3187 = vsub.f32 %v1907, %v2931
      %v3188 = vsub.f32 %v1908, %v2932
      %v3189 = vsub.f32 %v1909, %v2933
      %v3190 = vsub.f32 %v1910, %v2934
      %v3191 = vsub.f32 %v1911, %v2935
      %v3192 = vsub.f32 %v1912, %v2936
      %v3193 = vsub.f32 %v1913, %v2937
      %v3194 = vsub.f32 %v1914, %v2938
      %v3195 = vsub.f32 %v1915, %v2939
      %v3196 = vsub.f32 %v1916, %v2940
      %v3197 = vsub.f32 %v1917, %v2941
      %v3198 = vsub.f32 %v1918, %v2942
      %v3199 = vsub.f32 %v1919, %v2943
      %v3200 = vsub.f32 %v1920, %v2944
      %v3201 = vsub.f32 %v1921, %v2945
      %v3202 = vsub.f32 %v1922, %v2946
      %v3203 = vsub.f32 %v1923, %v2947
      %v3204 = vsub.f32 %v1924, %v2948
      %v3205 = vsub.f32 %v1925, %v2949
      %v3206 = vsub.f32 %v1926, %v2950
      %v3207 = vsub.f32 %v1927, %v2951
      %v3208 = vsub.f32 %v1928, %v2952
      %v3209 = vsub.f32 %v1929, %v2953
      %v3210 = vsub.f32 %v1930, %v2954
      %v3211 = vsub.f32 %v1931, %v2955
      %v3212 = vsub.f32 %v1932, %v2956
      %v3213 = vsub.f32 %v1933, %v2957
      %v3214 = vsub.f32 %v1934, %v2958
      %v3215 = vsub.f32 %v1935, %v2959
      %v3216 = vsub.f32 %v1936, %v2960
      %v3217 = vsub.f32 %v1937, %v2961
      %v3218 = vsub.f32 %v1938, %v2962
      %v3219 = vsub.f32 %v1939, %v2963
      %v3220 = vsub.f32 %v1940, %v2964
      %v3221 = vsub.f32 %v1941, %v2965
      %v3222 = vsub.f32 %v1942, %v2966
      %v3223 = vsub.f32 %v1943, %v2967
      %v3224 = vsub.f32 %v1944, %v2968
      %v3225 = vsub.f32 %v1945, %v2969
      %v3226 = vsub.f32 %v1946, %v2970
      %v3227 = vsub.f32 %v1947, %v2971
      %v3228 = vsub.f32 %v1948, %v2972
      %v3229 = vsub.f32 %v1949, %v2973
      %v3230 = vsub.f32 %v1950, %v2974
      %v3231 = vsub.f32 %v1951, %v2975
      %v3232 = vsub.f32 %v1952, %v2976
      %v3233 = vsub.f32 %v1953, %v2977
      %v3234 = vsub.f32 %v1954, %v2978
      %v3235 = vsub.f32 %v1955, %v2979
      %v3236 = vsub.f32 %v1956, %v2980
      %v3237 = vsub.f32 %v1957, %v2981
      %v3238 = vsub.f32 %v1958, %v2982
      %v3239 = vsub.f32 %v1959, %v2983
      %v3240 = vsub.f32 %v1960, %v2984
      %v3241 = vsub.f32 %v1961, %v2985
      %v3242 = vsub.f32 %v1962, %v2986
      %v3243 = vsub.f32 %v1963, %v2987
      %v3244 = vsub.f32 %v1964, %v2988
      %v3245 = vsub.f32 %v1965, %v2989
      %v3246 = vsub.f32 %v1966, %v2990
      %v3247 = vsub.f32 %v1967, %v2991
      %v3248 = vsub.f32 %v1968, %v2992
      %v3249 = vsub.f32 %v1969, %v2993
      %v3250 = vsub.f32 %v1970, %v2994
      %v3251 = vsub.f32 %v1971, %v2995
      %v3252 = vsub.f32 %v1972, %v2996
      %v3253 = vsub.f32 %v1973, %v2997
      %v3254 = vsub.f32 %v1974, %v2998
      %v3255 = vsub.f32 %v1975, %v2999
      %v3256 = vsub.f32 %v1976, %v3000
      %v3257 = vsub.f32 %v1977, %v3001
      %v3258 = vsub.f32 %v1978, %v3002
      %v3259 = vsub.f32 %v1979, %v3003
      %v3260 = vsub.f32 %v1980, %v3004
      %v3261 = vsub.f32 %v1981, %v3005
      %v3262 = vsub.f32 %v1982, %v3006
      %v3263 = vsub.f32 %v1983, %v3007
      %v3264 = vsub.f32 %v1984, %v3008
      %v3265 = vsub.f32 %v1985, %v3009
      %v3266 = vsub.f32 %v1986, %v3010
      %v3267 = vsub.f32 %v1987, %v3011
      %v3268 = vsub.f32 %v1988, %v3012
      %v3269 = vsub.f32 %v1989, %v3013
      %v3270 = vsub.f32 %v1990, %v3014
      %v3271 = vsub.f32 %v1991, %v3015
      %v3272 = vsub.f32 %v1992, %v3016
      %v3273 = vsub.f32 %v1993, %v3017
      %v3274 = vsub.f32 %v1994, %v3018
      %v3275 = vsub.f32 %v1995, %v3019
      %v3276 = vsub.f32 %v1996, %v3020
      %v3277 = vsub.f32 %v1997, %v3021
      %v3278 = vsub.f32 %v1998, %v3022
      %v3279 = vsub.f32 %v1999, %v3023
      %v3280 = vsub.f32 %v2000, %v3024
      %v3281 = vsub.f32 %v2001, %v3025
      %v3282 = vsub.f32 %v2002, %v3026
      %v3283 = vsub.f32 %v2003, %v3027
      %v3284 = vsub.f32 %v2004, %v3028
      %v3285 = vsub.f32 %v2005, %v3029
      %v3286 = vsub.f32 %v2006, %v3030
      %v3287 = vsub.f32 %v2007, %v3031
      %v3288 = vsub.f32 %v2008, %v3032
      %v3289 = vsub.f32 %v2009, %v3033
      %v3290 = vsub.f32 %v2010, %v3034
      %v3291 = vsub.f32 %v2011, %v3035
      %v3292 = vsub.f32 %v2012, %v3036
      %v3293 = vsub.f32 %v2013, %v3037
      %v3294 = vsub.f32 %v2014, %v3038
      %v3295 = vsub.f32 %v2015, %v3039
      %v3296 = vsub.f32 %v2016, %v3040
      %v3297 = vsub.f32 %v2017, %v3041
      %v3298 = vsub.f32 %v2018, %v3042
      %v3299 = vsub.f32 %v2019, %v3043
      %v3300 = vsub.f32 %v2020, %v3044
      %v3301 = vsub.f32 %v2021, %v3045
      %v3302 = vsub.f32 %v2022, %v3046
      %v3303 = vsub.f32 %v2023, %v3047
      %v3304 = vsub.f32 %v2024, %v3048
      %v3305 = vsub.f32 %v2025, %v3049
      %v3306 = vsub.f32 %v2026, %v3050
      %v3307 = vsub.f32 %v2027, %v3051
      %v3308 = vsub.f32 %v2028, %v3052
      %v3309 = vsub.f32 %v2029, %v3053
      %v3310 = vsub.f32 %v2030, %v3054
      %v3311 = vsub.f32 %v2031, %v3055
      %v3312 = vsub.f32 %v2032, %v3056
      %v3313 = vsub.f32 %v2033, %v3057
      %v3314 = vsub.f32 %v2034, %v3058
      %v3315 = vsub.f32 %v2035, %v3059
      %v3316 = vsub.f32 %v2036, %v3060
      %v3317 = vsub.f32 %v2037, %v3061
      %v3318 = vsub.f32 %v2038, %v3062
      %v3319 = vsub.f32 %v2039, %v3063
      %v3320 = vsub.f32 %v2040, %v3064
      %v3321 = vsub.f32 %v2041, %v3065
      %v3322 = vsub.f32 %v2042, %v3066
      %v3323 = vsub.f32 %v2043, %v3067
      %v3324 = vsub.f32 %v2044, %v3068
      %v3325 = vsub.f32 %v2045, %v3069
      %v3326 = vsub.f32 %v2046, %v3070
      %v3327 = vsub.f32 %v2047, %v3071
      %v3328 = vsub.f32 %v2048, %v3072
      %v3329 = vsub.f32 %v2049, %v3073
      %v3330 = vsub.f32 %v2050, %v3074
      %v3331 = vsub.f32 %v2051, %v3075
      %v3332 = vsub.f32 %v2052, %v3076
      %v3333 = vsub.f32 %v2053, %v3077
      %v3334 = vsub.f32 %v2054, %v3078
      %v3335 = vsub.f32 %v2055, %v3079
      %v3336 = vsub.f32 %v2056, %v3080
      %v3337 = vsub.f32 %v2057, %v3081
      %v3338 = vsub.f32 %v2058, %v3082
      %v3339 = vsub.f32 %v2059, %v3083
      %v3340 = vsub.f32 %v2060, %v3084
      %v3341 = vsub.f32 %v2061, %v3085
      %v3342 = vsub.f32 %v2062, %v3086
      %v3343 = vsub.f32 %v2063, %v3087
      %v3344 = vsub.f32 %v2064, %v3088
      %v3345 = vsub.f32 %v2065, %v3089
      %v3346 = vsub.f32 %v2066, %v3090
      %v3347 = vsub.f32 %v2067, %v3091
      %v3348 = vsub.f32 %v2068, %v3092
      %v3349 = vsub.f32 %v2069, %v3093
      %v3350 = vsub.f32 %v2070, %v3094
      %v3351 = vsub.f32 %v2071, %v3095
      %v3352 = vsub.f32 %v2072, %v3096
      %v3353 = vsub.f32 %v2073, %v3097
      %v3354 = vsub.f32 %v2074, %v3098
      %v3355 = vsub.f32 %v2075, %v3099
      %v3356 = vsub.f32 %v2076, %v3100
      %v3357 = vsub.f32 %v2077, %v3101
      %v3358 = vsub.f32 %v2078, %v3102
      %v3359 = vsub.f32 %v2079, %v3103
      %v3360 = vsub.f32 %v2080, %v3104
      %v3361 = vsub.f32 %v2081, %v3105
      %v3362 = vsub.f32 %v2082, %v3106
      %v3363 = vsub.f32 %v2083, %v3107
      %v3364 = vsub.f32 %v2084, %v3108
      %v3365 = vsub.f32 %v2085, %v3109
      %v3366 = vsub.f32 %v2086, %v3110
      %v3367 = vsub.f32 %v2087, %v3111
      %v3368 = vsub.f32 %v2088, %v3112
      %v3369 = vsub.f32 %v2089, %v3113
      %v3370 = vsub.f32 %v2090, %v3114
      %v3371 = vsub.f32 %v2091, %v3115
      %v3372 = vsub.f32 %v2092, %v3116
      %v3373 = vsub.f32 %v2093, %v3117
      %v3374 = vsub.f32 %v2094, %v3118
      %v3375 = vsub.f32 %v2095, %v3119
      %v3376 = vsub.f32 %v2096, %v3120
      %v3377 = vsub.f32 %v2097, %v3121
      %v3378 = vsub.f32 %v2098, %v3122
      %v3379 = vsub.f32 %v2099, %v3123
      %v3380 = vsub.f32 %v2100, %v3124
      %v3381 = vsub.f32 %v2101, %v3125
      %v3382 = vsub.f32 %v2102, %v3126
      %v3383 = vsub.f32 %v2103, %v3127
      %v3384 = vsub.f32 %v2104, %v3128
      %v3385 = vsub.f32 %v2105, %v3129
      %v3386 = vsub.f32 %v2106, %v3130
      %v3387 = vsub.f32 %v2107, %v3131
      %v3388 = vsub.f32 %v2108, %v3132
      %v3389 = vsub.f32 %v2109, %v3133
      %v3390 = vsub.f32 %v2110, %v3134
      %v3391 = vsub.f32 %v2111, %v3135
      %v3392 = vsub.f32 %v2112, %v3136
      %v3393 = vsub.f32 %v2113, %v3137
      %v3394 = vsub.f32 %v2114, %v3138
      %v3395 = vsub.f32 %v2115, %v3139
      %v3396 = vsub.f32 %v2116, %v3140
      %v3397 = vsub.f32 %v2117, %v3141
      %v3398 = vsub.f32 %v2118, %v3142
      %v3399 = vsub.f32 %v2119, %v3143
      %v3400 = vsub.f32 %v2120, %v3144
      %v3401 = vsub.f32 %v2121, %v3145
      %v3402 = vsub.f32 %v2122, %v3146
      %v3403 = vsub.f32 %v2123, %v3147
      %v3404 = vsub.f32 %v2124, %v3148
      %v3405 = vsub.f32 %v2125, %v3149
      %v3406 = vsub.f32 %v2126, %v3150
      %v3407 = vsub.f32 %v2127, %v3151
      %v3408 = vsub.f32 %v2128, %v3152
      %v3409 = vsub.f32 %v2129, %v3153
      %v3410 = vsub.f32 %v2130, %v3154
      %v3411 = vsub.f32 %v2131, %v3155
      %v3412 = vsub.f32 %v2132, %v3156
      %v3413 = vsub.f32 %v2133, %v3157
      %v3414 = vsub.f32 %v2134, %v3158
      %v3415 = vsub.f32 %v2135, %v3159
      %v3416 = vsub.f32 %v2136, %v3160
      %v3417 = vsub.f32 %v2137, %v3161
      %v3418 = vsub.f32 %v2138, %v3162
      %v3419 = vmul.f32 %v3163, %v3163
      %v3420 = vmul.f32 %v3164, %v3164
      %v3421 = vmul.f32 %v3165, %v3165
      %v3422 = vmul.f32 %v3166, %v3166
      %v3423 = vmul.f32 %v3167, %v3167
      %v3424 = vmul.f32 %v3168, %v3168
      %v3425 = vmul.f32 %v3169, %v3169
      %v3426 = vmul.f32 %v3170, %v3170
      %v3427 = vmul.f32 %v3171, %v3171
      %v3428 = vmul.f32 %v3172, %v3172
      %v3429 = vmul.f32 %v3173, %v3173
      %v3430 = vmul.f32 %v3174, %v3174
      %v3431 = vmul.f32 %v3175, %v3175
      %v3432 = vmul.f32 %v3176, %v3176
      %v3433 = vmul.f32 %v3177, %v3177
      %v3434 = vmul.f32 %v3178, %v3178
      %v3435 = vmul.f32 %v3179, %v3179
      %v3436 = vmul.f32 %v3180, %v3180
      %v3437 = vmul.f32 %v3181, %v3181
      %v3438 = vmul.f32 %v3182, %v3182
      %v3439 = vmul.f32 %v3183, %v3183
      %v3440 = vmul.f32 %v3184, %v3184
      %v3441 = vmul.f32 %v3185, %v3185
      %v3442 = vmul.f32 %v3186, %v3186
      %v3443 = vmul.f32 %v3187, %v3187
      %v3444 = vmul.f32 %v3188, %v3188
      %v3445 = vmul.f32 %v3189, %v3189
      %v3446 = vmul.f32 %v3190, %v3190
      %v3447 = vmul.f32 %v3191, %v3191
      %v3448 = vmul.f32 %v3192, %v3192
      %v3449 = vmul.f32 %v3193, %v3193
      %v3450 = vmul.f32 %v3194, %v3194
      %v3451 = vmul.f32 %v3195, %v3195
      %v3452 = vmul.f32 %v3196, %v3196
      %v3453 = vmul.f32 %v3197, %v3197
      %v3454 = vmul.f32 %v3198, %v3198
      %v3455 = vmul.f32 %v3199, %v3199
      %v3456 = vmul.f32 %v3200, %v3200
      %v3457 = vmul.f32 %v3201, %v3201
      %v3458 = vmul.f32 %v3202, %v3202
      %v3459 = vmul.f32 %v3203, %v3203
      %v3460 = vmul.f32 %v3204, %v3204
      %v3461 = vmul.f32 %v3205, %v3205
      %v3462 = vmul.f32 %v3206, %v3206
      %v3463 = vmul.f32 %v3207, %v3207
      %v3464 = vmul.f32 %v3208, %v3208
      %v3465 = vmul.f32 %v3209, %v3209
      %v3466 = vmul.f32 %v3210, %v3210
      %v3467 = vmul.f32 %v3211, %v3211
      %v3468 = vmul.f32 %v3212, %v3212
      %v3469 = vmul.f32 %v3213, %v3213
      %v3470 = vmul.f32 %v3214, %v3214
      %v3471 = vmul.f32 %v3215, %v3215
      %v3472 = vmul.f32 %v3216, %v3216
      %v3473 = vmul.f32 %v3217, %v3217
      %v3474 = vmul.f32 %v3218, %v3218
      %v3475 = vmul.f32 %v3219, %v3219
      %v3476 = vmul.f32 %v3220, %v3220
      %v3477 = vmul.f32 %v3221, %v3221
      %v3478 = vmul.f32 %v3222, %v3222
      %v3479 = vmul.f32 %v3223, %v3223
      %v3480 = vmul.f32 %v3224, %v3224
      %v3481 = vmul.f32 %v3225, %v3225
      %v3482 = vmul.f32 %v3226, %v3226
      %v3483 = vmul.f32 %v3227, %v3227
      %v3484 = vmul.f32 %v3228, %v3228
      %v3485 = vmul.f32 %v3229, %v3229
      %v3486 = vmul.f32 %v3230, %v3230
      %v3487 = vmul.f32 %v3231, %v3231
      %v3488 = vmul.f32 %v3232, %v3232
      %v3489 = vmul.f32 %v3233, %v3233
      %v3490 = vmul.f32 %v3234, %v3234
      %v3491 = vmul.f32 %v3235, %v3235
      %v3492 = vmul.f32 %v3236, %v3236
      %v3493 = vmul.f32 %v3237, %v3237
      %v3494 = vmul.f32 %v3238, %v3238
      %v3495 = vmul.f32 %v3239, %v3239
      %v3496 = vmul.f32 %v3240, %v3240
      %v3497 = vmul.f32 %v3241, %v3241
      %v3498 = vmul.f32 %v3242, %v3242
      %v3499 = vmul.f32 %v3243, %v3243
      %v3500 = vmul.f32 %v3244, %v3244
      %v3501 = vmul.f32 %v3245, %v3245
      %v3502 = vmul.f32 %v3246, %v3246
      %v3503 = vmul.f32 %v3247, %v3247
      %v3504 = vmul.f32 %v3248, %v3248
      %v3505 = vmul.f32 %v3249, %v3249
      %v3506 = vmul.f32 %v3250, %v3250
      %v3507 = vmul.f32 %v3251, %v3251
      %v3508 = vmul.f32 %v3252, %v3252
      %v3509 = vmul.f32 %v3253, %v3253
      %v3510 = vmul.f32 %v3254, %v3254
      %v3511 = vmul.f32 %v3255, %v3255
      %v3512 = vmul.f32 %v3256, %v3256
      %v3513 = vmul.f32 %v3257, %v3257
      %v3514 = vmul.f32 %v3258, %v3258
      %v3515 = vmul.f32 %v3259, %v3259
      %v3516 = vmul.f32 %v3260, %v3260
      %v3517 = vmul.f32 %v3261, %v3261
      %v3518 = vmul.f32 %v3262, %v3262
      %v3519 = vmul.f32 %v3263, %v3263
      %v3520 = vmul.f32 %v3264, %v3264
      %v3521 = vmul.f32 %v3265, %v3265
      %v3522 = vmul.f32 %v3266, %v3266
      %v3523 = vmul.f32 %v3267, %v3267
      %v3524 = vmul.f32 %v3268, %v3268
      %v3525 = vmul.f32 %v3269, %v3269
      %v3526 = vmul.f32 %v3270, %v3270
      %v3527 = vmul.f32 %v3271, %v3271
      %v3528 = vmul.f32 %v3272, %v3272
      %v3529 = vmul.f32 %v3273, %v3273
      %v3530 = vmul.f32 %v3274, %v3274
      %v3531 = vmul.f32 %v3275, %v3275
      %v3532 = vmul.f32 %v3276, %v3276
      %v3533 = vmul.f32 %v3277, %v3277
      %v3534 = vmul.f32 %v3278, %v3278
      %v3535 = vmul.f32 %v3279, %v3279
      %v3536 = vmul.f32 %v3280, %v3280
      %v3537 = vmul.f32 %v3281, %v3281
      %v3538 = vmul.f32 %v3282, %v3282
      %v3539 = vmul.f32 %v3283, %v3283
      %v3540 = vmul.f32 %v3284, %v3284
      %v3541 = vmul.f32 %v3285, %v3285
      %v3542 = vmul.f32 %v3286, %v3286
      %v3543 = vmul.f32 %v3287, %v3287
      %v3544 = vmul.f32 %v3288, %v3288
      %v3545 = vmul.f32 %v3289, %v3289
      %v3546 = vmul.f32 %v3290, %v3290
      %v3547 = vmul.f32 %v3291, %v3291
      %v3548 = vmul.f32 %v3292, %v3292
      %v3549 = vmul.f32 %v3293, %v3293
      %v3550 = vmul.f32 %v3294, %v3294
      %v3551 = vmul.f32 %v3295, %v3295
      %v3552 = vmul.f32 %v3296, %v3296
      %v3553 = vmul.f32 %v3297, %v3297
      %v3554 = vmul.f32 %v3298, %v3298
      %v3555 = vmul.f32 %v3299, %v3299
      %v3556 = vmul.f32 %v3300, %v3300
      %v3557 = vmul.f32 %v3301, %v3301
      %v3558 = vmul.f32 %v3302, %v3302
      %v3559 = vmul.f32 %v3303, %v3303
      %v3560 = vmul.f32 %v3304, %v3304
      %v3561 = vmul.f32 %v3305, %v3305
      %v3562 = vmul.f32 %v3306, %v3306
      %v3563 = vmul.f32 %v3307, %v3307
      %v3564 = vmul.f32 %v3308, %v3308
      %v3565 = vmul.f32 %v3309, %v3309
      %v3566 = vmul.f32 %v3310, %v3310
      %v3567 = vmul.f32 %v3311, %v3311
      %v3568 = vmul.f32 %v3312, %v3312
      %v3569 = vmul.f32 %v3313, %v3313
      %v3570 = vmul.f32 %v3314, %v3314
      %v3571 = vmul.f32 %v3315, %v3315
      %v3572 = vmul.f32 %v3316, %v3316
      %v3573 = vmul.f32 %v3317, %v3317
      %v3574 = vmul.f32 %v3318, %v3318
      %v3575 = vmul.f32 %v3319, %v3319
      %v3576 = vmul.f32 %v3320, %v3320
      %v3577 = vmul.f32 %v3321, %v3321
      %v3578 = vmul.f32 %v3322, %v3322
      %v3579 = vmul.f32 %v3323, %v3323
      %v3580 = vmul.f32 %v3324, %v3324
      %v3581 = vmul.f32 %v3325, %v3325
      %v3582 = vmul.f32 %v3326, %v3326
      %v3583 = vmul.f32 %v3327, %v3327
      %v3584 = vmul.f32 %v3328, %v3328
      %v3585 = vmul.f32 %v3329, %v3329
      %v3586 = vmul.f32 %v3330, %v3330
      %v3587 = vmul.f32 %v3331, %v3331
      %v3588 = vmul.f32 %v3332, %v3332
      %v3589 = vmul.f32 %v3333, %v3333
      %v3590 = vmul.f32 %v3334, %v3334
      %v3591 = vmul.f32 %v3335, %v3335
      %v3592 = vmul.f32 %v3336, %v3336
      %v3593 = vmul.f32 %v3337, %v3337
      %v3594 = vmul.f32 %v3338, %v3338
      %v3595 = vmul.f32 %v3339, %v3339
      %v3596 = vmul.f32 %v3340, %v3340
      %v3597 = vmul.f32 %v3341, %v3341
      %v3598 = vmul.f32 %v3342, %v3342
      %v3599 = vmul.f32 %v3343, %v3343
      %v3600 = vmul.f32 %v3344, %v3344
      %v3601 = vmul.f32 %v3345, %v3345
      %v3602 = vmul.f32 %v3346, %v3346
      %v3603 = vmul.f32 %v3347, %v3347
      %v3604 = vmul.f32 %v3348, %v3348
      %v3605 = vmul.f32 %v3349, %v3349
      %v3606 = vmul.f32 %v3350, %v3350
      %v3607 = vmul.f32 %v3351, %v3351
      %v3608 = vmul.f32 %v3352, %v3352
      %v3609 = vmul.f32 %v3353, %v3353
      %v3610 = vmul.f32 %v3354, %v3354
      %v3611 = vmul.f32 %v3355, %v3355
      %v3612 = vmul.f32 %v3356, %v3356
      %v3613 = vmul.f32 %v3357, %v3357
      %v3614 = vmul.f32 %v3358, %v3358
      %v3615 = vmul.f32 %v3359, %v3359
      %v3616 = vmul.f32 %v3360, %v3360
      %v3617 = vmul.f32 %v3361, %v3361
      %v3618 = vmul.f32 %v3362, %v3362
      %v3619 = vmul.f32 %v3363, %v3363
      %v3620 = vmul.f32 %v3364, %v3364
      %v3621 = vmul.f32 %v3365, %v3365
      %v3622 = vmul.f32 %v3366, %v3366
      %v3623 = vmul.f32 %v3367, %v3367
      %v3624 = vmul.f32 %v3368, %v3368
      %v3625 = vmul.f32 %v3369, %v3369
      %v3626 = vmul.f32 %v3370, %v3370
      %v3627 = vmul.f32 %v3371, %v3371
      %v3628 = vmul.f32 %v3372, %v3372
      %v3629 = vmul.f32 %v3373, %v3373
      %v3630 = vmul.f32 %v3374, %v3374
      %v3631 = vmul.f32 %v3375, %v3375
      %v3632 = vmul.f32 %v3376, %v3376
      %v3633 = vmul.f32 %v3377, %v3377
      %v3634 = vmul.f32 %v3378, %v3378
      %v3635 = vmul.f32 %v3379, %v3379
      %v3636 = vmul.f32 %v3380, %v3380
      %v3637 = vmul.f32 %v3381, %v3381
      %v3638 = vmul.f32 %v3382, %v3382
      %v3639 = vmul.f32 %v3383, %v3383
      %v3640 = vmul.f32 %v3384, %v3384
      %v3641 = vmul.f32 %v3385, %v3385
      %v3642 = vmul.f32 %v3386, %v3386
      %v3643 = vmul.f32 %v3387, %v3387
      %v3644 = vmul.f32 %v3388, %v3388
      %v3645 = vmul.f32 %v3389, %v3389
      %v3646 = vmul.f32 %v3390, %v3390
      %v3647 = vmul.f32 %v3391, %v3391
      %v3648 = vmul.f32 %v3392, %v3392
      %v3649 = vmul.f32 %v3393, %v3393
      %v3650 = vmul.f32 %v3394, %v3394
      %v3651 = vmul.f32 %v3395, %v3395
      %v3652 = vmul.f32 %v3396, %v3396
      %v3653 = vmul.f32 %v3397, %v3397
      %v3654 = vmul.f32 %v3398, %v3398
      %v3655 = vmul.f32 %v3399, %v3399
      %v3656 = vmul.f32 %v3400, %v3400
      %v3657 = vmul.f32 %v3401, %v3401
      %v3658 = vmul.f32 %v3402, %v3402
      %v3659 = vmul.f32 %v3403, %v3403
      %v3660 = vmul.f32 %v3404, %v3404
      %v3661 = vmul.f32 %v3405, %v3405
      %v3662 = vmul.f32 %v3406, %v3406
      %v3663 = vmul.f32 %v3407, %v3407
      %v3664 = vmul.f32 %v3408, %v3408
      %v3665 = vmul.f32 %v3409, %v3409
      %v3666 = vmul.f32 %v3410, %v3410
      %v3667 = vmul.f32 %v3411, %v3411
      %v3668 = vmul.f32 %v3412, %v3412
      %v3669 = vmul.f32 %v3413, %v3413
      %v3670 = vmul.f32 %v3414, %v3414
      %v3671 = vmul.f32 %v3415, %v3415
      %v3672 = vmul.f32 %v3416, %v3416
      %v3673 = vmul.f32 %v3417, %v3417
      %v3674 = vmul.f32 %v3418, %v3418
      %s3675 = sadd.s32 %s85, 2048
      %p3676 = scmp.le.s32.totalorder %s3675, 16
      // Predicated region
      $region26: #{tpu_custom_call.1} parent=24 // pred_check
        %p3677 = pneg %p3676
      $region27: #{tpu_custom_call.1} parent=24 // pred_check_branch
        %3679 = sbr.rel (%p3677) target = $region29
      $region28: #{tpu_custom_call.1} parent=24 // pred_region
        %v3680 = vld [vmem:[#allocation7] sm:$0xff]
        %v3681 = vld [vmem:[#allocation7 + $0x8] sm:$0xff]
        %v3682 = vld [vmem:[#allocation7 + $0x10] sm:$0xff]
        %v3683 = vld [vmem:[#allocation7 + $0x18] sm:$0xff]
        %v3684 = vld [vmem:[#allocation7 + $0x20] sm:$0xff]
        %v3685 = vld [vmem:[#allocation7 + $0x28] sm:$0xff]
        %v3686 = vld [vmem:[#allocation7 + $0x30] sm:$0xff]
        %v3687 = vld [vmem:[#allocation7 + $0x38] sm:$0xff]
        %v3688 = vadd.f32 %v3419, %v3427
        %v3689 = vadd.f32 %v3688, %v3435
        %v3690 = vadd.f32 %v3689, %v3443
        %v3691 = vadd.f32 %v3690, %v3451
        %v3692 = vadd.f32 %v3691, %v3459
        %v3693 = vadd.f32 %v3692, %v3467
        %v3694 = vadd.f32 %v3693, %v3475
        %v3695 = vadd.f32 %v3694, %v3483
        %v3696 = vadd.f32 %v3695, %v3491
        %v3697 = vadd.f32 %v3696, %v3499
        %v3698 = vadd.f32 %v3697, %v3507
        %v3699 = vadd.f32 %v3698, %v3515
        %v3700 = vadd.f32 %v3699, %v3523
        %v3701 = vadd.f32 %v3700, %v3531
        %v3702 = vadd.f32 %v3701, %v3539
        %v3703 = vadd.f32 %v3702, %v3547
        %v3704 = vadd.f32 %v3703, %v3555
        %v3705 = vadd.f32 %v3704, %v3563
        %v3706 = vadd.f32 %v3705, %v3571
        %v3707 = vadd.f32 %v3706, %v3579
        %v3708 = vadd.f32 %v3707, %v3587
        %v3709 = vadd.f32 %v3708, %v3595
        %v3710 = vadd.f32 %v3709, %v3603
        %v3711 = vadd.f32 %v3710, %v3611
        %v3712 = vadd.f32 %v3711, %v3619
        %v3713 = vadd.f32 %v3712, %v3627
        %v3714 = vadd.f32 %v3713, %v3635
        %v3715 = vadd.f32 %v3714, %v3643
        %v3716 = vadd.f32 %v3715, %v3651
        %v3717 = vadd.f32 %v3716, %v3659
        %v3718 = vadd.f32 %v3717, %v3667
        %v3719 = vadd.f32 %v3420, %v3428
        %v3720 = vadd.f32 %v3719, %v3436
        %v3721 = vadd.f32 %v3720, %v3444
        %v3722 = vadd.f32 %v3721, %v3452
        %v3723 = vadd.f32 %v3722, %v3460
        %v3724 = vadd.f32 %v3723, %v3468
        %v3725 = vadd.f32 %v3724, %v3476
        %v3726 = vadd.f32 %v3725, %v3484
        %v3727 = vadd.f32 %v3726, %v3492
        %v3728 = vadd.f32 %v3727, %v3500
        %v3729 = vadd.f32 %v3728, %v3508
        %v3730 = vadd.f32 %v3729, %v3516
        %v3731 = vadd.f32 %v3730, %v3524
        %v3732 = vadd.f32 %v3731, %v3532
        %v3733 = vadd.f32 %v3732, %v3540
        %v3734 = vadd.f32 %v3733, %v3548
        %v3735 = vadd.f32 %v3734, %v3556
        %v3736 = vadd.f32 %v3735, %v3564
        %v3737 = vadd.f32 %v3736, %v3572
        %v3738 = vadd.f32 %v3737, %v3580
        %v3739 = vadd.f32 %v3738, %v3588
        %v3740 = vadd.f32 %v3739, %v3596
        %v3741 = vadd.f32 %v3740, %v3604
        %v3742 = vadd.f32 %v3741, %v3612
        %v3743 = vadd.f32 %v3742, %v3620
        %v3744 = vadd.f32 %v3743, %v3628
        %v3745 = vadd.f32 %v3744, %v3636
        %v3746 = vadd.f32 %v3745, %v3644
        %v3747 = vadd.f32 %v3746, %v3652
        %v3748 = vadd.f32 %v3747, %v3660
        %v3749 = vadd.f32 %v3748, %v3668
        %v3750 = vadd.f32 %v3421, %v3429
        %v3751 = vadd.f32 %v3750, %v3437
        %v3752 = vadd.f32 %v3751, %v3445
        %v3753 = vadd.f32 %v3752, %v3453
        %v3754 = vadd.f32 %v3753, %v3461
        %v3755 = vadd.f32 %v3754, %v3469
        %v3756 = vadd.f32 %v3755, %v3477
        %v3757 = vadd.f32 %v3756, %v3485
        %v3758 = vadd.f32 %v3757, %v3493
        %v3759 = vadd.f32 %v3758, %v3501
        %v3760 = vadd.f32 %v3759, %v3509
        %v3761 = vadd.f32 %v3760, %v3517
        %v3762 = vadd.f32 %v3761, %v3525
        %v3763 = vadd.f32 %v3762, %v3533
        %v3764 = vadd.f32 %v3763, %v3541
        %v3765 = vadd.f32 %v3764, %v3549
        %v3766 = vadd.f32 %v3765, %v3557
        %v3767 = vadd.f32 %v3766, %v3565
        %v3768 = vadd.f32 %v3767, %v3573
        %v3769 = vadd.f32 %v3768, %v3581
        %v3770 = vadd.f32 %v3769, %v3589
        %v3771 = vadd.f32 %v3770, %v3597
        %v3772 = vadd.f32 %v3771, %v3605
        %v3773 = vadd.f32 %v3772, %v3613
        %v3774 = vadd.f32 %v3773, %v3621
        %v3775 = vadd.f32 %v3774, %v3629
        %v3776 = vadd.f32 %v3775, %v3637
        %v3777 = vadd.f32 %v3776, %v3645
        %v3778 = vadd.f32 %v3777, %v3653
        %v3779 = vadd.f32 %v3778, %v3661
        %v3780 = vadd.f32 %v3779, %v3669
        %v3781 = vadd.f32 %v3422, %v3430
        %v3782 = vadd.f32 %v3781, %v3438
        %v3783 = vadd.f32 %v3782, %v3446
        %v3784 = vadd.f32 %v3783, %v3454
        %v3785 = vadd.f32 %v3784, %v3462
        %v3786 = vadd.f32 %v3785, %v3470
        %v3787 = vadd.f32 %v3786, %v3478
        %v3788 = vadd.f32 %v3787, %v3486
        %v3789 = vadd.f32 %v3788, %v3494
        %v3790 = vadd.f32 %v3789, %v3502
        %v3791 = vadd.f32 %v3790, %v3510
        %v3792 = vadd.f32 %v3791, %v3518
        %v3793 = vadd.f32 %v3792, %v3526
        %v3794 = vadd.f32 %v3793, %v3534
        %v3795 = vadd.f32 %v3794, %v3542
        %v3796 = vadd.f32 %v3795, %v3550
        %v3797 = vadd.f32 %v3796, %v3558
        %v3798 = vadd.f32 %v3797, %v3566
        %v3799 = vadd.f32 %v3798, %v3574
        %v3800 = vadd.f32 %v3799, %v3582
        %v3801 = vadd.f32 %v3800, %v3590
        %v3802 = vadd.f32 %v3801, %v3598
        %v3803 = vadd.f32 %v3802, %v3606
        %v3804 = vadd.f32 %v3803, %v3614
        %v3805 = vadd.f32 %v3804, %v3622
        %v3806 = vadd.f32 %v3805, %v3630
        %v3807 = vadd.f32 %v3806, %v3638
        %v3808 = vadd.f32 %v3807, %v3646
        %v3809 = vadd.f32 %v3808, %v3654
        %v3810 = vadd.f32 %v3809, %v3662
        %v3811 = vadd.f32 %v3810, %v3670
        %v3812 = vadd.f32 %v3423, %v3431
        %v3813 = vadd.f32 %v3812, %v3439
        %v3814 = vadd.f32 %v3813, %v3447
        %v3815 = vadd.f32 %v3814, %v3455
        %v3816 = vadd.f32 %v3815, %v3463
        %v3817 = vadd.f32 %v3816, %v3471
        %v3818 = vadd.f32 %v3817, %v3479
        %v3819 = vadd.f32 %v3818, %v3487
        %v3820 = vadd.f32 %v3819, %v3495
        %v3821 = vadd.f32 %v3820, %v3503
        %v3822 = vadd.f32 %v3821, %v3511
        %v3823 = vadd.f32 %v3822, %v3519
        %v3824 = vadd.f32 %v3823, %v3527
        %v3825 = vadd.f32 %v3824, %v3535
        %v3826 = vadd.f32 %v3825, %v3543
        %v3827 = vadd.f32 %v3826, %v3551
        %v3828 = vadd.f32 %v3827, %v3559
        %v3829 = vadd.f32 %v3828, %v3567
        %v3830 = vadd.f32 %v3829, %v3575
        %v3831 = vadd.f32 %v3830, %v3583
        %v3832 = vadd.f32 %v3831, %v3591
        %v3833 = vadd.f32 %v3832, %v3599
        %v3834 = vadd.f32 %v3833, %v3607
        %v3835 = vadd.f32 %v3834, %v3615
        %v3836 = vadd.f32 %v3835, %v3623
        %v3837 = vadd.f32 %v3836, %v3631
        %v3838 = vadd.f32 %v3837, %v3639
        %v3839 = vadd.f32 %v3838, %v3647
        %v3840 = vadd.f32 %v3839, %v3655
        %v3841 = vadd.f32 %v3840, %v3663
        %v3842 = vadd.f32 %v3841, %v3671
        %v3843 = vadd.f32 %v3424, %v3432
        %v3844 = vadd.f32 %v3843, %v3440
        %v3845 = vadd.f32 %v3844, %v3448
        %v3846 = vadd.f32 %v3845, %v3456
        %v3847 = vadd.f32 %v3846, %v3464
        %v3848 = vadd.f32 %v3847, %v3472
        %v3849 = vadd.f32 %v3848, %v3480
        %v3850 = vadd.f32 %v3849, %v3488
        %v3851 = vadd.f32 %v3850, %v3496
        %v3852 = vadd.f32 %v3851, %v3504
        %v3853 = vadd.f32 %v3852, %v3512
        %v3854 = vadd.f32 %v3853, %v3520
        %v3855 = vadd.f32 %v3854, %v3528
        %v3856 = vadd.f32 %v3855, %v3536
        %v3857 = vadd.f32 %v3856, %v3544
        %v3858 = vadd.f32 %v3857, %v3552
        %v3859 = vadd.f32 %v3858, %v3560
        %v3860 = vadd.f32 %v3859, %v3568
        %v3861 = vadd.f32 %v3860, %v3576
        %v3862 = vadd.f32 %v3861, %v3584
        %v3863 = vadd.f32 %v3862, %v3592
        %v3864 = vadd.f32 %v3863, %v3600
        %v3865 = vadd.f32 %v3864, %v3608
        %v3866 = vadd.f32 %v3865, %v3616
        %v3867 = vadd.f32 %v3866, %v3624
        %v3868 = vadd.f32 %v3867, %v3632
        %v3869 = vadd.f32 %v3868, %v3640
        %v3870 = vadd.f32 %v3869, %v3648
        %v3871 = vadd.f32 %v3870, %v3656
        %v3872 = vadd.f32 %v3871, %v3664
        %v3873 = vadd.f32 %v3872, %v3672
        %v3874 = vadd.f32 %v3425, %v3433
        %v3875 = vadd.f32 %v3874, %v3441
        %v3876 = vadd.f32 %v3875, %v3449
        %v3877 = vadd.f32 %v3876, %v3457
        %v3878 = vadd.f32 %v3877, %v3465
        %v3879 = vadd.f32 %v3878, %v3473
        %v3880 = vadd.f32 %v3879, %v3481
        %v3881 = vadd.f32 %v3880, %v3489
        %v3882 = vadd.f32 %v3881, %v3497
        %v3883 = vadd.f32 %v3882, %v3505
        %v3884 = vadd.f32 %v3883, %v3513
        %v3885 = vadd.f32 %v3884, %v3521
        %v3886 = vadd.f32 %v3885, %v3529
        %v3887 = vadd.f32 %v3886, %v3537
        %v3888 = vadd.f32 %v3887, %v3545
        %v3889 = vadd.f32 %v3888, %v3553
        %v3890 = vadd.f32 %v3889, %v3561
        %v3891 = vadd.f32 %v3890, %v3569
        %v3892 = vadd.f32 %v3891, %v3577
        %v3893 = vadd.f32 %v3892, %v3585
        %v3894 = vadd.f32 %v3893, %v3593
        %v3895 = vadd.f32 %v3894, %v3601
        %v3896 = vadd.f32 %v3895, %v3609
        %v3897 = vadd.f32 %v3896, %v3617
        %v3898 = vadd.f32 %v3897, %v3625
        %v3899 = vadd.f32 %v3898, %v3633
        %v3900 = vadd.f32 %v3899, %v3641
        %v3901 = vadd.f32 %v3900, %v3649
        %v3902 = vadd.f32 %v3901, %v3657
        %v3903 = vadd.f32 %v3902, %v3665
        %v3904 = vadd.f32 %v3903, %v3673
        %v3905 = vadd.f32 %v3426, %v3434
        %v3906 = vadd.f32 %v3905, %v3442
        %v3907 = vadd.f32 %v3906, %v3450
        %v3908 = vadd.f32 %v3907, %v3458
        %v3909 = vadd.f32 %v3908, %v3466
        %v3910 = vadd.f32 %v3909, %v3474
        %v3911 = vadd.f32 %v3910, %v3482
        %v3912 = vadd.f32 %v3911, %v3490
        %v3913 = vadd.f32 %v3912, %v3498
        %v3914 = vadd.f32 %v3913, %v3506
        %v3915 = vadd.f32 %v3914, %v3514
        %v3916 = vadd.f32 %v3915, %v3522
        %v3917 = vadd.f32 %v3916, %v3530
        %v3918 = vadd.f32 %v3917, %v3538
        %v3919 = vadd.f32 %v3918, %v3546
        %v3920 = vadd.f32 %v3919, %v3554
        %v3921 = vadd.f32 %v3920, %v3562
        %v3922 = vadd.f32 %v3921, %v3570
        %v3923 = vadd.f32 %v3922, %v3578
        %v3924 = vadd.f32 %v3923, %v3586
        %v3925 = vadd.f32 %v3924, %v3594
        %v3926 = vadd.f32 %v3925, %v3602
        %v3927 = vadd.f32 %v3926, %v3610
        %v3928 = vadd.f32 %v3927, %v3618
        %v3929 = vadd.f32 %v3928, %v3626
        %v3930 = vadd.f32 %v3929, %v3634
        %v3931 = vadd.f32 %v3930, %v3642
        %v3932 = vadd.f32 %v3931, %v3650
        %v3933 = vadd.f32 %v3932, %v3658
        %v3934 = vadd.f32 %v3933, %v3666
        %v3935 = vadd.f32 %v3934, %v3674
        %v3936 = vadd.f32 %v3680, %v3718
        %v3937 = vadd.f32 %v3681, %v3749
        %v3938 = vadd.f32 %v3682, %v3780
        %v3939 = vadd.f32 %v3683, %v3811
        %v3940 = vadd.f32 %v3684, %v3842
        %v3941 = vadd.f32 %v3685, %v3873
        %v3942 = vadd.f32 %v3686, %v3904
        %v3943 = vadd.f32 %v3687, %v3935
        %3944 = vst [vmem:[#allocation7] sm:$0xff] %v3936
        %3945 = vst [vmem:[#allocation7 + $0x8] sm:$0xff] %v3937
        %3946 = vst [vmem:[#allocation7 + $0x10] sm:$0xff] %v3938
        %3947 = vst [vmem:[#allocation7 + $0x18] sm:$0xff] %v3939
        %3948 = vst [vmem:[#allocation7 + $0x20] sm:$0xff] %v3940
        %3949 = vst [vmem:[#allocation7 + $0x28] sm:$0xff] %v3941
        %3950 = vst [vmem:[#allocation7 + $0x30] sm:$0xff] %v3942
        %3951 = vst [vmem:[#allocation7 + $0x38] sm:$0xff] %v3943
      $region29: #{tpu_custom_call.1} parent=24 // pred_fallthru
        _
      %p3952 = scmp.gt.s32.totalorder %s3675, 16
      // Predicated region
      $region30: #{tpu_custom_call.1} parent=24 // pred_check
        %p3953 = pneg %p3952
      $region31: #{tpu_custom_call.1} parent=24 // pred_check_branch
        %3955 = sbr.rel (%p3953) target = $region33
      $region32: #{tpu_custom_call.1} parent=24 // pred_region
        %v3956 = vlaneseq
        %v3957 = vshrl.u32 %v3956, 7
        %v3958 = vadd.s32 %v3957, 8
        %v3959 = vadd.s32 %v3957, 16
        %v3960 = vadd.s32 %v3957, 24
        %v3961 = vadd.s32 %v3957, 32
        %v3962 = vadd.s32 %v3957, 40
        %v3963 = vadd.s32 %v3957, 48
        %v3964 = vadd.s32 %v3957, 56
        %v3965 = vadd.s32 %v3957, 64
        %v3966 = vadd.s32 %v3957, 72
        %v3967 = vadd.s32 %v3957, 80
        %v3968 = vadd.s32 %v3957, 88
        %v3969 = vadd.s32 %v3957, 96
        %v3970 = vadd.s32 %v3957, 104
        %v3971 = vadd.s32 %v3957, 112
        %v3972 = vadd.s32 %v3957, 120
        %v3973 = vadd.s32 %v3957, 128
        %v3974 = vadd.s32 %v3957, 136
        %v3975 = vadd.s32 %v3957, 144
        %v3976 = vadd.s32 %v3957, 152
        %v3977 = vadd.s32 %v3957, 160
        %v3978 = vadd.s32 %v3957, 168
        %v3979 = vadd.s32 %v3957, 176
        %v3980 = vadd.s32 %v3957, 184
        %v3981 = vadd.s32 %v3957, 192
        %v3982 = vadd.s32 %v3957, 200
        %v3983 = vadd.s32 %v3957, 208
        %v3984 = vadd.s32 %v3957, 216
        %v3985 = vadd.s32 %v3957, 224
        %v3986 = vadd.s32 %v3957, 232
        %v3987 = vadd.s32 %v3957, 240
        %v3988 = vadd.s32 %v3957, 248
        %v3989 = vadd.s32 %v3957, 256
        %v3990 = vadd.s32 %v3957, 264
        %v3991 = vadd.s32 %v3957, 272
        %v3992 = vadd.s32 %v3957, 280
        %v3993 = vadd.s32 %v3957, 288
        %v3994 = vadd.s32 %v3957, 296
        %v3995 = vadd.s32 %v3957, 304
        %v3996 = vadd.s32 %v3957, 312
        %v3997 = vadd.s32 %v3957, 320
        %v3998 = vadd.s32 %v3957, 328
        %v3999 = vadd.s32 %v3957, 336
        %v4000 = vadd.s32 %v3957, 344
        %v4001 = vadd.s32 %v3957, 352
        %v4002 = vadd.s32 %v3957, 360
        %v4003 = vadd.s32 %v3957, 368
        %v4004 = vadd.s32 %v3957, 376
        %v4005 = vadd.s32 %v3957, 384
        %v4006 = vadd.s32 %v3957, 392
        %v4007 = vadd.s32 %v3957, 400
        %v4008 = vadd.s32 %v3957, 408
        %v4009 = vadd.s32 %v3957, 416
        %v4010 = vadd.s32 %v3957, 424
        %v4011 = vadd.s32 %v3957, 432
        %v4012 = vadd.s32 %v3957, 440
        %v4013 = vadd.s32 %v3957, 448
        %v4014 = vadd.s32 %v3957, 456
        %v4015 = vadd.s32 %v3957, 464
        %v4016 = vadd.s32 %v3957, 472
        %v4017 = vadd.s32 %v3957, 480
        %v4018 = vadd.s32 %v3957, 488
        %v4019 = vadd.s32 %v3957, 496
        %v4020 = vadd.s32 %v3957, 504
        %v4021 = vadd.s32 %v3957, 512
        %v4022 = vadd.s32 %v3957, 520
        %v4023 = vadd.s32 %v3957, 528
        %v4024 = vadd.s32 %v3957, 536
        %v4025 = vadd.s32 %v3957, 544
        %v4026 = vadd.s32 %v3957, 552
        %v4027 = vadd.s32 %v3957, 560
        %v4028 = vadd.s32 %v3957, 568
        %v4029 = vadd.s32 %v3957, 576
        %v4030 = vadd.s32 %v3957, 584
        %v4031 = vadd.s32 %v3957, 592
        %v4032 = vadd.s32 %v3957, 600
        %v4033 = vadd.s32 %v3957, 608
        %v4034 = vadd.s32 %v3957, 616
        %v4035 = vadd.s32 %v3957, 624
        %v4036 = vadd.s32 %v3957, 632
        %v4037 = vadd.s32 %v3957, 640
        %v4038 = vadd.s32 %v3957, 648
        %v4039 = vadd.s32 %v3957, 656
        %v4040 = vadd.s32 %v3957, 664
        %v4041 = vadd.s32 %v3957, 672
        %v4042 = vadd.s32 %v3957, 680
        %v4043 = vadd.s32 %v3957, 688
        %v4044 = vadd.s32 %v3957, 696
        %v4045 = vadd.s32 %v3957, 704
        %v4046 = vadd.s32 %v3957, 712
        %v4047 = vadd.s32 %v3957, 720
        %v4048 = vadd.s32 %v3957, 728
        %v4049 = vadd.s32 %v3957, 736
        %v4050 = vadd.s32 %v3957, 744
        %v4051 = vadd.s32 %v3957, 752
        %v4052 = vadd.s32 %v3957, 760
        %v4053 = vadd.s32 %v3957, 768
        %v4054 = vadd.s32 %v3957, 776
        %v4055 = vadd.s32 %v3957, 784
        %v4056 = vadd.s32 %v3957, 792
        %v4057 = vadd.s32 %v3957, 800
        %v4058 = vadd.s32 %v3957, 808
        %v4059 = vadd.s32 %v3957, 816
        %v4060 = vadd.s32 %v3957, 824
        %v4061 = vadd.s32 %v3957, 832
        %v4062 = vadd.s32 %v3957, 840
        %v4063 = vadd.s32 %v3957, 848
        %v4064 = vadd.s32 %v3957, 856
        %v4065 = vadd.s32 %v3957, 864
        %v4066 = vadd.s32 %v3957, 872
        %v4067 = vadd.s32 %v3957, 880
        %v4068 = vadd.s32 %v3957, 888
        %v4069 = vadd.s32 %v3957, 896
        %v4070 = vadd.s32 %v3957, 904
        %v4071 = vadd.s32 %v3957, 912
        %v4072 = vadd.s32 %v3957, 920
        %v4073 = vadd.s32 %v3957, 928
        %v4074 = vadd.s32 %v3957, 936
        %v4075 = vadd.s32 %v3957, 944
        %v4076 = vadd.s32 %v3957, 952
        %v4077 = vadd.s32 %v3957, 960
        %v4078 = vadd.s32 %v3957, 968
        %v4079 = vadd.s32 %v3957, 976
        %v4080 = vadd.s32 %v3957, 984
        %v4081 = vadd.s32 %v3957, 992
        %v4082 = vadd.s32 %v3957, 1000
        %v4083 = vadd.s32 %v3957, 1008
        %v4084 = vadd.s32 %v3957, 1016
        %v4085 = vadd.s32 %v3957, 1024
        %v4086 = vadd.s32 %v3957, 1032
        %v4087 = vadd.s32 %v3957, 1040
        %v4088 = vadd.s32 %v3957, 1048
        %v4089 = vadd.s32 %v3957, 1056
        %v4090 = vadd.s32 %v3957, 1064
        %v4091 = vadd.s32 %v3957, 1072
        %v4092 = vadd.s32 %v3957, 1080
        %v4093 = vadd.s32 %v3957, 1088
        %v4094 = vadd.s32 %v3957, 1096
        %v4095 = vadd.s32 %v3957, 1104
        %v4096 = vadd.s32 %v3957, 1112
        %v4097 = vadd.s32 %v3957, 1120
        %v4098 = vadd.s32 %v3957, 1128
        %v4099 = vadd.s32 %v3957, 1136
        %v4100 = vadd.s32 %v3957, 1144
        %v4101 = vadd.s32 %v3957, 1152
        %v4102 = vadd.s32 %v3957, 1160
        %v4103 = vadd.s32 %v3957, 1168
        %v4104 = vadd.s32 %v3957, 1176
        %v4105 = vadd.s32 %v3957, 1184
        %v4106 = vadd.s32 %v3957, 1192
        %v4107 = vadd.s32 %v3957, 1200
        %v4108 = vadd.s32 %v3957, 1208
        %v4109 = vadd.s32 %v3957, 1216
        %v4110 = vadd.s32 %v3957, 1224
        %v4111 = vadd.s32 %v3957, 1232
        %v4112 = vadd.s32 %v3957, 1240
        %v4113 = vadd.s32 %v3957, 1248
        %v4114 = vadd.s32 %v3957, 1256
        %v4115 = vadd.s32 %v3957, 1264
        %v4116 = vadd.s32 %v3957, 1272
        %v4117 = vadd.s32 %v3957, 1280
        %v4118 = vadd.s32 %v3957, 1288
        %v4119 = vadd.s32 %v3957, 1296
        %v4120 = vadd.s32 %v3957, 1304
        %v4121 = vadd.s32 %v3957, 1312
        %v4122 = vadd.s32 %v3957, 1320
        %v4123 = vadd.s32 %v3957, 1328
        %v4124 = vadd.s32 %v3957, 1336
        %v4125 = vadd.s32 %v3957, 1344
        %v4126 = vadd.s32 %v3957, 1352
        %v4127 = vadd.s32 %v3957, 1360
        %v4128 = vadd.s32 %v3957, 1368
        %v4129 = vadd.s32 %v3957, 1376
        %v4130 = vadd.s32 %v3957, 1384
        %v4131 = vadd.s32 %v3957, 1392
        %v4132 = vadd.s32 %v3957, 1400
        %v4133 = vadd.s32 %v3957, 1408
        %v4134 = vadd.s32 %v3957, 1416
        %v4135 = vadd.s32 %v3957, 1424
        %v4136 = vadd.s32 %v3957, 1432
        %v4137 = vadd.s32 %v3957, 1440
        %v4138 = vadd.s32 %v3957, 1448
        %v4139 = vadd.s32 %v3957, 1456
        %v4140 = vadd.s32 %v3957, 1464
        %v4141 = vadd.s32 %v3957, 1472
        %v4142 = vadd.s32 %v3957, 1480
        %v4143 = vadd.s32 %v3957, 1488
        %v4144 = vadd.s32 %v3957, 1496
        %v4145 = vadd.s32 %v3957, 1504
        %v4146 = vadd.s32 %v3957, 1512
        %v4147 = vadd.s32 %v3957, 1520
        %v4148 = vadd.s32 %v3957, 1528
        %v4149 = vadd.s32 %v3957, 1536
        %v4150 = vadd.s32 %v3957, 1544
        %v4151 = vadd.s32 %v3957, 1552
        %v4152 = vadd.s32 %v3957, 1560
        %v4153 = vadd.s32 %v3957, 1568
        %v4154 = vadd.s32 %v3957, 1576
        %v4155 = vadd.s32 %v3957, 1584
        %v4156 = vadd.s32 %v3957, 1592
        %v4157 = vadd.s32 %v3957, 1600
        %v4158 = vadd.s32 %v3957, 1608
        %v4159 = vadd.s32 %v3957, 1616
        %v4160 = vadd.s32 %v3957, 1624
        %v4161 = vadd.s32 %v3957, 1632
        %v4162 = vadd.s32 %v3957, 1640
        %v4163 = vadd.s32 %v3957, 1648
        %v4164 = vadd.s32 %v3957, 1656
        %v4165 = vadd.s32 %v3957, 1664
        %v4166 = vadd.s32 %v3957, 1672
        %v4167 = vadd.s32 %v3957, 1680
        %v4168 = vadd.s32 %v3957, 1688
        %v4169 = vadd.s32 %v3957, 1696
        %v4170 = vadd.s32 %v3957, 1704
        %v4171 = vadd.s32 %v3957, 1712
        %v4172 = vadd.s32 %v3957, 1720
        %v4173 = vadd.s32 %v3957, 1728
        %v4174 = vadd.s32 %v3957, 1736
        %v4175 = vadd.s32 %v3957, 1744
        %v4176 = vadd.s32 %v3957, 1752
        %v4177 = vadd.s32 %v3957, 1760
        %v4178 = vadd.s32 %v3957, 1768
        %v4179 = vadd.s32 %v3957, 1776
        %v4180 = vadd.s32 %v3957, 1784
        %v4181 = vadd.s32 %v3957, 1792
        %v4182 = vadd.s32 %v3957, 1800
        %v4183 = vadd.s32 %v3957, 1808
        %v4184 = vadd.s32 %v3957, 1816
        %v4185 = vadd.s32 %v3957, 1824
        %v4186 = vadd.s32 %v3957, 1832
        %v4187 = vadd.s32 %v3957, 1840
        %v4188 = vadd.s32 %v3957, 1848
        %v4189 = vadd.s32 %v3957, 1856
        %v4190 = vadd.s32 %v3957, 1864
        %v4191 = vadd.s32 %v3957, 1872
        %v4192 = vadd.s32 %v3957, 1880
        %v4193 = vadd.s32 %v3957, 1888
        %v4194 = vadd.s32 %v3957, 1896
        %v4195 = vadd.s32 %v3957, 1904
        %v4196 = vadd.s32 %v3957, 1912
        %v4197 = vadd.s32 %v3957, 1920
        %v4198 = vadd.s32 %v3957, 1928
        %v4199 = vadd.s32 %v3957, 1936
        %v4200 = vadd.s32 %v3957, 1944
        %v4201 = vadd.s32 %v3957, 1952
        %v4202 = vadd.s32 %v3957, 1960
        %v4203 = vadd.s32 %v3957, 1968
        %v4204 = vadd.s32 %v3957, 1976
        %v4205 = vadd.s32 %v3957, 1984
        %v4206 = vadd.s32 %v3957, 1992
        %v4207 = vadd.s32 %v3957, 2000
        %v4208 = vadd.s32 %v3957, 2008
        %v4209 = vadd.s32 %v3957, 2016
        %v4210 = vadd.s32 %v3957, 2024
        %v4211 = vadd.s32 %v3957, 2032
        %v4212 = vadd.s32 %v3957, 2040
        %v4213 = vstv %s85
        %v4214 = vadd.s32 %v4213, %v3957
        %v4215 = vadd.s32 %v4213, %v3958
        %v4216 = vadd.s32 %v4213, %v3959
        %v4217 = vadd.s32 %v4213, %v3960
        %v4218 = vadd.s32 %v4213, %v3961
        %v4219 = vadd.s32 %v4213, %v3962
        %v4220 = vadd.s32 %v4213, %v3963
        %v4221 = vadd.s32 %v4213, %v3964
        %v4222 = vadd.s32 %v4213, %v3965
        %v4223 = vadd.s32 %v4213, %v3966
        %v4224 = vadd.s32 %v4213, %v3967
        %v4225 = vadd.s32 %v4213, %v3968
        %v4226 = vadd.s32 %v4213, %v3969
        %v4227 = vadd.s32 %v4213, %v3970
        %v4228 = vadd.s32 %v4213, %v3971
        %v4229 = vadd.s32 %v4213, %v3972
        %v4230 = vadd.s32 %v4213, %v3973
        %v4231 = vadd.s32 %v4213, %v3974
        %v4232 = vadd.s32 %v4213, %v3975
        %v4233 = vadd.s32 %v4213, %v3976
        %v4234 = vadd.s32 %v4213, %v3977
        %v4235 = vadd.s32 %v4213, %v3978
        %v4236 = vadd.s32 %v4213, %v3979
        %v4237 = vadd.s32 %v4213, %v3980
        %v4238 = vadd.s32 %v4213, %v3981
        %v4239 = vadd.s32 %v4213, %v3982
        %v4240 = vadd.s32 %v4213, %v3983
        %v4241 = vadd.s32 %v4213, %v3984
        %v4242 = vadd.s32 %v4213, %v3985
        %v4243 = vadd.s32 %v4213, %v3986
        %v4244 = vadd.s32 %v4213, %v3987
        %v4245 = vadd.s32 %v4213, %v3988
        %v4246 = vadd.s32 %v4213, %v3989
        %v4247 = vadd.s32 %v4213, %v3990
        %v4248 = vadd.s32 %v4213, %v3991
        %v4249 = vadd.s32 %v4213, %v3992
        %v4250 = vadd.s32 %v4213, %v3993
        %v4251 = vadd.s32 %v4213, %v3994
        %v4252 = vadd.s32 %v4213, %v3995
        %v4253 = vadd.s32 %v4213, %v3996
        %v4254 = vadd.s32 %v4213, %v3997
        %v4255 = vadd.s32 %v4213, %v3998
        %v4256 = vadd.s32 %v4213, %v3999
        %v4257 = vadd.s32 %v4213, %v4000
        %v4258 = vadd.s32 %v4213, %v4001
        %v4259 = vadd.s32 %v4213, %v4002
        %v4260 = vadd.s32 %v4213, %v4003
        %v4261 = vadd.s32 %v4213, %v4004
        %v4262 = vadd.s32 %v4213, %v4005
        %v4263 = vadd.s32 %v4213, %v4006
        %v4264 = vadd.s32 %v4213, %v4007
        %v4265 = vadd.s32 %v4213, %v4008
        %v4266 = vadd.s32 %v4213, %v4009
        %v4267 = vadd.s32 %v4213, %v4010
        %v4268 = vadd.s32 %v4213, %v4011
        %v4269 = vadd.s32 %v4213, %v4012
        %v4270 = vadd.s32 %v4213, %v4013
        %v4271 = vadd.s32 %v4213, %v4014
        %v4272 = vadd.s32 %v4213, %v4015
        %v4273 = vadd.s32 %v4213, %v4016
        %v4274 = vadd.s32 %v4213, %v4017
        %v4275 = vadd.s32 %v4213, %v4018
        %v4276 = vadd.s32 %v4213, %v4019
        %v4277 = vadd.s32 %v4213, %v4020
        %v4278 = vadd.s32 %v4213, %v4021
        %v4279 = vadd.s32 %v4213, %v4022
        %v4280 = vadd.s32 %v4213, %v4023
        %v4281 = vadd.s32 %v4213, %v4024
        %v4282 = vadd.s32 %v4213, %v4025
        %v4283 = vadd.s32 %v4213, %v4026
        %v4284 = vadd.s32 %v4213, %v4027
        %v4285 = vadd.s32 %v4213, %v4028
        %v4286 = vadd.s32 %v4213, %v4029
        %v4287 = vadd.s32 %v4213, %v4030
        %v4288 = vadd.s32 %v4213, %v4031
        %v4289 = vadd.s32 %v4213, %v4032
        %v4290 = vadd.s32 %v4213, %v4033
        %v4291 = vadd.s32 %v4213, %v4034
        %v4292 = vadd.s32 %v4213, %v4035
        %v4293 = vadd.s32 %v4213, %v4036
        %v4294 = vadd.s32 %v4213, %v4037
        %v4295 = vadd.s32 %v4213, %v4038
        %v4296 = vadd.s32 %v4213, %v4039
        %v4297 = vadd.s32 %v4213, %v4040
        %v4298 = vadd.s32 %v4213, %v4041
        %v4299 = vadd.s32 %v4213, %v4042
        %v4300 = vadd.s32 %v4213, %v4043
        %v4301 = vadd.s32 %v4213, %v4044
        %v4302 = vadd.s32 %v4213, %v4045
        %v4303 = vadd.s32 %v4213, %v4046
        %v4304 = vadd.s32 %v4213, %v4047
        %v4305 = vadd.s32 %v4213, %v4048
        %v4306 = vadd.s32 %v4213, %v4049
        %v4307 = vadd.s32 %v4213, %v4050
        %v4308 = vadd.s32 %v4213, %v4051
        %v4309 = vadd.s32 %v4213, %v4052
        %v4310 = vadd.s32 %v4213, %v4053
        %v4311 = vadd.s32 %v4213, %v4054
        %v4312 = vadd.s32 %v4213, %v4055
        %v4313 = vadd.s32 %v4213, %v4056
        %v4314 = vadd.s32 %v4213, %v4057
        %v4315 = vadd.s32 %v4213, %v4058
        %v4316 = vadd.s32 %v4213, %v4059
        %v4317 = vadd.s32 %v4213, %v4060
        %v4318 = vadd.s32 %v4213, %v4061
        %v4319 = vadd.s32 %v4213, %v4062
        %v4320 = vadd.s32 %v4213, %v4063
        %v4321 = vadd.s32 %v4213, %v4064
        %v4322 = vadd.s32 %v4213, %v4065
        %v4323 = vadd.s32 %v4213, %v4066
        %v4324 = vadd.s32 %v4213, %v4067
        %v4325 = vadd.s32 %v4213, %v4068
        %v4326 = vadd.s32 %v4213, %v4069
        %v4327 = vadd.s32 %v4213, %v4070
        %v4328 = vadd.s32 %v4213, %v4071
        %v4329 = vadd.s32 %v4213, %v4072
        %v4330 = vadd.s32 %v4213, %v4073
        %v4331 = vadd.s32 %v4213, %v4074
        %v4332 = vadd.s32 %v4213, %v4075
        %v4333 = vadd.s32 %v4213, %v4076
        %v4334 = vadd.s32 %v4213, %v4077
        %v4335 = vadd.s32 %v4213, %v4078
        %v4336 = vadd.s32 %v4213, %v4079
        %v4337 = vadd.s32 %v4213, %v4080
        %v4338 = vadd.s32 %v4213, %v4081
        %v4339 = vadd.s32 %v4213, %v4082
        %v4340 = vadd.s32 %v4213, %v4083
        %v4341 = vadd.s32 %v4213, %v4084
        %v4342 = vadd.s32 %v4213, %v4085
        %v4343 = vadd.s32 %v4213, %v4086
        %v4344 = vadd.s32 %v4213, %v4087
        %v4345 = vadd.s32 %v4213, %v4088
        %v4346 = vadd.s32 %v4213, %v4089
        %v4347 = vadd.s32 %v4213, %v4090
        %v4348 = vadd.s32 %v4213, %v4091
        %v4349 = vadd.s32 %v4213, %v4092
        %v4350 = vadd.s32 %v4213, %v4093
        %v4351 = vadd.s32 %v4213, %v4094
        %v4352 = vadd.s32 %v4213, %v4095
        %v4353 = vadd.s32 %v4213, %v4096
        %v4354 = vadd.s32 %v4213, %v4097
        %v4355 = vadd.s32 %v4213, %v4098
        %v4356 = vadd.s32 %v4213, %v4099
        %v4357 = vadd.s32 %v4213, %v4100
        %v4358 = vadd.s32 %v4213, %v4101
        %v4359 = vadd.s32 %v4213, %v4102
        %v4360 = vadd.s32 %v4213, %v4103
        %v4361 = vadd.s32 %v4213, %v4104
        %v4362 = vadd.s32 %v4213, %v4105
        %v4363 = vadd.s32 %v4213, %v4106
        %v4364 = vadd.s32 %v4213, %v4107
        %v4365 = vadd.s32 %v4213, %v4108
        %v4366 = vadd.s32 %v4213, %v4109
        %v4367 = vadd.s32 %v4213, %v4110
        %v4368 = vadd.s32 %v4213, %v4111
        %v4369 = vadd.s32 %v4213, %v4112
        %v4370 = vadd.s32 %v4213, %v4113
        %v4371 = vadd.s32 %v4213, %v4114
        %v4372 = vadd.s32 %v4213, %v4115
        %v4373 = vadd.s32 %v4213, %v4116
        %v4374 = vadd.s32 %v4213, %v4117
        %v4375 = vadd.s32 %v4213, %v4118
        %v4376 = vadd.s32 %v4213, %v4119
        %v4377 = vadd.s32 %v4213, %v4120
        %v4378 = vadd.s32 %v4213, %v4121
        %v4379 = vadd.s32 %v4213, %v4122
        %v4380 = vadd.s32 %v4213, %v4123
        %v4381 = vadd.s32 %v4213, %v4124
        %v4382 = vadd.s32 %v4213, %v4125
        %v4383 = vadd.s32 %v4213, %v4126
        %v4384 = vadd.s32 %v4213, %v4127
        %v4385 = vadd.s32 %v4213, %v4128
        %v4386 = vadd.s32 %v4213, %v4129
        %v4387 = vadd.s32 %v4213, %v4130
        %v4388 = vadd.s32 %v4213, %v4131
        %v4389 = vadd.s32 %v4213, %v4132
        %v4390 = vadd.s32 %v4213, %v4133
        %v4391 = vadd.s32 %v4213, %v4134
        %v4392 = vadd.s32 %v4213, %v4135
        %v4393 = vadd.s32 %v4213, %v4136
        %v4394 = vadd.s32 %v4213, %v4137
        %v4395 = vadd.s32 %v4213, %v4138
        %v4396 = vadd.s32 %v4213, %v4139
        %v4397 = vadd.s32 %v4213, %v4140
        %v4398 = vadd.s32 %v4213, %v4141
        %v4399 = vadd.s32 %v4213, %v4142
        %v4400 = vadd.s32 %v4213, %v4143
        %v4401 = vadd.s32 %v4213, %v4144
        %v4402 = vadd.s32 %v4213, %v4145
        %v4403 = vadd.s32 %v4213, %v4146
        %v4404 = vadd.s32 %v4213, %v4147
        %v4405 = vadd.s32 %v4213, %v4148
        %v4406 = vadd.s32 %v4213, %v4149
        %v4407 = vadd.s32 %v4213, %v4150
        %v4408 = vadd.s32 %v4213, %v4151
        %v4409 = vadd.s32 %v4213, %v4152
        %v4410 = vadd.s32 %v4213, %v4153
        %v4411 = vadd.s32 %v4213, %v4154
        %v4412 = vadd.s32 %v4213, %v4155
        %v4413 = vadd.s32 %v4213, %v4156
        %v4414 = vadd.s32 %v4213, %v4157
        %v4415 = vadd.s32 %v4213, %v4158
        %v4416 = vadd.s32 %v4213, %v4159
        %v4417 = vadd.s32 %v4213, %v4160
        %v4418 = vadd.s32 %v4213, %v4161
        %v4419 = vadd.s32 %v4213, %v4162
        %v4420 = vadd.s32 %v4213, %v4163
        %v4421 = vadd.s32 %v4213, %v4164
        %v4422 = vadd.s32 %v4213, %v4165
        %v4423 = vadd.s32 %v4213, %v4166
        %v4424 = vadd.s32 %v4213, %v4167
        %v4425 = vadd.s32 %v4213, %v4168
        %v4426 = vadd.s32 %v4213, %v4169
        %v4427 = vadd.s32 %v4213, %v4170
        %v4428 = vadd.s32 %v4213, %v4171
        %v4429 = vadd.s32 %v4213, %v4172
        %v4430 = vadd.s32 %v4213, %v4173
        %v4431 = vadd.s32 %v4213, %v4174
        %v4432 = vadd.s32 %v4213, %v4175
        %v4433 = vadd.s32 %v4213, %v4176
        %v4434 = vadd.s32 %v4213, %v4177
        %v4435 = vadd.s32 %v4213, %v4178
        %v4436 = vadd.s32 %v4213, %v4179
        %v4437 = vadd.s32 %v4213, %v4180
        %v4438 = vadd.s32 %v4213, %v4181
        %v4439 = vadd.s32 %v4213, %v4182
        %v4440 = vadd.s32 %v4213, %v4183
        %v4441 = vadd.s32 %v4213, %v4184
        %v4442 = vadd.s32 %v4213, %v4185
        %v4443 = vadd.s32 %v4213, %v4186
        %v4444 = vadd.s32 %v4213, %v4187
        %v4445 = vadd.s32 %v4213, %v4188
        %v4446 = vadd.s32 %v4213, %v4189
        %v4447 = vadd.s32 %v4213, %v4190
        %v4448 = vadd.s32 %v4213, %v4191
        %v4449 = vadd.s32 %v4213, %v4192
        %v4450 = vadd.s32 %v4213, %v4193
        %v4451 = vadd.s32 %v4213, %v4194
        %v4452 = vadd.s32 %v4213, %v4195
        %v4453 = vadd.s32 %v4213, %v4196
        %v4454 = vadd.s32 %v4213, %v4197
        %v4455 = vadd.s32 %v4213, %v4198
        %v4456 = vadd.s32 %v4213, %v4199
        %v4457 = vadd.s32 %v4213, %v4200
        %v4458 = vadd.s32 %v4213, %v4201
        %v4459 = vadd.s32 %v4213, %v4202
        %v4460 = vadd.s32 %v4213, %v4203
        %v4461 = vadd.s32 %v4213, %v4204
        %v4462 = vadd.s32 %v4213, %v4205
        %v4463 = vadd.s32 %v4213, %v4206
        %v4464 = vadd.s32 %v4213, %v4207
        %v4465 = vadd.s32 %v4213, %v4208
        %v4466 = vadd.s32 %v4213, %v4209
        %v4467 = vadd.s32 %v4213, %v4210
        %v4468 = vadd.s32 %v4213, %v4211
        %v4469 = vadd.s32 %v4213, %v4212
        %vm4470 = vcmp.lt.s32.totalorder %v4214, 16
        %vm4471 = vcmp.lt.s32.totalorder %v4215, 16
        %vm4472 = vcmp.lt.s32.totalorder %v4216, 16
        %vm4473 = vcmp.lt.s32.totalorder %v4217, 16
        %vm4474 = vcmp.lt.s32.totalorder %v4218, 16
        %vm4475 = vcmp.lt.s32.totalorder %v4219, 16
        %vm4476 = vcmp.lt.s32.totalorder %v4220, 16
        %vm4477 = vcmp.lt.s32.totalorder %v4221, 16
        %vm4478 = vcmp.lt.s32.totalorder %v4222, 16
        %vm4479 = vcmp.lt.s32.totalorder %v4223, 16
        %vm4480 = vcmp.lt.s32.totalorder %v4224, 16
        %vm4481 = vcmp.lt.s32.totalorder %v4225, 16
        %vm4482 = vcmp.lt.s32.totalorder %v4226, 16
        %vm4483 = vcmp.lt.s32.totalorder %v4227, 16
        %vm4484 = vcmp.lt.s32.totalorder %v4228, 16
        %vm4485 = vcmp.lt.s32.totalorder %v4229, 16
        %vm4486 = vcmp.lt.s32.totalorder %v4230, 16
        %vm4487 = vcmp.lt.s32.totalorder %v4231, 16
        %vm4488 = vcmp.lt.s32.totalorder %v4232, 16
        %vm4489 = vcmp.lt.s32.totalorder %v4233, 16
        %vm4490 = vcmp.lt.s32.totalorder %v4234, 16
        %vm4491 = vcmp.lt.s32.totalorder %v4235, 16
        %vm4492 = vcmp.lt.s32.totalorder %v4236, 16
        %vm4493 = vcmp.lt.s32.totalorder %v4237, 16
        %vm4494 = vcmp.lt.s32.totalorder %v4238, 16
        %vm4495 = vcmp.lt.s32.totalorder %v4239, 16
        %vm4496 = vcmp.lt.s32.totalorder %v4240, 16
        %vm4497 = vcmp.lt.s32.totalorder %v4241, 16
        %vm4498 = vcmp.lt.s32.totalorder %v4242, 16
        %vm4499 = vcmp.lt.s32.totalorder %v4243, 16
        %vm4500 = vcmp.lt.s32.totalorder %v4244, 16
        %vm4501 = vcmp.lt.s32.totalorder %v4245, 16
        %vm4502 = vcmp.lt.s32.totalorder %v4246, 16
        %vm4503 = vcmp.lt.s32.totalorder %v4247, 16
        %vm4504 = vcmp.lt.s32.totalorder %v4248, 16
        %vm4505 = vcmp.lt.s32.totalorder %v4249, 16
        %vm4506 = vcmp.lt.s32.totalorder %v4250, 16
        %vm4507 = vcmp.lt.s32.totalorder %v4251, 16
        %vm4508 = vcmp.lt.s32.totalorder %v4252, 16
        %vm4509 = vcmp.lt.s32.totalorder %v4253, 16
        %vm4510 = vcmp.lt.s32.totalorder %v4254, 16
        %vm4511 = vcmp.lt.s32.totalorder %v4255, 16
        %vm4512 = vcmp.lt.s32.totalorder %v4256, 16
        %vm4513 = vcmp.lt.s32.totalorder %v4257, 16
        %vm4514 = vcmp.lt.s32.totalorder %v4258, 16
        %vm4515 = vcmp.lt.s32.totalorder %v4259, 16
        %vm4516 = vcmp.lt.s32.totalorder %v4260, 16
        %vm4517 = vcmp.lt.s32.totalorder %v4261, 16
        %vm4518 = vcmp.lt.s32.totalorder %v4262, 16
        %vm4519 = vcmp.lt.s32.totalorder %v4263, 16
        %vm4520 = vcmp.lt.s32.totalorder %v4264, 16
        %vm4521 = vcmp.lt.s32.totalorder %v4265, 16
        %vm4522 = vcmp.lt.s32.totalorder %v4266, 16
        %vm4523 = vcmp.lt.s32.totalorder %v4267, 16
        %vm4524 = vcmp.lt.s32.totalorder %v4268, 16
        %vm4525 = vcmp.lt.s32.totalorder %v4269, 16
        %vm4526 = vcmp.lt.s32.totalorder %v4270, 16
        %vm4527 = vcmp.lt.s32.totalorder %v4271, 16
        %vm4528 = vcmp.lt.s32.totalorder %v4272, 16
        %vm4529 = vcmp.lt.s32.totalorder %v4273, 16
        %vm4530 = vcmp.lt.s32.totalorder %v4274, 16
        %vm4531 = vcmp.lt.s32.totalorder %v4275, 16
        %vm4532 = vcmp.lt.s32.totalorder %v4276, 16
        %vm4533 = vcmp.lt.s32.totalorder %v4277, 16
        %vm4534 = vcmp.lt.s32.totalorder %v4278, 16
        %vm4535 = vcmp.lt.s32.totalorder %v4279, 16
        %vm4536 = vcmp.lt.s32.totalorder %v4280, 16
        %vm4537 = vcmp.lt.s32.totalorder %v4281, 16
        %vm4538 = vcmp.lt.s32.totalorder %v4282, 16
        %vm4539 = vcmp.lt.s32.totalorder %v4283, 16
        %vm4540 = vcmp.lt.s32.totalorder %v4284, 16
        %vm4541 = vcmp.lt.s32.totalorder %v4285, 16
        %vm4542 = vcmp.lt.s32.totalorder %v4286, 16
        %vm4543 = vcmp.lt.s32.totalorder %v4287, 16
        %vm4544 = vcmp.lt.s32.totalorder %v4288, 16
        %vm4545 = vcmp.lt.s32.totalorder %v4289, 16
        %vm4546 = vcmp.lt.s32.totalorder %v4290, 16
        %vm4547 = vcmp.lt.s32.totalorder %v4291, 16
        %vm4548 = vcmp.lt.s32.totalorder %v4292, 16
        %vm4549 = vcmp.lt.s32.totalorder %v4293, 16
        %vm4550 = vcmp.lt.s32.totalorder %v4294, 16
        %vm4551 = vcmp.lt.s32.totalorder %v4295, 16
        %vm4552 = vcmp.lt.s32.totalorder %v4296, 16
        %vm4553 = vcmp.lt.s32.totalorder %v4297, 16
        %vm4554 = vcmp.lt.s32.totalorder %v4298, 16
        %vm4555 = vcmp.lt.s32.totalorder %v4299, 16
        %vm4556 = vcmp.lt.s32.totalorder %v4300, 16
        %vm4557 = vcmp.lt.s32.totalorder %v4301, 16
        %vm4558 = vcmp.lt.s32.totalorder %v4302, 16
        %vm4559 = vcmp.lt.s32.totalorder %v4303, 16
        %vm4560 = vcmp.lt.s32.totalorder %v4304, 16
        %vm4561 = vcmp.lt.s32.totalorder %v4305, 16
        %vm4562 = vcmp.lt.s32.totalorder %v4306, 16
        %vm4563 = vcmp.lt.s32.totalorder %v4307, 16
        %vm4564 = vcmp.lt.s32.totalorder %v4308, 16
        %vm4565 = vcmp.lt.s32.totalorder %v4309, 16
        %vm4566 = vcmp.lt.s32.totalorder %v4310, 16
        %vm4567 = vcmp.lt.s32.totalorder %v4311, 16
        %vm4568 = vcmp.lt.s32.totalorder %v4312, 16
        %vm4569 = vcmp.lt.s32.totalorder %v4313, 16
        %vm4570 = vcmp.lt.s32.totalorder %v4314, 16
        %vm4571 = vcmp.lt.s32.totalorder %v4315, 16
        %vm4572 = vcmp.lt.s32.totalorder %v4316, 16
        %vm4573 = vcmp.lt.s32.totalorder %v4317, 16
        %vm4574 = vcmp.lt.s32.totalorder %v4318, 16
        %vm4575 = vcmp.lt.s32.totalorder %v4319, 16
        %vm4576 = vcmp.lt.s32.totalorder %v4320, 16
        %vm4577 = vcmp.lt.s32.totalorder %v4321, 16
        %vm4578 = vcmp.lt.s32.totalorder %v4322, 16
        %vm4579 = vcmp.lt.s32.totalorder %v4323, 16
        %vm4580 = vcmp.lt.s32.totalorder %v4324, 16
        %vm4581 = vcmp.lt.s32.totalorder %v4325, 16
        %vm4582 = vcmp.lt.s32.totalorder %v4326, 16
        %vm4583 = vcmp.lt.s32.totalorder %v4327, 16
        %vm4584 = vcmp.lt.s32.totalorder %v4328, 16
        %vm4585 = vcmp.lt.s32.totalorder %v4329, 16
        %vm4586 = vcmp.lt.s32.totalorder %v4330, 16
        %vm4587 = vcmp.lt.s32.totalorder %v4331, 16
        %vm4588 = vcmp.lt.s32.totalorder %v4332, 16
        %vm4589 = vcmp.lt.s32.totalorder %v4333, 16
        %vm4590 = vcmp.lt.s32.totalorder %v4334, 16
        %vm4591 = vcmp.lt.s32.totalorder %v4335, 16
        %vm4592 = vcmp.lt.s32.totalorder %v4336, 16
        %vm4593 = vcmp.lt.s32.totalorder %v4337, 16
        %vm4594 = vcmp.lt.s32.totalorder %v4338, 16
        %vm4595 = vcmp.lt.s32.totalorder %v4339, 16
        %vm4596 = vcmp.lt.s32.totalorder %v4340, 16
        %vm4597 = vcmp.lt.s32.totalorder %v4341, 16
        %vm4598 = vcmp.lt.s32.totalorder %v4342, 16
        %vm4599 = vcmp.lt.s32.totalorder %v4343, 16
        %vm4600 = vcmp.lt.s32.totalorder %v4344, 16
        %vm4601 = vcmp.lt.s32.totalorder %v4345, 16
        %vm4602 = vcmp.lt.s32.totalorder %v4346, 16
        %vm4603 = vcmp.lt.s32.totalorder %v4347, 16
        %vm4604 = vcmp.lt.s32.totalorder %v4348, 16
        %vm4605 = vcmp.lt.s32.totalorder %v4349, 16
        %vm4606 = vcmp.lt.s32.totalorder %v4350, 16
        %vm4607 = vcmp.lt.s32.totalorder %v4351, 16
        %vm4608 = vcmp.lt.s32.totalorder %v4352, 16
        %vm4609 = vcmp.lt.s32.totalorder %v4353, 16
        %vm4610 = vcmp.lt.s32.totalorder %v4354, 16
        %vm4611 = vcmp.lt.s32.totalorder %v4355, 16
        %vm4612 = vcmp.lt.s32.totalorder %v4356, 16
        %vm4613 = vcmp.lt.s32.totalorder %v4357, 16
        %vm4614 = vcmp.lt.s32.totalorder %v4358, 16
        %vm4615 = vcmp.lt.s32.totalorder %v4359, 16
        %vm4616 = vcmp.lt.s32.totalorder %v4360, 16
        %vm4617 = vcmp.lt.s32.totalorder %v4361, 16
        %vm4618 = vcmp.lt.s32.totalorder %v4362, 16
        %vm4619 = vcmp.lt.s32.totalorder %v4363, 16
        %vm4620 = vcmp.lt.s32.totalorder %v4364, 16
        %vm4621 = vcmp.lt.s32.totalorder %v4365, 16
        %vm4622 = vcmp.lt.s32.totalorder %v4366, 16
        %vm4623 = vcmp.lt.s32.totalorder %v4367, 16
        %vm4624 = vcmp.lt.s32.totalorder %v4368, 16
        %vm4625 = vcmp.lt.s32.totalorder %v4369, 16
        %vm4626 = vcmp.lt.s32.totalorder %v4370, 16
        %vm4627 = vcmp.lt.s32.totalorder %v4371, 16
        %vm4628 = vcmp.lt.s32.totalorder %v4372, 16
        %vm4629 = vcmp.lt.s32.totalorder %v4373, 16
        %vm4630 = vcmp.lt.s32.totalorder %v4374, 16
        %vm4631 = vcmp.lt.s32.totalorder %v4375, 16
        %vm4632 = vcmp.lt.s32.totalorder %v4376, 16
        %vm4633 = vcmp.lt.s32.totalorder %v4377, 16
        %vm4634 = vcmp.lt.s32.totalorder %v4378, 16
        %vm4635 = vcmp.lt.s32.totalorder %v4379, 16
        %vm4636 = vcmp.lt.s32.totalorder %v4380, 16
        %vm4637 = vcmp.lt.s32.totalorder %v4381, 16
        %vm4638 = vcmp.lt.s32.totalorder %v4382, 16
        %vm4639 = vcmp.lt.s32.totalorder %v4383, 16
        %vm4640 = vcmp.lt.s32.totalorder %v4384, 16
        %vm4641 = vcmp.lt.s32.totalorder %v4385, 16
        %vm4642 = vcmp.lt.s32.totalorder %v4386, 16
        %vm4643 = vcmp.lt.s32.totalorder %v4387, 16
        %vm4644 = vcmp.lt.s32.totalorder %v4388, 16
        %vm4645 = vcmp.lt.s32.totalorder %v4389, 16
        %vm4646 = vcmp.lt.s32.totalorder %v4390, 16
        %vm4647 = vcmp.lt.s32.totalorder %v4391, 16
        %vm4648 = vcmp.lt.s32.totalorder %v4392, 16
        %vm4649 = vcmp.lt.s32.totalorder %v4393, 16
        %vm4650 = vcmp.lt.s32.totalorder %v4394, 16
        %vm4651 = vcmp.lt.s32.totalorder %v4395, 16
        %vm4652 = vcmp.lt.s32.totalorder %v4396, 16
        %vm4653 = vcmp.lt.s32.totalorder %v4397, 16
        %vm4654 = vcmp.lt.s32.totalorder %v4398, 16
        %vm4655 = vcmp.lt.s32.totalorder %v4399, 16
        %vm4656 = vcmp.lt.s32.totalorder %v4400, 16
        %vm4657 = vcmp.lt.s32.totalorder %v4401, 16
        %vm4658 = vcmp.lt.s32.totalorder %v4402, 16
        %vm4659 = vcmp.lt.s32.totalorder %v4403, 16
        %vm4660 = vcmp.lt.s32.totalorder %v4404, 16
        %vm4661 = vcmp.lt.s32.totalorder %v4405, 16
        %vm4662 = vcmp.lt.s32.totalorder %v4406, 16
        %vm4663 = vcmp.lt.s32.totalorder %v4407, 16
        %vm4664 = vcmp.lt.s32.totalorder %v4408, 16
        %vm4665 = vcmp.lt.s32.totalorder %v4409, 16
        %vm4666 = vcmp.lt.s32.totalorder %v4410, 16
        %vm4667 = vcmp.lt.s32.totalorder %v4411, 16
        %vm4668 = vcmp.lt.s32.totalorder %v4412, 16
        %vm4669 = vcmp.lt.s32.totalorder %v4413, 16
        %vm4670 = vcmp.lt.s32.totalorder %v4414, 16
        %vm4671 = vcmp.lt.s32.totalorder %v4415, 16
        %vm4672 = vcmp.lt.s32.totalorder %v4416, 16
        %vm4673 = vcmp.lt.s32.totalorder %v4417, 16
        %vm4674 = vcmp.lt.s32.totalorder %v4418, 16
        %vm4675 = vcmp.lt.s32.totalorder %v4419, 16
        %vm4676 = vcmp.lt.s32.totalorder %v4420, 16
        %vm4677 = vcmp.lt.s32.totalorder %v4421, 16
        %vm4678 = vcmp.lt.s32.totalorder %v4422, 16
        %vm4679 = vcmp.lt.s32.totalorder %v4423, 16
        %vm4680 = vcmp.lt.s32.totalorder %v4424, 16
        %vm4681 = vcmp.lt.s32.totalorder %v4425, 16
        %vm4682 = vcmp.lt.s32.totalorder %v4426, 16
        %vm4683 = vcmp.lt.s32.totalorder %v4427, 16
        %vm4684 = vcmp.lt.s32.totalorder %v4428, 16
        %vm4685 = vcmp.lt.s32.totalorder %v4429, 16
        %vm4686 = vcmp.lt.s32.totalorder %v4430, 16
        %vm4687 = vcmp.lt.s32.totalorder %v4431, 16
        %vm4688 = vcmp.lt.s32.totalorder %v4432, 16
        %vm4689 = vcmp.lt.s32.totalorder %v4433, 16
        %vm4690 = vcmp.lt.s32.totalorder %v4434, 16
        %vm4691 = vcmp.lt.s32.totalorder %v4435, 16
        %vm4692 = vcmp.lt.s32.totalorder %v4436, 16
        %vm4693 = vcmp.lt.s32.totalorder %v4437, 16
        %vm4694 = vcmp.lt.s32.totalorder %v4438, 16
        %vm4695 = vcmp.lt.s32.totalorder %v4439, 16
        %vm4696 = vcmp.lt.s32.totalorder %v4440, 16
        %vm4697 = vcmp.lt.s32.totalorder %v4441, 16
        %vm4698 = vcmp.lt.s32.totalorder %v4442, 16
        %vm4699 = vcmp.lt.s32.totalorder %v4443, 16
        %vm4700 = vcmp.lt.s32.totalorder %v4444, 16
        %vm4701 = vcmp.lt.s32.totalorder %v4445, 16
        %vm4702 = vcmp.lt.s32.totalorder %v4446, 16
        %vm4703 = vcmp.lt.s32.totalorder %v4447, 16
        %vm4704 = vcmp.lt.s32.totalorder %v4448, 16
        %vm4705 = vcmp.lt.s32.totalorder %v4449, 16
        %vm4706 = vcmp.lt.s32.totalorder %v4450, 16
        %vm4707 = vcmp.lt.s32.totalorder %v4451, 16
        %vm4708 = vcmp.lt.s32.totalorder %v4452, 16
        %vm4709 = vcmp.lt.s32.totalorder %v4453, 16
        %vm4710 = vcmp.lt.s32.totalorder %v4454, 16
        %vm4711 = vcmp.lt.s32.totalorder %v4455, 16
        %vm4712 = vcmp.lt.s32.totalorder %v4456, 16
        %vm4713 = vcmp.lt.s32.totalorder %v4457, 16
        %vm4714 = vcmp.lt.s32.totalorder %v4458, 16
        %vm4715 = vcmp.lt.s32.totalorder %v4459, 16
        %vm4716 = vcmp.lt.s32.totalorder %v4460, 16
        %vm4717 = vcmp.lt.s32.totalorder %v4461, 16
        %vm4718 = vcmp.lt.s32.totalorder %v4462, 16
        %vm4719 = vcmp.lt.s32.totalorder %v4463, 16
        %vm4720 = vcmp.lt.s32.totalorder %v4464, 16
        %vm4721 = vcmp.lt.s32.totalorder %v4465, 16
        %vm4722 = vcmp.lt.s32.totalorder %v4466, 16
        %vm4723 = vcmp.lt.s32.totalorder %v4467, 16
        %vm4724 = vcmp.lt.s32.totalorder %v4468, 16
        %vm4725 = vcmp.lt.s32.totalorder %v4469, 16
        %v4726 = vsel %vm4470, %v3419, 0.0
        %v4727 = vsel %vm4471, %v3420, 0.0
        %v4728 = vsel %vm4472, %v3421, 0.0
        %v4729 = vsel %vm4473, %v3422, 0.0
        %v4730 = vsel %vm4474, %v3423, 0.0
        %v4731 = vsel %vm4475, %v3424, 0.0
        %v4732 = vsel %vm4476, %v3425, 0.0
        %v4733 = vsel %vm4477, %v3426, 0.0
        %v4734 = vsel %vm4478, %v3427, 0.0
        %v4735 = vsel %vm4479, %v3428, 0.0
        %v4736 = vsel %vm4480, %v3429, 0.0
        %v4737 = vsel %vm4481, %v3430, 0.0
        %v4738 = vsel %vm4482, %v3431, 0.0
        %v4739 = vsel %vm4483, %v3432, 0.0
        %v4740 = vsel %vm4484, %v3433, 0.0
        %v4741 = vsel %vm4485, %v3434, 0.0
        %v4742 = vsel %vm4486, %v3435, 0.0
        %v4743 = vsel %vm4487, %v3436, 0.0
        %v4744 = vsel %vm4488, %v3437, 0.0
        %v4745 = vsel %vm4489, %v3438, 0.0
        %v4746 = vsel %vm4490, %v3439, 0.0
        %v4747 = vsel %vm4491, %v3440, 0.0
        %v4748 = vsel %vm4492, %v3441, 0.0
        %v4749 = vsel %vm4493, %v3442, 0.0
        %v4750 = vsel %vm4494, %v3443, 0.0
        %v4751 = vsel %vm4495, %v3444, 0.0
        %v4752 = vsel %vm4496, %v3445, 0.0
        %v4753 = vsel %vm4497, %v3446, 0.0
        %v4754 = vsel %vm4498, %v3447, 0.0
        %v4755 = vsel %vm4499, %v3448, 0.0
        %v4756 = vsel %vm4500, %v3449, 0.0
        %v4757 = vsel %vm4501, %v3450, 0.0
        %v4758 = vsel %vm4502, %v3451, 0.0
        %v4759 = vsel %vm4503, %v3452, 0.0
        %v4760 = vsel %vm4504, %v3453, 0.0
        %v4761 = vsel %vm4505, %v3454, 0.0
        %v4762 = vsel %vm4506, %v3455, 0.0
        %v4763 = vsel %vm4507, %v3456, 0.0
        %v4764 = vsel %vm4508, %v3457, 0.0
        %v4765 = vsel %vm4509, %v3458, 0.0
        %v4766 = vsel %vm4510, %v3459, 0.0
        %v4767 = vsel %vm4511, %v3460, 0.0
        %v4768 = vsel %vm4512, %v3461, 0.0
        %v4769 = vsel %vm4513, %v3462, 0.0
        %v4770 = vsel %vm4514, %v3463, 0.0
        %v4771 = vsel %vm4515, %v3464, 0.0
        %v4772 = vsel %vm4516, %v3465, 0.0
        %v4773 = vsel %vm4517, %v3466, 0.0
        %v4774 = vsel %vm4518, %v3467, 0.0
        %v4775 = vsel %vm4519, %v3468, 0.0
        %v4776 = vsel %vm4520, %v3469, 0.0
        %v4777 = vsel %vm4521, %v3470, 0.0
        %v4778 = vsel %vm4522, %v3471, 0.0
        %v4779 = vsel %vm4523, %v3472, 0.0
        %v4780 = vsel %vm4524, %v3473, 0.0
        %v4781 = vsel %vm4525, %v3474, 0.0
        %v4782 = vsel %vm4526, %v3475, 0.0
        %v4783 = vsel %vm4527, %v3476, 0.0
        %v4784 = vsel %vm4528, %v3477, 0.0
        %v4785 = vsel %vm4529, %v3478, 0.0
        %v4786 = vsel %vm4530, %v3479, 0.0
        %v4787 = vsel %vm4531, %v3480, 0.0
        %v4788 = vsel %vm4532, %v3481, 0.0
        %v4789 = vsel %vm4533, %v3482, 0.0
        %v4790 = vsel %vm4534, %v3483, 0.0
        %v4791 = vsel %vm4535, %v3484, 0.0
        %v4792 = vsel %vm4536, %v3485, 0.0
        %v4793 = vsel %vm4537, %v3486, 0.0
        %v4794 = vsel %vm4538, %v3487, 0.0
        %v4795 = vsel %vm4539, %v3488, 0.0
        %v4796 = vsel %vm4540, %v3489, 0.0
        %v4797 = vsel %vm4541, %v3490, 0.0
        %v4798 = vsel %vm4542, %v3491, 0.0
        %v4799 = vsel %vm4543, %v3492, 0.0
        %v4800 = vsel %vm4544, %v3493, 0.0
        %v4801 = vsel %vm4545, %v3494, 0.0
        %v4802 = vsel %vm4546, %v3495, 0.0
        %v4803 = vsel %vm4547, %v3496, 0.0
        %v4804 = vsel %vm4548, %v3497, 0.0
        %v4805 = vsel %vm4549, %v3498, 0.0
        %v4806 = vsel %vm4550, %v3499, 0.0
        %v4807 = vsel %vm4551, %v3500, 0.0
        %v4808 = vsel %vm4552, %v3501, 0.0
        %v4809 = vsel %vm4553, %v3502, 0.0
        %v4810 = vsel %vm4554, %v3503, 0.0
        %v4811 = vsel %vm4555, %v3504, 0.0
        %v4812 = vsel %vm4556, %v3505, 0.0
        %v4813 = vsel %vm4557, %v3506, 0.0
        %v4814 = vsel %vm4558, %v3507, 0.0
        %v4815 = vsel %vm4559, %v3508, 0.0
        %v4816 = vsel %vm4560, %v3509, 0.0
        %v4817 = vsel %vm4561, %v3510, 0.0
        %v4818 = vsel %vm4562, %v3511, 0.0
        %v4819 = vsel %vm4563, %v3512, 0.0
        %v4820 = vsel %vm4564, %v3513, 0.0
        %v4821 = vsel %vm4565, %v3514, 0.0
        %v4822 = vsel %vm4566, %v3515, 0.0
        %v4823 = vsel %vm4567, %v3516, 0.0
        %v4824 = vsel %vm4568, %v3517, 0.0
        %v4825 = vsel %vm4569, %v3518, 0.0
        %v4826 = vsel %vm4570, %v3519, 0.0
        %v4827 = vsel %vm4571, %v3520, 0.0
        %v4828 = vsel %vm4572, %v3521, 0.0
        %v4829 = vsel %vm4573, %v3522, 0.0
        %v4830 = vsel %vm4574, %v3523, 0.0
        %v4831 = vsel %vm4575, %v3524, 0.0
        %v4832 = vsel %vm4576, %v3525, 0.0
        %v4833 = vsel %vm4577, %v3526, 0.0
        %v4834 = vsel %vm4578, %v3527, 0.0
        %v4835 = vsel %vm4579, %v3528, 0.0
        %v4836 = vsel %vm4580, %v3529, 0.0
        %v4837 = vsel %vm4581, %v3530, 0.0
        %v4838 = vsel %vm4582, %v3531, 0.0
        %v4839 = vsel %vm4583, %v3532, 0.0
        %v4840 = vsel %vm4584, %v3533, 0.0
        %v4841 = vsel %vm4585, %v3534, 0.0
        %v4842 = vsel %vm4586, %v3535, 0.0
        %v4843 = vsel %vm4587, %v3536, 0.0
        %v4844 = vsel %vm4588, %v3537, 0.0
        %v4845 = vsel %vm4589, %v3538, 0.0
        %v4846 = vsel %vm4590, %v3539, 0.0
        %v4847 = vsel %vm4591, %v3540, 0.0
        %v4848 = vsel %vm4592, %v3541, 0.0
        %v4849 = vsel %vm4593, %v3542, 0.0
        %v4850 = vsel %vm4594, %v3543, 0.0
        %v4851 = vsel %vm4595, %v3544, 0.0
        %v4852 = vsel %vm4596, %v3545, 0.0
        %v4853 = vsel %vm4597, %v3546, 0.0
        %v4854 = vsel %vm4598, %v3547, 0.0
        %v4855 = vsel %vm4599, %v3548, 0.0
        %v4856 = vsel %vm4600, %v3549, 0.0
        %v4857 = vsel %vm4601, %v3550, 0.0
        %v4858 = vsel %vm4602, %v3551, 0.0
        %v4859 = vsel %vm4603, %v3552, 0.0
        %v4860 = vsel %vm4604, %v3553, 0.0
        %v4861 = vsel %vm4605, %v3554, 0.0
        %v4862 = vsel %vm4606, %v3555, 0.0
        %v4863 = vsel %vm4607, %v3556, 0.0
        %v4864 = vsel %vm4608, %v3557, 0.0
        %v4865 = vsel %vm4609, %v3558, 0.0
        %v4866 = vsel %vm4610, %v3559, 0.0
        %v4867 = vsel %vm4611, %v3560, 0.0
        %v4868 = vsel %vm4612, %v3561, 0.0
        %v4869 = vsel %vm4613, %v3562, 0.0
        %v4870 = vsel %vm4614, %v3563, 0.0
        %v4871 = vsel %vm4615, %v3564, 0.0
        %v4872 = vsel %vm4616, %v3565, 0.0
        %v4873 = vsel %vm4617, %v3566, 0.0
        %v4874 = vsel %vm4618, %v3567, 0.0
        %v4875 = vsel %vm4619, %v3568, 0.0
        %v4876 = vsel %vm4620, %v3569, 0.0
        %v4877 = vsel %vm4621, %v3570, 0.0
        %v4878 = vsel %vm4622, %v3571, 0.0
        %v4879 = vsel %vm4623, %v3572, 0.0
        %v4880 = vsel %vm4624, %v3573, 0.0
        %v4881 = vsel %vm4625, %v3574, 0.0
        %v4882 = vsel %vm4626, %v3575, 0.0
        %v4883 = vsel %vm4627, %v3576, 0.0
        %v4884 = vsel %vm4628, %v3577, 0.0
        %v4885 = vsel %vm4629, %v3578, 0.0
        %v4886 = vsel %vm4630, %v3579, 0.0
        %v4887 = vsel %vm4631, %v3580, 0.0
        %v4888 = vsel %vm4632, %v3581, 0.0
        %v4889 = vsel %vm4633, %v3582, 0.0
        %v4890 = vsel %vm4634, %v3583, 0.0
        %v4891 = vsel %vm4635, %v3584, 0.0
        %v4892 = vsel %vm4636, %v3585, 0.0
        %v4893 = vsel %vm4637, %v3586, 0.0
        %v4894 = vsel %vm4638, %v3587, 0.0
        %v4895 = vsel %vm4639, %v3588, 0.0
        %v4896 = vsel %vm4640, %v3589, 0.0
        %v4897 = vsel %vm4641, %v3590, 0.0
        %v4898 = vsel %vm4642, %v3591, 0.0
        %v4899 = vsel %vm4643, %v3592, 0.0
        %v4900 = vsel %vm4644, %v3593, 0.0
        %v4901 = vsel %vm4645, %v3594, 0.0
        %v4902 = vsel %vm4646, %v3595, 0.0
        %v4903 = vsel %vm4647, %v3596, 0.0
        %v4904 = vsel %vm4648, %v3597, 0.0
        %v4905 = vsel %vm4649, %v3598, 0.0
        %v4906 = vsel %vm4650, %v3599, 0.0
        %v4907 = vsel %vm4651, %v3600, 0.0
        %v4908 = vsel %vm4652, %v3601, 0.0
        %v4909 = vsel %vm4653, %v3602, 0.0
        %v4910 = vsel %vm4654, %v3603, 0.0
        %v4911 = vsel %vm4655, %v3604, 0.0
        %v4912 = vsel %vm4656, %v3605, 0.0
        %v4913 = vsel %vm4657, %v3606, 0.0
        %v4914 = vsel %vm4658, %v3607, 0.0
        %v4915 = vsel %vm4659, %v3608, 0.0
        %v4916 = vsel %vm4660, %v3609, 0.0
        %v4917 = vsel %vm4661, %v3610, 0.0
        %v4918 = vsel %vm4662, %v3611, 0.0
        %v4919 = vsel %vm4663, %v3612, 0.0
        %v4920 = vsel %vm4664, %v3613, 0.0
        %v4921 = vsel %vm4665, %v3614, 0.0
        %v4922 = vsel %vm4666, %v3615, 0.0
        %v4923 = vsel %vm4667, %v3616, 0.0
        %v4924 = vsel %vm4668, %v3617, 0.0
        %v4925 = vsel %vm4669, %v3618, 0.0
        %v4926 = vsel %vm4670, %v3619, 0.0
        %v4927 = vsel %vm4671, %v3620, 0.0
        %v4928 = vsel %vm4672, %v3621, 0.0
        %v4929 = vsel %vm4673, %v3622, 0.0
        %v4930 = vsel %vm4674, %v3623, 0.0
        %v4931 = vsel %vm4675, %v3624, 0.0
        %v4932 = vsel %vm4676, %v3625, 0.0
        %v4933 = vsel %vm4677, %v3626, 0.0
        %v4934 = vsel %vm4678, %v3627, 0.0
        %v4935 = vsel %vm4679, %v3628, 0.0
        %v4936 = vsel %vm4680, %v3629, 0.0
        %v4937 = vsel %vm4681, %v3630, 0.0
        %v4938 = vsel %vm4682, %v3631, 0.0
        %v4939 = vsel %vm4683, %v3632, 0.0
        %v4940 = vsel %vm4684, %v3633, 0.0
        %v4941 = vsel %vm4685, %v3634, 0.0
        %v4942 = vsel %vm4686, %v3635, 0.0
        %v4943 = vsel %vm4687, %v3636, 0.0
        %v4944 = vsel %vm4688, %v3637, 0.0
        %v4945 = vsel %vm4689, %v3638, 0.0
        %v4946 = vsel %vm4690, %v3639, 0.0
        %v4947 = vsel %vm4691, %v3640, 0.0
        %v4948 = vsel %vm4692, %v3641, 0.0
        %v4949 = vsel %vm4693, %v3642, 0.0
        %v4950 = vsel %vm4694, %v3643, 0.0
        %v4951 = vsel %vm4695, %v3644, 0.0
        %v4952 = vsel %vm4696, %v3645, 0.0
        %v4953 = vsel %vm4697, %v3646, 0.0
        %v4954 = vsel %vm4698, %v3647, 0.0
        %v4955 = vsel %vm4699, %v3648, 0.0
        %v4956 = vsel %vm4700, %v3649, 0.0
        %v4957 = vsel %vm4701, %v3650, 0.0
        %v4958 = vsel %vm4702, %v3651, 0.0
        %v4959 = vsel %vm4703, %v3652, 0.0
        %v4960 = vsel %vm4704, %v3653, 0.0
        %v4961 = vsel %vm4705, %v3654, 0.0
        %v4962 = vsel %vm4706, %v3655, 0.0
        %v4963 = vsel %vm4707, %v3656, 0.0
        %v4964 = vsel %vm4708, %v3657, 0.0
        %v4965 = vsel %vm4709, %v3658, 0.0
        %v4966 = vsel %vm4710, %v3659, 0.0
        %v4967 = vsel %vm4711, %v3660, 0.0
        %v4968 = vsel %vm4712, %v3661, 0.0
        %v4969 = vsel %vm4713, %v3662, 0.0
        %v4970 = vsel %vm4714, %v3663, 0.0
        %v4971 = vsel %vm4715, %v3664, 0.0
        %v4972 = vsel %vm4716, %v3665, 0.0
        %v4973 = vsel %vm4717, %v3666, 0.0
        %v4974 = vsel %vm4718, %v3667, 0.0
        %v4975 = vsel %vm4719, %v3668, 0.0
        %v4976 = vsel %vm4720, %v3669, 0.0
        %v4977 = vsel %vm4721, %v3670, 0.0
        %v4978 = vsel %vm4722, %v3671, 0.0
        %v4979 = vsel %vm4723, %v3672, 0.0
        %v4980 = vsel %vm4724, %v3673, 0.0
        %v4981 = vsel %vm4725, %v3674, 0.0
        %v4982 = vld [vmem:[#allocation7] sm:$0xff]
        %v4983 = vld [vmem:[#allocation7 + $0x8] sm:$0xff]
        %v4984 = vld [vmem:[#allocation7 + $0x10] sm:$0xff]
        %v4985 = vld [vmem:[#allocation7 + $0x18] sm:$0xff]
        %v4986 = vld [vmem:[#allocation7 + $0x20] sm:$0xff]
        %v4987 = vld [vmem:[#allocation7 + $0x28] sm:$0xff]
        %v4988 = vld [vmem:[#allocation7 + $0x30] sm:$0xff]
        %v4989 = vld [vmem:[#allocation7 + $0x38] sm:$0xff]
        %v4990 = vadd.f32 %v4726, %v4734
        %v4991 = vadd.f32 %v4990, %v4742
        %v4992 = vadd.f32 %v4991, %v4750
        %v4993 = vadd.f32 %v4992, %v4758
        %v4994 = vadd.f32 %v4993, %v4766
        %v4995 = vadd.f32 %v4994, %v4774
        %v4996 = vadd.f32 %v4995, %v4782
        %v4997 = vadd.f32 %v4996, %v4790
        %v4998 = vadd.f32 %v4997, %v4798
        %v4999 = vadd.f32 %v4998, %v4806
        %v5000 = vadd.f32 %v4999, %v4814
        %v5001 = vadd.f32 %v5000, %v4822
        %v5002 = vadd.f32 %v5001, %v4830
        %v5003 = vadd.f32 %v5002, %v4838
        %v5004 = vadd.f32 %v5003, %v4846
        %v5005 = vadd.f32 %v5004, %v4854
        %v5006 = vadd.f32 %v5005, %v4862
        %v5007 = vadd.f32 %v5006, %v4870
        %v5008 = vadd.f32 %v5007, %v4878
        %v5009 = vadd.f32 %v5008, %v4886
        %v5010 = vadd.f32 %v5009, %v4894
        %v5011 = vadd.f32 %v5010, %v4902
        %v5012 = vadd.f32 %v5011, %v4910
        %v5013 = vadd.f32 %v5012, %v4918
        %v5014 = vadd.f32 %v5013, %v4926
        %v5015 = vadd.f32 %v5014, %v4934
        %v5016 = vadd.f32 %v5015, %v4942
        %v5017 = vadd.f32 %v5016, %v4950
        %v5018 = vadd.f32 %v5017, %v4958
        %v5019 = vadd.f32 %v5018, %v4966
        %v5020 = vadd.f32 %v5019, %v4974
        %v5021 = vadd.f32 %v4727, %v4735
        %v5022 = vadd.f32 %v5021, %v4743
        %v5023 = vadd.f32 %v5022, %v4751
        %v5024 = vadd.f32 %v5023, %v4759
        %v5025 = vadd.f32 %v5024, %v4767
        %v5026 = vadd.f32 %v5025, %v4775
        %v5027 = vadd.f32 %v5026, %v4783
        %v5028 = vadd.f32 %v5027, %v4791
        %v5029 = vadd.f32 %v5028, %v4799
        %v5030 = vadd.f32 %v5029, %v4807
        %v5031 = vadd.f32 %v5030, %v4815
        %v5032 = vadd.f32 %v5031, %v4823
        %v5033 = vadd.f32 %v5032, %v4831
        %v5034 = vadd.f32 %v5033, %v4839
        %v5035 = vadd.f32 %v5034, %v4847
        %v5036 = vadd.f32 %v5035, %v4855
        %v5037 = vadd.f32 %v5036, %v4863
        %v5038 = vadd.f32 %v5037, %v4871
        %v5039 = vadd.f32 %v5038, %v4879
        %v5040 = vadd.f32 %v5039, %v4887
        %v5041 = vadd.f32 %v5040, %v4895
        %v5042 = vadd.f32 %v5041, %v4903
        %v5043 = vadd.f32 %v5042, %v4911
        %v5044 = vadd.f32 %v5043, %v4919
        %v5045 = vadd.f32 %v5044, %v4927
        %v5046 = vadd.f32 %v5045, %v4935
        %v5047 = vadd.f32 %v5046, %v4943
        %v5048 = vadd.f32 %v5047, %v4951
        %v5049 = vadd.f32 %v5048, %v4959
        %v5050 = vadd.f32 %v5049, %v4967
        %v5051 = vadd.f32 %v5050, %v4975
        %v5052 = vadd.f32 %v4728, %v4736
        %v5053 = vadd.f32 %v5052, %v4744
        %v5054 = vadd.f32 %v5053, %v4752
        %v5055 = vadd.f32 %v5054, %v4760
        %v5056 = vadd.f32 %v5055, %v4768
        %v5057 = vadd.f32 %v5056, %v4776
        %v5058 = vadd.f32 %v5057, %v4784
        %v5059 = vadd.f32 %v5058, %v4792
        %v5060 = vadd.f32 %v5059, %v4800
        %v5061 = vadd.f32 %v5060, %v4808
        %v5062 = vadd.f32 %v5061, %v4816
        %v5063 = vadd.f32 %v5062, %v4824
        %v5064 = vadd.f32 %v5063, %v4832
        %v5065 = vadd.f32 %v5064, %v4840
        %v5066 = vadd.f32 %v5065, %v4848
        %v5067 = vadd.f32 %v5066, %v4856
        %v5068 = vadd.f32 %v5067, %v4864
        %v5069 = vadd.f32 %v5068, %v4872
        %v5070 = vadd.f32 %v5069, %v4880
        %v5071 = vadd.f32 %v5070, %v4888
        %v5072 = vadd.f32 %v5071, %v4896
        %v5073 = vadd.f32 %v5072, %v4904
        %v5074 = vadd.f32 %v5073, %v4912
        %v5075 = vadd.f32 %v5074, %v4920
        %v5076 = vadd.f32 %v5075, %v4928
        %v5077 = vadd.f32 %v5076, %v4936
        %v5078 = vadd.f32 %v5077, %v4944
        %v5079 = vadd.f32 %v5078, %v4952
        %v5080 = vadd.f32 %v5079, %v4960
        %v5081 = vadd.f32 %v5080, %v4968
        %v5082 = vadd.f32 %v5081, %v4976
        %v5083 = vadd.f32 %v4729, %v4737
        %v5084 = vadd.f32 %v5083, %v4745
        %v5085 = vadd.f32 %v5084, %v4753
        %v5086 = vadd.f32 %v5085, %v4761
        %v5087 = vadd.f32 %v5086, %v4769
        %v5088 = vadd.f32 %v5087, %v4777
        %v5089 = vadd.f32 %v5088, %v4785
        %v5090 = vadd.f32 %v5089, %v4793
        %v5091 = vadd.f32 %v5090, %v4801
        %v5092 = vadd.f32 %v5091, %v4809
        %v5093 = vadd.f32 %v5092, %v4817
        %v5094 = vadd.f32 %v5093, %v4825
        %v5095 = vadd.f32 %v5094, %v4833
        %v5096 = vadd.f32 %v5095, %v4841
        %v5097 = vadd.f32 %v5096, %v4849
        %v5098 = vadd.f32 %v5097, %v4857
        %v5099 = vadd.f32 %v5098, %v4865
        %v5100 = vadd.f32 %v5099, %v4873
        %v5101 = vadd.f32 %v5100, %v4881
        %v5102 = vadd.f32 %v5101, %v4889
        %v5103 = vadd.f32 %v5102, %v4897
        %v5104 = vadd.f32 %v5103, %v4905
        %v5105 = vadd.f32 %v5104, %v4913
        %v5106 = vadd.f32 %v5105, %v4921
        %v5107 = vadd.f32 %v5106, %v4929
        %v5108 = vadd.f32 %v5107, %v4937
        %v5109 = vadd.f32 %v5108, %v4945
        %v5110 = vadd.f32 %v5109, %v4953
        %v5111 = vadd.f32 %v5110, %v4961
        %v5112 = vadd.f32 %v5111, %v4969
        %v5113 = vadd.f32 %v5112, %v4977
        %v5114 = vadd.f32 %v4730, %v4738
        %v5115 = vadd.f32 %v5114, %v4746
        %v5116 = vadd.f32 %v5115, %v4754
        %v5117 = vadd.f32 %v5116, %v4762
        %v5118 = vadd.f32 %v5117, %v4770
        %v5119 = vadd.f32 %v5118, %v4778
        %v5120 = vadd.f32 %v5119, %v4786
        %v5121 = vadd.f32 %v5120, %v4794
        %v5122 = vadd.f32 %v5121, %v4802
        %v5123 = vadd.f32 %v5122, %v4810
        %v5124 = vadd.f32 %v5123, %v4818
        %v5125 = vadd.f32 %v5124, %v4826
        %v5126 = vadd.f32 %v5125, %v4834
        %v5127 = vadd.f32 %v5126, %v4842
        %v5128 = vadd.f32 %v5127, %v4850
        %v5129 = vadd.f32 %v5128, %v4858
        %v5130 = vadd.f32 %v5129, %v4866
        %v5131 = vadd.f32 %v5130, %v4874
        %v5132 = vadd.f32 %v5131, %v4882
        %v5133 = vadd.f32 %v5132, %v4890
        %v5134 = vadd.f32 %v5133, %v4898
        %v5135 = vadd.f32 %v5134, %v4906
        %v5136 = vadd.f32 %v5135, %v4914
        %v5137 = vadd.f32 %v5136, %v4922
        %v5138 = vadd.f32 %v5137, %v4930
        %v5139 = vadd.f32 %v5138, %v4938
        %v5140 = vadd.f32 %v5139, %v4946
        %v5141 = vadd.f32 %v5140, %v4954
        %v5142 = vadd.f32 %v5141, %v4962
        %v5143 = vadd.f32 %v5142, %v4970
        %v5144 = vadd.f32 %v5143, %v4978
        %v5145 = vadd.f32 %v4731, %v4739
        %v5146 = vadd.f32 %v5145, %v4747
        %v5147 = vadd.f32 %v5146, %v4755
        %v5148 = vadd.f32 %v5147, %v4763
        %v5149 = vadd.f32 %v5148, %v4771
        %v5150 = vadd.f32 %v5149, %v4779
        %v5151 = vadd.f32 %v5150, %v4787
        %v5152 = vadd.f32 %v5151, %v4795
        %v5153 = vadd.f32 %v5152, %v4803
        %v5154 = vadd.f32 %v5153, %v4811
        %v5155 = vadd.f32 %v5154, %v4819
        %v5156 = vadd.f32 %v5155, %v4827
        %v5157 = vadd.f32 %v5156, %v4835
        %v5158 = vadd.f32 %v5157, %v4843
        %v5159 = vadd.f32 %v5158, %v4851
        %v5160 = vadd.f32 %v5159, %v4859
        %v5161 = vadd.f32 %v5160, %v4867
        %v5162 = vadd.f32 %v5161, %v4875
        %v5163 = vadd.f32 %v5162, %v4883
        %v5164 = vadd.f32 %v5163, %v4891
        %v5165 = vadd.f32 %v5164, %v4899
        %v5166 = vadd.f32 %v5165, %v4907
        %v5167 = vadd.f32 %v5166, %v4915
        %v5168 = vadd.f32 %v5167, %v4923
        %v5169 = vadd.f32 %v5168, %v4931
        %v5170 = vadd.f32 %v5169, %v4939
        %v5171 = vadd.f32 %v5170, %v4947
        %v5172 = vadd.f32 %v5171, %v4955
        %v5173 = vadd.f32 %v5172, %v4963
        %v5174 = vadd.f32 %v5173, %v4971
        %v5175 = vadd.f32 %v5174, %v4979
        %v5176 = vadd.f32 %v4732, %v4740
        %v5177 = vadd.f32 %v5176, %v4748
        %v5178 = vadd.f32 %v5177, %v4756
        %v5179 = vadd.f32 %v5178, %v4764
        %v5180 = vadd.f32 %v5179, %v4772
        %v5181 = vadd.f32 %v5180, %v4780
        %v5182 = vadd.f32 %v5181, %v4788
        %v5183 = vadd.f32 %v5182, %v4796
        %v5184 = vadd.f32 %v5183, %v4804
        %v5185 = vadd.f32 %v5184, %v4812
        %v5186 = vadd.f32 %v5185, %v4820
        %v5187 = vadd.f32 %v5186, %v4828
        %v5188 = vadd.f32 %v5187, %v4836
        %v5189 = vadd.f32 %v5188, %v4844
        %v5190 = vadd.f32 %v5189, %v4852
        %v5191 = vadd.f32 %v5190, %v4860
        %v5192 = vadd.f32 %v5191, %v4868
        %v5193 = vadd.f32 %v5192, %v4876
        %v5194 = vadd.f32 %v5193, %v4884
        %v5195 = vadd.f32 %v5194, %v4892
        %v5196 = vadd.f32 %v5195, %v4900
        %v5197 = vadd.f32 %v5196, %v4908
        %v5198 = vadd.f32 %v5197, %v4916
        %v5199 = vadd.f32 %v5198, %v4924
        %v5200 = vadd.f32 %v5199, %v4932
        %v5201 = vadd.f32 %v5200, %v4940
        %v5202 = vadd.f32 %v5201, %v4948
        %v5203 = vadd.f32 %v5202, %v4956
        %v5204 = vadd.f32 %v5203, %v4964
        %v5205 = vadd.f32 %v5204, %v4972
        %v5206 = vadd.f32 %v5205, %v4980
        %v5207 = vadd.f32 %v4733, %v4741
        %v5208 = vadd.f32 %v5207, %v4749
        %v5209 = vadd.f32 %v5208, %v4757
        %v5210 = vadd.f32 %v5209, %v4765
        %v5211 = vadd.f32 %v5210, %v4773
        %v5212 = vadd.f32 %v5211, %v4781
        %v5213 = vadd.f32 %v5212, %v4789
        %v5214 = vadd.f32 %v5213, %v4797
        %v5215 = vadd.f32 %v5214, %v4805
        %v5216 = vadd.f32 %v5215, %v4813
        %v5217 = vadd.f32 %v5216, %v4821
        %v5218 = vadd.f32 %v5217, %v4829
        %v5219 = vadd.f32 %v5218, %v4837
        %v5220 = vadd.f32 %v5219, %v4845
        %v5221 = vadd.f32 %v5220, %v4853
        %v5222 = vadd.f32 %v5221, %v4861
        %v5223 = vadd.f32 %v5222, %v4869
        %v5224 = vadd.f32 %v5223, %v4877
        %v5225 = vadd.f32 %v5224, %v4885
        %v5226 = vadd.f32 %v5225, %v4893
        %v5227 = vadd.f32 %v5226, %v4901
        %v5228 = vadd.f32 %v5227, %v4909
        %v5229 = vadd.f32 %v5228, %v4917
        %v5230 = vadd.f32 %v5229, %v4925
        %v5231 = vadd.f32 %v5230, %v4933
        %v5232 = vadd.f32 %v5231, %v4941
        %v5233 = vadd.f32 %v5232, %v4949
        %v5234 = vadd.f32 %v5233, %v4957
        %v5235 = vadd.f32 %v5234, %v4965
        %v5236 = vadd.f32 %v5235, %v4973
        %v5237 = vadd.f32 %v5236, %v4981
        %v5238 = vadd.f32 %v4982, %v5020
        %v5239 = vadd.f32 %v4983, %v5051
        %v5240 = vadd.f32 %v4984, %v5082
        %v5241 = vadd.f32 %v4985, %v5113
        %v5242 = vadd.f32 %v4986, %v5144
        %v5243 = vadd.f32 %v4987, %v5175
        %v5244 = vadd.f32 %v4988, %v5206
        %v5245 = vadd.f32 %v4989, %v5237
        %5246 = vst [vmem:[#allocation7] sm:$0xff] %v5238
        %5247 = vst [vmem:[#allocation7 + $0x8] sm:$0xff] %v5239
        %5248 = vst [vmem:[#allocation7 + $0x10] sm:$0xff] %v5240
        %5249 = vst [vmem:[#allocation7 + $0x18] sm:$0xff] %v5241
        %5250 = vst [vmem:[#allocation7 + $0x20] sm:$0xff] %v5242
        %5251 = vst [vmem:[#allocation7 + $0x28] sm:$0xff] %v5243
        %5252 = vst [vmem:[#allocation7 + $0x30] sm:$0xff] %v5244
        %5253 = vst [vmem:[#allocation7 + $0x38] sm:$0xff] %v5245
      $region33: #{tpu_custom_call.1} parent=24 // pred_fallthru
        _
    $region25: #{tpu_custom_call.1} parent=1 // pred_fallthru
      _
    // Predicated region
    $region34: #{tpu_custom_call.1} parent=1 // pred_check
      _
    $region35: #{tpu_custom_call.1} parent=1 // pred_check_branch
      %5255 = sbr.rel (0) target = $region37
    $region36: #{tpu_custom_call.1} parent=1 // pred_region
      %s5257 = ssub.s32 1024, 1024
      %5258 = vsyncadd [#allocation4], %s5257
      %s5259 = sshll.u32 [#allocation7], 4
      %s5260 = int_to_ptr.vmem [resolvable:$true] %s5259
      %5265 = dma.vmem_to_hbm [thread:$0]  %s5260, 1024, %s2, [#allocation4], 128, 128, 8
    $region37: #{tpu_custom_call.1} parent=1 // pred_fallthru
      _
    // Predicated region
    $region38: #{tpu_custom_call.1} parent=1 // pred_check
      _
    $region39: #{tpu_custom_call.1} parent=1 // pred_check_branch
      %5267 = sbr.rel (0) target = $region41
    $region40: #{tpu_custom_call.1} parent=1 // pred_region
      %5268 = dma.done [#allocation4], 1024
    $region41: #{tpu_custom_call.1} parent=1 // pred_fallthru
      _
    %5269 = vsyncpa [#allocation3], 1
    %5270 = vsyncpa [#allocation6], 1
    %5271 = vsyncpa [#allocation4], 1

</llo_original>
